<compile_context>
chip_gen: v5e
topology: v5e:2x2
jax: 0.10.0
libtpu: 0.0.40
codegen_flags: <defaults>
</compile_context>

<pallas_src>
import functools

import jax
import jax.numpy as jnp
import numpy as np
from jax import lax
from jax.experimental import pallas as pl
from jax.experimental.pallas import tpu as pltpu


# ----------------------------------------------------------------------------
# compiler params (generation-aware VMEM clamp)
# ----------------------------------------------------------------------------
def _mosaic_params(semantics, vmem_bytes):
    try:
        cap = int(pltpu.get_tpu_info().vmem_capacity_bytes)
    except Exception:            # conservative fallback: v7x has 64 MiB per TC
        cap = 64 << 20
    vmem_bytes = int(min(max(vmem_bytes, 16 << 20), (3 * cap) // 4))
    return pltpu.CompilerParams(dimension_semantics=semantics,
                                vmem_limit_bytes=vmem_bytes)


# ----------------------------------------------------------------------------
# Fused kernel: Conv1d(k=1) + InstanceNorm1d(affine=False, eps=1e-5) + ReLU,
#               farthest point sampling, and the point/feature gather.
# One grid step per batch element; everything for that batch stays in VMEM.
# ----------------------------------------------------------------------------
def _downsample_kernel(ptsT_ref, pts_ref, feat_ref, w_ref, sp_ref, sf_ref,
                       feats_ref, dmat_ref, *, npoint, n_total, is_center,
                       use_bf16):
    # --------- Conv1d(k=1) + InstanceNorm1d + ReLU, fully in VMEM -----------
    x = feat_ref[...]                                  # (N, Cin)
    w = w_ref[...]                                     # (Cin, Cout)
    if use_bf16:                                       # bf16 MXU, f32 accumulate
        x = x.astype(jnp.bfloat16)
        w = w.astype(jnp.bfloat16)
    y = jnp.dot(x, w, preferred_element_type=jnp.float32)        # (N, Cout) f32
    mean = jnp.mean(y, axis=0, keepdims=True)                    # (1, Cout)
    yc = y - mean
    var = jnp.mean(yc * yc, axis=0, keepdims=True)               # biased, centered
    feats_ref[...] = jnp.maximum(yc * lax.rsqrt(var + 1e-5), 0.0)

    # --------- pairwise squared distances (VPU only, off the serial path) ---
    p = pts_ref[...]                                   # (N, 3)
    pt = ptsT_ref[...]                                 # (3, N)
    px_c, py_c, pz_c = p[:, 0:1], p[:, 1:2], p[:, 2:3]     # (N, 1) columns
    px_r, py_r, pz_r = pt[0:1, :], pt[1:2, :], pt[2:3, :]  # (1, N) rows
    dmat_ref[...] = ((px_c - px_r) ** 2 + (py_c - py_r) ** 2
                     + (pz_c - pz_r) ** 2)             # (N, N) |p_i - p_j|^2

    lane = lax.broadcasted_iota(jnp.int32, (1, n_total), 1)

    def argmax_row(v):         # (1, N) f32 -> int32 scalar (smallest tie index)
        m = jnp.max(v, axis=1, keepdims=True)
        hit = jnp.where(v == m, lane, n_total)
        return jnp.min(hit, axis=1, keepdims=True)[0, 0].astype(jnp.int32)

    if is_center:
        # Seed = point farthest from the barycenter.
        c0 = jnp.mean(pt, axis=1, keepdims=True)                 # (3, 1)
        d0 = jnp.sum((pt - c0) ** 2, axis=0, keepdims=True)      # (1, N)
        far0 = argmax_row(d0)
    else:
        # TODO(synk): reference uses torch.randint for the seed when
        #             is_center=False; a deterministic index 0 is used here.
        far0 = jnp.zeros((), jnp.int32)

    dist0 = jnp.full((1, n_total), 1e10, jnp.float32)

    def body(i, carry):
        far, dist = carry
        # Gather the selected point / feature rows.  These stores are off the
        # serial argmax chain, so they hide under the loop's latency.
        sp_ref[pl.ds(i, 1), :] = pts_ref[pl.ds(far, 1), :]       # (1, 3)
        sf_ref[pl.ds(i, 1), :] = feats_ref[pl.ds(far, 1), :]     # (1, Cout)
        # Distance update: one dynamic row load from the precomputed matrix.
        d = dmat_ref[pl.ds(far, 1), :]                           # (1, N)
        dist = jnp.minimum(dist, d)
        return argmax_row(dist), dist

    lax.fori_loop(0, npoint, body, (far0, dist0))


def transformer_downsample(points, features, conv_w, *, num_points,
                           is_center=True, use_bf16=True):
    B, N, _ = points.shape
    Cin = features.shape[-1]
    Cout = conv_w.shape[1]
    points_t = jnp.transpose(points, (0, 2, 1))        # (B, 3, N), wrapper-side

    kernel = functools.partial(_downsample_kernel, npoint=num_points, n_total=N,
                               is_center=is_center, use_bf16=use_bf16)

    lp = lambda c: -(-c // 128) * 128                  # lane padding
    sp8 = lambda r: -(-r // 8) * 8                     # sublane padding
    vmem = 4 * (2 * (sp8(3) * N + N * lp(3) + N * lp(Cin) + sp8(Cin) * lp(Cout)
                     + num_points * lp(3) + num_points * lp(Cout))
                + N * lp(Cout) + N * lp(N)) + (4 << 20)

    return pl.pallas_call(
        kernel,
        out_shape=(jax.ShapeDtypeStruct((B, num_points, 3), jnp.float32),
                   jax.ShapeDtypeStruct((B, num_points, Cout), jnp.float32)),
        grid=(B,),
        in_specs=[
            pl.BlockSpec((None, 3, N), lambda b: (b, 0, 0)),     # points^T
            pl.BlockSpec((None, N, 3), lambda b: (b, 0, 0)),     # points
            pl.BlockSpec((None, N, Cin), lambda b: (b, 0, 0)),   # raw features
            pl.BlockSpec((Cin, Cout), lambda b: (0, 0)),         # conv weight
        ],
        out_specs=(pl.BlockSpec((None, num_points, 3), lambda b: (b, 0, 0)),
                   pl.BlockSpec((None, num_points, Cout), lambda b: (b, 0, 0))),
        scratch_shapes=[pltpu.VMEM((N, Cout), jnp.float32),      # activated feats
                        pltpu.VMEM((N, N), jnp.float32)],        # distance matrix
        compiler_params=_mosaic_params(("parallel",), vmem),
    )(points_t, points, features, conv_w)


# ----------------------------------------------------------------------------
# Module forward
# ----------------------------------------------------------------------------
def transformer_downsampling_forward(points, features, conv_w, conv_b,
                                     num_points, is_center=True, use_bf16=True):
    # The Conv1d bias is a per-channel constant that is exactly cancelled by
    # the mean subtraction of the (affine=False) InstanceNorm1d that follows,
    # so it is not sent to the kernel (saves a DMA and a VPU add).
    del conv_b
    return transformer_downsample(points, features, conv_w,
                                  num_points=num_points, is_center=is_center,
                                  use_bf16=use_bf16)


if __name__ == "__main__":
    key = jax.random.PRNGKey(0)
    k1, k2, k3, k4 = jax.random.split(key, 4)

    B, N = 2, 512
    in_dim, out_dim = 64, 128          # lane-dense feature width
    num_points = 128

    points = jax.random.normal(k1, (B, N, 3), jnp.float32)
    features = jax.random.normal(k2, (B, N, in_dim), jnp.float32)
    # PyTorch Conv1d weight (out, in, 1) stored transposed as (in, out); bias (1, out).
    conv_w = jax.random.normal(k3, (in_dim, out_dim), jnp.float32) / jnp.sqrt(in_dim)
    conv_b = jax.random.normal(k4, (1, out_dim), jnp.float32) * 0.01

    sp, sf = transformer_downsampling_forward(points, features, conv_w, conv_b,
                                              num_points, is_center=True)
    sp, sf = jax.block_until_ready((sp, sf))

    assert sp.shape == (B, num_points, 3), sp.shape
    assert sf.shape == (B, num_points, out_dim), sf.shape
    assert bool(jnp.all(jnp.isfinite(sp)))
    assert bool(jnp.all(jnp.isfinite(sf)))

    # Every sampled point must coincide (bitwise) with one of the input points.
    d = jnp.sum((sp[:, :, None, :] - points[:, None, :, :]) ** 2, axis=-1)
    idx = jnp.argmin(d, axis=-1)                              # recovered indices
    assert float(jnp.max(jnp.min(d, axis=-1))) < 1e-6

    # FPS should pick num_points distinct points.
    for b in range(B):
        assert np.unique(np.asarray(idx[b])).size == num_points

    # Gathered features must match a pure-JAX Conv1d + InstanceNorm + ReLU
    # reference evaluated at the same indices (bf16 MXU tolerance).
    y_ref = jnp.einsum("bnc,co->bno", features, conv_w) + conv_b
    mu = jnp.mean(y_ref, axis=1, keepdims=True)
    var = jnp.mean((y_ref - mu) ** 2, axis=1, keepdims=True)
    f_ref = jnp.maximum((y_ref - mu) / jnp.sqrt(var + 1e-5), 0.0)
    f_sel = jnp.take_along_axis(f_ref, idx[..., None], axis=1)
    assert float(jnp.max(jnp.abs(f_sel - sf))) < 0.1

    print("KERNEL_OK")
</pallas_src>

<mosaic_0001>
module attributes {stable_mosaic.version = 11 : i64} {
  func.func @_downsample_kernel(%arg0: i32, %arg1: memref<1x3x512xf32, #tpu.memory_space<vmem>>, %arg2: memref<1x512x3xf32, #tpu.memory_space<vmem>>, %arg3: memref<1x512x64xf32, #tpu.memory_space<vmem>>, %arg4: memref<64x128xf32, #tpu.memory_space<vmem>>, %arg5: memref<1x128x3xf32, #tpu.memory_space<vmem>>, %arg6: memref<1x128x128xf32, #tpu.memory_space<vmem>>, %arg7: memref<512x128xf32, #tpu.memory_space<vmem>>, %arg8: memref<512x512xf32, #tpu.memory_space<vmem>>) attributes {dimension_semantics = [#tpu.dimension_semantics<parallel>], iteration_bounds = array<i64: 2>, scalar_prefetch = 0 : i64, scratch_operands = 2 : i64, tpu.core_type = #tpu.core_type<tc>, window_params = [{transform_indices = @transform_0, window_bounds = array<i64: 1, 3, 512>}, {transform_indices = @transform_1, window_bounds = array<i64: 1, 512, 3>}, {transform_indices = @transform_2, window_bounds = array<i64: 1, 512, 64>}, {pipeline_mode = #tpu.pipeline_mode<synchronous>, transform_indices = @transform_3, window_bounds = array<i64: 64, 128>}, {transform_indices = @transform_4, window_bounds = array<i64: 1, 128, 3>}, {transform_indices = @transform_5, window_bounds = array<i64: 1, 128, 128>}]} {
    %c0 = arith.constant 0 : index
    %c0_0 = arith.constant 0 : index
    %c0_1 = arith.constant 0 : index
    %0 = vector.load %arg3[%c0, %c0_0, %c0_1] : memref<1x512x64xf32, #tpu.memory_space<vmem>>, vector<1x512x64xf32>
    %1 = vector.shape_cast %0 : vector<1x512x64xf32> to vector<512x64xf32>
    %c0_2 = arith.constant 0 : index
    %c0_3 = arith.constant 0 : index
    %2 = vector.load %arg4[%c0_2, %c0_3] : memref<64x128xf32, #tpu.memory_space<vmem>>, vector<64x128xf32>
    %3 = arith.truncf %1 : vector<512x64xf32> to vector<512x64xbf16>
    %4 = arith.truncf %2 : vector<64x128xf32> to vector<64x128xbf16>
    %cst = arith.constant dense<0.000000e+00> : vector<512x128xf32>
    %5 = tpu.matmul %3, %4, %cst {dimension_numbers = #tpu.dot_dimension_numbers<[1], [0], [0], [1], [0, 0, 1, 1], [], []>} : vector<512x64xbf16>, vector<64x128xbf16>, vector<512x128xf32> -> vector<512x128xf32>
    %cst_4 = arith.constant dense<0.000000e+00> : vector<128xf32>
    %6 = vector.multi_reduction <add>, %5, %cst_4 [0] : vector<512x128xf32> to vector<128xf32>
    %7 = vector.shape_cast %6 : vector<128xf32> to vector<1x128xf32>
    %cst_5 = arith.constant 5.120000e+02 : f32
    %8 = vector.broadcast %cst_5 : f32 to vector<1x128xf32>
    %9 = arith.divf %7, %8 : vector<1x128xf32>
    %10 = vector.broadcast %9 : vector<1x128xf32> to vector<512x128xf32>
    %11 = arith.subf %5, %10 : vector<512x128xf32>
    %12 = arith.mulf %11, %11 : vector<512x128xf32>
    %cst_6 = arith.constant dense<0.000000e+00> : vector<128xf32>
    %13 = vector.multi_reduction <add>, %12, %cst_6 [0] : vector<512x128xf32> to vector<128xf32>
    %14 = vector.shape_cast %13 : vector<128xf32> to vector<1x128xf32>
    %cst_7 = arith.constant 5.120000e+02 : f32
    %15 = vector.broadcast %cst_7 : f32 to vector<1x128xf32>
    %16 = arith.divf %14, %15 : vector<1x128xf32>
    %cst_8 = arith.constant 9.99999974E-6 : f32
    %17 = vector.broadcast %cst_8 : f32 to vector<1x128xf32>
    %18 = arith.addf %16, %17 : vector<1x128xf32>
    %19 = math.rsqrt %18 : vector<1x128xf32>
    %20 = vector.broadcast %19 : vector<1x128xf32> to vector<512x128xf32>
    %21 = arith.mulf %11, %20 : vector<512x128xf32>
    %cst_9 = arith.constant 0.000000e+00 : f32
    %22 = vector.broadcast %cst_9 : f32 to vector<512x128xf32>
    %23 = arith.maximumf %21, %22 : vector<512x128xf32>
    %c0_10 = arith.constant 0 : index
    %c0_11 = arith.constant 0 : index
    %24 = vector.load %arg7[%c0_10, %c0_11] : memref<512x128xf32, #tpu.memory_space<vmem>>, vector<512x128xf32>
    tpu.vector_store %arg7[%c0_10, %c0_11], %23 {strides = array<i32>} : memref<512x128xf32, #tpu.memory_space<vmem>>, vector<512x128xf32>,
    %c0_12 = arith.constant 0 : index
    %c0_13 = arith.constant 0 : index
    %c0_14 = arith.constant 0 : index
    %25 = vector.load %arg2[%c0_12, %c0_13, %c0_14] : memref<1x512x3xf32, #tpu.memory_space<vmem>>, vector<1x512x3xf32>
    %26 = vector.shape_cast %25 : vector<1x512x3xf32> to vector<512x3xf32>
    %c0_15 = arith.constant 0 : index
    %c0_16 = arith.constant 0 : index
    %c0_17 = arith.constant 0 : index
    %27 = vector.load %arg1[%c0_15, %c0_16, %c0_17] : memref<1x3x512xf32, #tpu.memory_space<vmem>>, vector<1x3x512xf32>
    %28 = vector.shape_cast %27 : vector<1x3x512xf32> to vector<3x512xf32>
    %29 = vector.extract_strided_slice %26 {offsets = [0, 0], sizes = [512, 1], strides = [1, 1]} : vector<512x3xf32> to vector<512x1xf32>
    %30 = vector.extract_strided_slice %26 {offsets = [0, 1], sizes = [512, 1], strides = [1, 1]} : vector<512x3xf32> to vector<512x1xf32>
    %31 = vector.extract_strided_slice %26 {offsets = [0, 2], sizes = [512, 1], strides = [1, 1]} : vector<512x3xf32> to vector<512x1xf32>
    %32 = vector.extract_strided_slice %28 {offsets = [0, 0], sizes = [1, 512], strides = [1, 1]} : vector<3x512xf32> to vector<1x512xf32>
    %33 = vector.extract_strided_slice %28 {offsets = [1, 0], sizes = [1, 512], strides = [1, 1]} : vector<3x512xf32> to vector<1x512xf32>
    %34 = vector.extract_strided_slice %28 {offsets = [2, 0], sizes = [1, 512], strides = [1, 1]} : vector<3x512xf32> to vector<1x512xf32>
    %35 = vector.broadcast %29 : vector<512x1xf32> to vector<512x512xf32>
    %36 = vector.broadcast %32 : vector<1x512xf32> to vector<512x512xf32>
    %37 = arith.subf %35, %36 : vector<512x512xf32>
    %38 = arith.mulf %37, %37 : vector<512x512xf32>
    %39 = vector.broadcast %30 : vector<512x1xf32> to vector<512x512xf32>
    %40 = vector.broadcast %33 : vector<1x512xf32> to vector<512x512xf32>
    %41 = arith.subf %39, %40 : vector<512x512xf32>
    %42 = arith.mulf %41, %41 : vector<512x512xf32>
    %43 = arith.addf %38, %42 : vector<512x512xf32>
    %44 = vector.broadcast %31 : vector<512x1xf32> to vector<512x512xf32>
    %45 = vector.broadcast %34 : vector<1x512xf32> to vector<512x512xf32>
    %46 = arith.subf %44, %45 : vector<512x512xf32>
    %47 = arith.mulf %46, %46 : vector<512x512xf32>
    %48 = arith.addf %43, %47 : vector<512x512xf32>
    %c0_18 = arith.constant 0 : index
    %c0_19 = arith.constant 0 : index
    %49 = vector.load %arg8[%c0_18, %c0_19] : memref<512x512xf32, #tpu.memory_space<vmem>>, vector<512x512xf32>
    tpu.vector_store %arg8[%c0_18, %c0_19], %48 {strides = array<i32>} : memref<512x512xf32, #tpu.memory_space<vmem>>, vector<512x512xf32>,
    %50 = tpu.iota {dimensions = array<i32: 1>} : vector<1x512xi32>
    %cst_20 = arith.constant dense<0.000000e+00> : vector<3xf32>
    %51 = vector.multi_reduction <add>, %28, %cst_20 [1] : vector<3x512xf32> to vector<3xf32>
    %52 = vector.shape_cast %51 : vector<3xf32> to vector<3x1xf32>
    %cst_21 = arith.constant 5.120000e+02 : f32
    %53 = vector.broadcast %cst_21 : f32 to vector<3x1xf32>
    %54 = arith.divf %52, %53 : vector<3x1xf32>
    %55 = vector.broadcast %54 : vector<3x1xf32> to vector<3x512xf32>
    %56 = arith.subf %28, %55 : vector<3x512xf32>
    %57 = arith.mulf %56, %56 : vector<3x512xf32>
    %cst_22 = arith.constant dense<0.000000e+00> : vector<512xf32>
    %58 = vector.multi_reduction <add>, %57, %cst_22 [0] : vector<3x512xf32> to vector<512xf32>
    %59 = vector.shape_cast %58 : vector<512xf32> to vector<1x512xf32>
    %cst_23 = arith.constant dense<0xFF800000> : vector<1xf32>
    %60 = vector.multi_reduction <maximumf>, %59, %cst_23 [1] : vector<1x512xf32> to vector<1xf32>
    %61 = vector.shape_cast %60 : vector<1xf32> to vector<1x1xf32>
    %62 = vector.broadcast %61 : vector<1x1xf32> to vector<1x512xf32>
    %63 = arith.cmpf oeq, %59, %62 : vector<1x512xf32>
    %c512_i32 = arith.constant 512 : i32
    %64 = vector.broadcast %c512_i32 : i32 to vector<1x512xi32>
    %65 = arith.select %63, %50, %64 : vector<1x512xi1>, vector<1x512xi32>
    %cst_24 = arith.constant dense<2147483647> : vector<1xi32>
    %66 = vector.multi_reduction <minsi>, %65, %cst_24 [1] : vector<1x512xi32> to vector<1xi32>
    %67 = vector.shape_cast %66 : vector<1xi32> to vector<1x1xi32>
    %68 = vector.extract %67[0, 0] : i32 from vector<1x1xi32>
    %cst_25 = arith.constant 1.000000e+10 : f32
    %69 = vector.broadcast %cst_25 : f32 to vector<1x512xf32>
    %c0_i32 = arith.constant 0 : i32
    %c128_i32 = arith.constant 128 : i32
    %70 = arith.addi %c0_i32, %c128_i32 : i32
    %c1_i32 = arith.constant 1 : i32
    %71:2 = scf.for %arg9 = %c0_i32 to %70 step %c1_i32 iter_args(%arg10 = %68, %arg11 = %69) -> (i32, vector<1x512xf32>)  : i32 {
      %c0_27 = arith.constant 0 : index
      %72 = arith.index_cast %arg10 : i32 to index
      %c0_28 = arith.constant 0 : index
      %73 = vector.load %arg2[%c0_27, %72, %c0_28] : memref<1x512x3xf32, #tpu.memory_space<vmem>>, vector<1x1x3xf32>
      %74 = vector.shape_cast %73 : vector<1x1x3xf32> to vector<1x3xf32>
      %c0_29 = arith.constant 0 : index
      %75 = arith.index_cast %arg9 : i32 to index
      %c0_30 = arith.constant 0 : index
      %76 = vector.load %arg5[%c0_29, %75, %c0_30] : memref<1x128x3xf32, #tpu.memory_space<vmem>>, vector<1x1x3xf32>
      %77 = vector.shape_cast %76 : vector<1x1x3xf32> to vector<1x3xf32>
      %78 = vector.shape_cast %74 : vector<1x3xf32> to vector<1x1x3xf32>
      tpu.vector_store %arg5[%c0_29, %75, %c0_30], %78 {strides = array<i32>} : memref<1x128x3xf32, #tpu.memory_space<vmem>>, vector<1x1x3xf32>,
      %79 = arith.index_cast %arg10 : i32 to index
      %c0_31 = arith.constant 0 : index
      %80 = vector.load %arg7[%79, %c0_31] : memref<512x128xf32, #tpu.memory_space<vmem>>, vector<1x128xf32>
      %c0_32 = arith.constant 0 : index
      %81 = arith.index_cast %arg9 : i32 to index
      %c0_33 = arith.constant 0 : index
      %82 = vector.load %arg6[%c0_32, %81, %c0_33] : memref<1x128x128xf32, #tpu.memory_space<vmem>>, vector<1x1x128xf32>
      %83 = vector.shape_cast %82 : vector<1x1x128xf32> to vector<1x128xf32>
      %84 = vector.shape_cast %80 : vector<1x128xf32> to vector<1x1x128xf32>
      tpu.vector_store %arg6[%c0_32, %81, %c0_33], %84 {strides = array<i32>} : memref<1x128x128xf32, #tpu.memory_space<vmem>>, vector<1x1x128xf32>,
      %85 = arith.index_cast %arg10 : i32 to index
      %c0_34 = arith.constant 0 : index
      %86 = vector.load %arg8[%85, %c0_34] : memref<512x512xf32, #tpu.memory_space<vmem>>, vector<1x512xf32>
      %87 = arith.minimumf %arg11, %86 : vector<1x512xf32>
      %cst_35 = arith.constant dense<0xFF800000> : vector<1xf32>
      %88 = vector.multi_reduction <maximumf>, %87, %cst_35 [1] : vector<1x512xf32> to vector<1xf32>
      %89 = vector.shape_cast %88 : vector<1xf32> to vector<1x1xf32>
      %90 = vector.broadcast %89 : vector<1x1xf32> to vector<1x512xf32>
      %91 = arith.cmpf oeq, %87, %90 : vector<1x512xf32>
      %c512_i32_36 = arith.constant 512 : i32
      %92 = vector.broadcast %c512_i32_36 : i32 to vector<1x512xi32>
      %93 = arith.select %91, %50, %92 : vector<1x512xi1>, vector<1x512xi32>
      %cst_37 = arith.constant dense<2147483647> : vector<1xi32>
      %94 = vector.multi_reduction <minsi>, %93, %cst_37 [1] : vector<1x512xi32> to vector<1xi32>
      %95 = vector.shape_cast %94 : vector<1xi32> to vector<1x1xi32>
      %96 = vector.extract %95[0, 0] : i32 from vector<1x1xi32>
      scf.yield %96, %87 : i32, vector<1x512xf32>
    }
    %c128_i32_26 = arith.constant 128 : i32
    return
  }
  func.func @transform_0(%arg0: i32) -> (i32, i32, i32) {
    %c0_i32 = arith.constant 0 : i32
    %c0_i32_0 = arith.constant 0 : i32
    %c0_i32_1 = arith.constant 0 : i32
    return %arg0, %c0_i32, %c0_i32_0 : i32, i32, i32
  }
  func.func @transform_1(%arg0: i32) -> (i32, i32, i32) {
    %c0_i32 = arith.constant 0 : i32
    %c0_i32_0 = arith.constant 0 : i32
    %c0_i32_1 = arith.constant 0 : i32
    return %arg0, %c0_i32, %c0_i32_0 : i32, i32, i32
  }
  func.func @transform_2(%arg0: i32) -> (i32, i32, i32) {
    %c0_i32 = arith.constant 0 : i32
    %c0_i32_0 = arith.constant 0 : i32
    %c0_i32_1 = arith.constant 0 : i32
    return %arg0, %c0_i32, %c0_i32_0 : i32, i32, i32
  }
  func.func @transform_3(%arg0: i32) -> (i32, i32) {
    %c0_i32 = arith.constant 0 : i32
    %c0_i32_0 = arith.constant 0 : i32
    %c0_i32_1 = arith.constant 0 : i32
    return %c0_i32, %c0_i32_0 : i32, i32
  }
  func.func @transform_4(%arg0: i32) -> (i32, i32, i32) {
    %c0_i32 = arith.constant 0 : i32
    %c0_i32_0 = arith.constant 0 : i32
    %c0_i32_1 = arith.constant 0 : i32
    return %arg0, %c0_i32, %c0_i32_0 : i32, i32, i32
  }
  func.func @transform_5(%arg0: i32) -> (i32, i32, i32) {
    %c0_i32 = arith.constant 0 : i32
    %c0_i32_0 = arith.constant 0 : i32
    %c0_i32_1 = arith.constant 0 : i32
    return %arg0, %c0_i32, %c0_i32_0 : i32, i32, i32
  }
}

</mosaic_0001>

<llo_original>
// kernel: tpu_custom_call.1
$region0: #{tpu_custom_call.1}
  #allocation0 [shape = 'u32[]', space=smem, size = 0x4, offset = 0x4, fixed_abs, tag = 'smem constant byte address 0x4 - core index']
  #allocation1 [shape = 'u32[72,128]{1,0:T(1,128)}', space=vmem, size = 0x9000, scoped, tag = 'internal scratch']
  #allocation2 [shape = 'f32[512,128]{1,0:T(8,128)}', space=vmem, size = 0x40000, scoped, tag = 'scratch operand']
  #allocation3 [shape = 'f32[512,512]{1,0:T(8,128)}', space=vmem, size = 0x100000, scoped, tag = 'scratch operand']
  %s0 = inlined_call_operand.vmem [shape: f32[2,3,512], index: 0, kind: input, shape index: {}]
  %s1 = inlined_call_operand.vmem [shape: f32[2,512,3], index: 1, kind: input, shape index: {}]
  %s2 = inlined_call_operand.vmem [shape: f32[2,512,64], index: 2, kind: input, shape index: {}]
  %s3 = inlined_call_operand.vmem [shape: f32[64,128], index: 3, kind: input, shape index: {}]
  %s4 = inlined_call_operand.vmem [shape: f32[2,128,3], index: 4, kind: output, shape index: {0}]
  %s5 = inlined_call_operand.hbm [shape: f32[2,128,128], index: 5, kind: output, shape index: {1}]
  %6 = xla_tuple %s4, %s5
  %s7 = sld [smem:[#allocation0]]
  $region64: #{tpu_custom_call.1} parent=0
    _
  %s9 = ssub.s32 1, %s7
  %s10 = scalar_select 0, %s9, %s7
  $region1: #{tpu_custom_call.1} parent=0
    #allocation4 [shape = 'u8[131072]{0}', space=vmem, size = 0x20000, scoped, tag = 'output window, operand 1']
    #allocation5 [shape = 's32[2]{0}', space=sflag, size = 0x8, scoped, tag = 'scoped memory for tpu_custom_call.1']
    %11 = vsyncpa [#allocation5], 0
    %s12 = scalar_lea.sflag [#allocation5], 1
    %13 = vsyncpa %s12, 0
    loop: start=0, step=1, limit=4
    $region2: #{tpu_custom_call.1} parent=1 // loop_pre_header
      _
    $region3: #{tpu_custom_call.1} parent=1 // loop_header
      %s15 = sphi 0, %s19
      %p16 = scmp.ge.s32.totalorder %s15, 4
      %s25 = sphi 0, %s27
      %s28 = sphi 0, %s25
      %s29 = sphi 0, %s28
      %s45 = sphi 0, %s29
      %s51 = sphi 0, %s53
      %s54 = sphi 0, %s51
      %s55 = sphi 0, %s54
      %s71 = sphi 0, %s55
      %s77 = sphi 0, %s79
      %s80 = sphi 0, %s77
      %s81 = sphi 0, %s80
      %s97 = sphi 0, %s81
      %s101 = sphi 0, %s101
      %s103 = sphi 0, %s101
      %s104 = sphi 0, %s103
      %s118 = sphi 0, %s104
      %s124 = sphi 0, %s126
      %s127 = sphi 0, %s124
      %s128 = sphi 0, %s127
      %s144 = sphi 0, %s128
      %s150 = sphi 0, %s152
      %s153 = sphi 0, %s150
      %s154 = sphi 0, %s153
      %s170 = sphi 0, %s154
    $region4: #{tpu_custom_call.1} parent=1 // loop_header_branch
      %18 = sbr.rel (%p16) target = $region8
    $region5: #{tpu_custom_call.1} parent=1 // loop_body
      %s20 = ssub.s32 %s15, 1
      %s21 = ssub.s32 %s15, 2
      %s22 = sadd.s32 %s15, 1
      %s23 = ssub.s32 %s15, %s22
      %p24 = scmp.eq.s32.totalorder %s23, 0
      %s26 = sadd.s32 %s25, 1
      %s27 = scalar_select %p24, %s25, %s26
      %p30 = pneg %p24
      %p31 = scmp.eq.s32.totalorder %s15, 1
      %p32 = por %p30, %p31
      %p33 = scmp.ne.s32.totalorder %s25, %s28
      %p34 = scmp.eq.s32.totalorder %s15, 0
      %p35 = por %p33, %p34
      %p36 = scmp.ne.s32.totalorder %s25, %s28
      %p37 = scmp.eq.s32.totalorder %s20, 1
      %p38 = por %p36, %p37
      %p39 = scmp.ne.s32.totalorder %s28, %s29
      %p40 = scmp.eq.s32.totalorder %s20, 0
      %p41 = por %p39, %p40
      %p42 = scmp.ne.s32.totalorder %s28, %s29
      %p43 = scmp.eq.s32.totalorder %s21, 1
      %p44 = por %p42, %p43
      %p46 = scmp.ne.s32.totalorder %s29, %s45
      %p47 = scmp.eq.s32.totalorder %s21, 0
      %p48 = por %p46, %p47
      %s49 = ssub.s32 %s15, %s22
      %p50 = scmp.eq.s32.totalorder %s49, 0
      %s52 = sadd.s32 %s51, 1
      %s53 = scalar_select %p50, %s51, %s52
      %p56 = pneg %p50
      %p57 = scmp.eq.s32.totalorder %s15, 1
      %p58 = por %p56, %p57
      %p59 = scmp.ne.s32.totalorder %s51, %s54
      %p60 = scmp.eq.s32.totalorder %s15, 0
      %p61 = por %p59, %p60
      %p62 = scmp.ne.s32.totalorder %s51, %s54
      %p63 = scmp.eq.s32.totalorder %s20, 1
      %p64 = por %p62, %p63
      %p65 = scmp.ne.s32.totalorder %s54, %s55
      %p66 = scmp.eq.s32.totalorder %s20, 0
      %p67 = por %p65, %p66
      %p68 = scmp.ne.s32.totalorder %s54, %s55
      %p69 = scmp.eq.s32.totalorder %s21, 1
      %p70 = por %p68, %p69
      %p72 = scmp.ne.s32.totalorder %s55, %s71
      %p73 = scmp.eq.s32.totalorder %s21, 0
      %p74 = por %p72, %p73
      %s75 = ssub.s32 %s15, %s22
      %p76 = scmp.eq.s32.totalorder %s75, 0
      %s78 = sadd.s32 %s77, 1
      %s79 = scalar_select %p76, %s77, %s78
      %p82 = pneg %p76
      %p83 = scmp.eq.s32.totalorder %s15, 1
      %p84 = por %p82, %p83
      %p85 = scmp.ne.s32.totalorder %s77, %s80
      %p86 = scmp.eq.s32.totalorder %s15, 0
      %p87 = por %p85, %p86
      %p88 = scmp.ne.s32.totalorder %s77, %s80
      %p89 = scmp.eq.s32.totalorder %s20, 1
      %p90 = por %p88, %p89
      %p91 = scmp.ne.s32.totalorder %s80, %s81
      %p92 = scmp.eq.s32.totalorder %s20, 0
      %p93 = por %p91, %p92
      %p94 = scmp.ne.s32.totalorder %s80, %s81
      %p95 = scmp.eq.s32.totalorder %s21, 1
      %p96 = por %p94, %p95
      %p98 = scmp.ne.s32.totalorder %s81, %s97
      %p99 = scmp.eq.s32.totalorder %s21, 0
      %p100 = por %p98, %p99
      %s102 = sadd.s32 %s101, 1
      %p105 = scmp.eq.s32.totalorder %s15, 1
      %p106 = scmp.ne.s32.totalorder %s101, %s103
      %p107 = scmp.eq.s32.totalorder %s15, 0
      %p108 = por %p106, %p107
      %p109 = scmp.ne.s32.totalorder %s101, %s103
      %p110 = scmp.eq.s32.totalorder %s20, 1
      %p111 = por %p109, %p110
      %p112 = scmp.ne.s32.totalorder %s103, %s104
      %p113 = scmp.eq.s32.totalorder %s20, 0
      %p114 = por %p112, %p113
      %p115 = scmp.ne.s32.totalorder %s103, %s104
      %p116 = scmp.eq.s32.totalorder %s21, 1
      %p117 = por %p115, %p116
      %p119 = scmp.ne.s32.totalorder %s104, %s118
      %p120 = scmp.eq.s32.totalorder %s21, 0
      %p121 = por %p119, %p120
      %s122 = ssub.s32 %s15, %s22
      %p123 = scmp.eq.s32.totalorder %s122, 0
      %s125 = sadd.s32 %s124, 1
      %s126 = scalar_select %p123, %s124, %s125
      %p129 = pneg %p123
      %p130 = scmp.eq.s32.totalorder %s15, 1
      %p131 = por %p129, %p130
      %p132 = scmp.ne.s32.totalorder %s124, %s127
      %p133 = scmp.eq.s32.totalorder %s15, 0
      %p134 = por %p132, %p133
      %p135 = scmp.ne.s32.totalorder %s124, %s127
      %p136 = scmp.eq.s32.totalorder %s20, 1
      %p137 = por %p135, %p136
      %p138 = scmp.ne.s32.totalorder %s127, %s128
      %p139 = scmp.eq.s32.totalorder %s20, 0
      %p140 = por %p138, %p139
      %p141 = scmp.ne.s32.totalorder %s127, %s128
      %p142 = scmp.eq.s32.totalorder %s21, 1
      %p143 = por %p141, %p142
      %p145 = scmp.ne.s32.totalorder %s128, %s144
      %p146 = scmp.eq.s32.totalorder %s21, 0
      %p147 = por %p145, %p146
      %s148 = ssub.s32 %s15, %s22
      %p149 = scmp.eq.s32.totalorder %s148, 0
      %s151 = sadd.s32 %s150, 1
      %s152 = scalar_select %p149, %s150, %s151
      %p155 = pneg %p149
      %p156 = scmp.eq.s32.totalorder %s15, 1
      %p157 = por %p155, %p156
      %p158 = scmp.ne.s32.totalorder %s150, %s153
      %p159 = scmp.eq.s32.totalorder %s15, 0
      %p160 = por %p158, %p159
      %p161 = scmp.ne.s32.totalorder %s150, %s153
      %p162 = scmp.eq.s32.totalorder %s20, 1
      %p163 = por %p161, %p162
      %p164 = scmp.ne.s32.totalorder %s153, %s154
      %p165 = scmp.eq.s32.totalorder %s20, 0
      %p166 = por %p164, %p165
      %p167 = scmp.ne.s32.totalorder %s153, %s154
      %p168 = scmp.eq.s32.totalorder %s21, 1
      %p169 = por %p167, %p168
      %p171 = scmp.ne.s32.totalorder %s154, %s170
      %p172 = scmp.eq.s32.totalorder %s21, 0
      %p173 = por %p171, %p172
      %p174 = scmp.le.s32.totalorder 1, %s15
      %p175 = scmp.lt.s32.totalorder %s15, 3
      %p176 = pnand %p174, %p175
      %p177 = pneg %p176
      // Predicated region
      $region9: #{tpu_custom_call.1} parent=5 // pred_check
        _
      $region10: #{tpu_custom_call.1} parent=5 // pred_check_branch
        %179 = sbr.rel (%p176) target = $region12
      $region11: #{tpu_custom_call.1} parent=5 // pred_region
        %s180 = ssub.s32 %s15, 1
        // Predicated region
        $region13: #{tpu_custom_call.1} parent=11 // pred_check
          %p181 = pneg %p114
        $region14: #{tpu_custom_call.1} parent=11 // pred_check_branch
          %183 = sbr.rel (%p181) target = $region16
        $region15: #{tpu_custom_call.1} parent=11 // pred_region
          _
        $region16: #{tpu_custom_call.1} parent=11 // pred_fallthru
          _
      $region12: #{tpu_custom_call.1} parent=5 // pred_fallthru
        _
      %p184 = scmp.lt.s32.totalorder %s15, 2
      // Predicated region
      $region17: #{tpu_custom_call.1} parent=5 // pred_check
        %p185 = pneg %p184
      $region18: #{tpu_custom_call.1} parent=5 // pred_check_branch
        %187 = sbr.rel (%p185) target = $region20
      $region19: #{tpu_custom_call.1} parent=5 // pred_region
        // Predicated region
        $region21: #{tpu_custom_call.1} parent=19 // pred_check
          %p188 = pneg %p35
        $region22: #{tpu_custom_call.1} parent=19 // pred_check_branch
          %190 = sbr.rel (%p188) target = $region24
        $region23: #{tpu_custom_call.1} parent=19 // pred_region
          %p191 = scmp.lt.s32.totalorder %s15, 1
          %s192 = scalar_select %p191, %s15, 1
          %s193 = smul.addr %s192, 4
          %s194 = smul.addr %s193, 4
          %s195 = scalar_lea.vmem %s0, %s194
        $region24: #{tpu_custom_call.1} parent=19 // pred_fallthru
          _
        // Predicated region
        $region25: #{tpu_custom_call.1} parent=19 // pred_check
          %p196 = pneg %p61
        $region26: #{tpu_custom_call.1} parent=19 // pred_check_branch
          %198 = sbr.rel (%p196) target = $region28
        $region27: #{tpu_custom_call.1} parent=19 // pred_region
          %p199 = scmp.lt.s32.totalorder %s15, 1
          %s200 = scalar_select %p199, %s15, 1
          %s201 = smul.addr %s200, 64
          %s202 = smul.addr %s201, 8
          %s203 = scalar_lea.vmem %s1, %s202
        $region28: #{tpu_custom_call.1} parent=19 // pred_fallthru
          _
        // Predicated region
        $region29: #{tpu_custom_call.1} parent=19 // pred_check
          %p204 = pneg %p87
        $region30: #{tpu_custom_call.1} parent=19 // pred_check_branch
          %206 = sbr.rel (%p204) target = $region32
        $region31: #{tpu_custom_call.1} parent=19 // pred_region
          %p207 = scmp.lt.s32.totalorder %s15, 1
          %s208 = scalar_select %p207, %s15, 1
          %s209 = smul.addr %s208, 64
          %s210 = smul.addr %s209, 8
          %s211 = scalar_lea.vmem %s2, %s210
        $region32: #{tpu_custom_call.1} parent=19 // pred_fallthru
          _
      $region20: #{tpu_custom_call.1} parent=5 // pred_fallthru
        _
      %p212 = scmp.le.s32.totalorder 1, %s15
      %p213 = scmp.lt.s32.totalorder %s15, 3
      %p214 = pnand %p212, %p213
      %p215 = pneg %p214
      // Predicated region
      $region33: #{tpu_custom_call.1} parent=5 // pred_check
        _
      $region34: #{tpu_custom_call.1} parent=5 // pred_check_branch
        %217 = sbr.rel (%p214) target = $region36
      $region35: #{tpu_custom_call.1} parent=5 // pred_region
        %s218 = ssub.s32 %s15, 1
        %p219 = scmp.lt.s32.totalorder %s20, 1
        %s220 = scalar_select %p219, %s20, 1
        %s221 = smul.addr %s220, 4
        %s222 = smul.addr %s221, 4
        %s223 = scalar_lea.vmem %s0, %s222
        %p224 = pneg %p41
        %p225 = pneg %p38
        %p226 = scmp.lt.s32.totalorder %s20, 1
        %s227 = scalar_select %p226, %s20, 1
        %s228 = smul.addr %s227, 64
        %s229 = smul.addr %s228, 8
        %s230 = scalar_lea.vmem %s1, %s229
        %p231 = pneg %p67
        %p232 = pneg %p64
        %p233 = scmp.lt.s32.totalorder %s20, 1
        %s234 = scalar_select %p233, %s20, 1
        %s235 = smul.addr %s234, 64
        %s236 = smul.addr %s235, 8
        %s237 = scalar_lea.vmem %s2, %s236
        %p238 = pneg %p93
        %p239 = pneg %p90
        %p240 = pneg %p114
        %p241 = pneg %p111
        %p242 = pneg %p140
        %p243 = pneg %p137
        %p244 = scmp.lt.s32.totalorder %s20, 1
        %s245 = scalar_select %p244, %s20, 1
        %s246 = smul.addr %s245, 16
        %s247 = smul.addr %s246, 8
        %s248 = scalar_lea.vmem %s4, %s247
        %p249 = pneg %p166
        %p250 = pneg %p163
        %s251 = sand.u32 %s153, 1
        %s252 = scalar_lea.sflag [#allocation5], %s251
        %s253 = sand.u32 %s153, 1
        %s254 = smul.addr %s253, 128
        %s255 = scalar_lea.vmem [#allocation4], %s254
        %p256 = scmp.lt.s32.totalorder %s20, 1
        %s257 = scalar_select %p256, %s20, 1
        %s258 = smul.addr %s257, 4
        %s259 = smul.addr %s258, 4
        %s260 = scalar_lea.vmem %s0, %s259
        %p261 = scmp.lt.s32.totalorder %s20, 1
        %s262 = scalar_select %p261, %s20, 1
        %s263 = smul.addr %s262, 64
        %s264 = smul.addr %s263, 8
        %s265 = scalar_lea.vmem %s1, %s264
        %p266 = scmp.lt.s32.totalorder %s20, 1
        %s267 = scalar_select %p266, %s20, 1
        %s268 = smul.addr %s267, 64
        %s269 = smul.addr %s268, 8
        %s270 = scalar_lea.vmem %s2, %s269
        %p271 = scmp.lt.s32.totalorder %s20, 1
        %s272 = scalar_select %p271, %s20, 1
        %s273 = smul.addr %s272, 16
        %s274 = smul.addr %s273, 8
        %s275 = scalar_lea.vmem %s4, %s274
        %v277 = vld [vmem:[%s270] sm:$0xff]
        %v278 = vld [vmem:[%s270 + $0x8] sm:$0xff]
        %v279 = vld [vmem:[%s270 + $0x10] sm:$0xff]
        %v280 = vld [vmem:[%s270 + $0x18] sm:$0xff]
        %v281 = vld [vmem:[%s270 + $0x20] sm:$0xff]
        %v282 = vld [vmem:[%s270 + $0x28] sm:$0xff]
        %v283 = vld [vmem:[%s270 + $0x30] sm:$0xff]
        %v284 = vld [vmem:[%s270 + $0x38] sm:$0xff]
        %v285 = vld [vmem:[%s270 + $0x40] sm:$0xff]
        %v286 = vld [vmem:[%s270 + $0x48] sm:$0xff]
        %v287 = vld [vmem:[%s270 + $0x50] sm:$0xff]
        %v288 = vld [vmem:[%s270 + $0x58] sm:$0xff]
        %v289 = vld [vmem:[%s270 + $0x60] sm:$0xff]
        %v290 = vld [vmem:[%s270 + $0x68] sm:$0xff]
        %v291 = vld [vmem:[%s270 + $0x70] sm:$0xff]
        %v292 = vld [vmem:[%s270 + $0x78] sm:$0xff]
        %v293 = vld [vmem:[%s270 + $0x80] sm:$0xff]
        %v294 = vld [vmem:[%s270 + $0x88] sm:$0xff]
        %v295 = vld [vmem:[%s270 + $0x90] sm:$0xff]
        %v296 = vld [vmem:[%s270 + $0x98] sm:$0xff]
        %v297 = vld [vmem:[%s270 + $0xa0] sm:$0xff]
        %v298 = vld [vmem:[%s270 + $0xa8] sm:$0xff]
        %v299 = vld [vmem:[%s270 + $0xb0] sm:$0xff]
        %v300 = vld [vmem:[%s270 + $0xb8] sm:$0xff]
        %v301 = vld [vmem:[%s270 + $0xc0] sm:$0xff]
        %v302 = vld [vmem:[%s270 + $0xc8] sm:$0xff]
        %v303 = vld [vmem:[%s270 + $0xd0] sm:$0xff]
        %v304 = vld [vmem:[%s270 + $0xd8] sm:$0xff]
        %v305 = vld [vmem:[%s270 + $0xe0] sm:$0xff]
        %v306 = vld [vmem:[%s270 + $0xe8] sm:$0xff]
        %v307 = vld [vmem:[%s270 + $0xf0] sm:$0xff]
        %v308 = vld [vmem:[%s270 + $0xf8] sm:$0xff]
        %v309 = vld [vmem:[%s270 + $0x100] sm:$0xff]
        %v310 = vld [vmem:[%s270 + $0x108] sm:$0xff]
        %v311 = vld [vmem:[%s270 + $0x110] sm:$0xff]
        %v312 = vld [vmem:[%s270 + $0x118] sm:$0xff]
        %v313 = vld [vmem:[%s270 + $0x120] sm:$0xff]
        %v314 = vld [vmem:[%s270 + $0x128] sm:$0xff]
        %v315 = vld [vmem:[%s270 + $0x130] sm:$0xff]
        %v316 = vld [vmem:[%s270 + $0x138] sm:$0xff]
        %v317 = vld [vmem:[%s270 + $0x140] sm:$0xff]
        %v318 = vld [vmem:[%s270 + $0x148] sm:$0xff]
        %v319 = vld [vmem:[%s270 + $0x150] sm:$0xff]
        %v320 = vld [vmem:[%s270 + $0x158] sm:$0xff]
        %v321 = vld [vmem:[%s270 + $0x160] sm:$0xff]
        %v322 = vld [vmem:[%s270 + $0x168] sm:$0xff]
        %v323 = vld [vmem:[%s270 + $0x170] sm:$0xff]
        %v324 = vld [vmem:[%s270 + $0x178] sm:$0xff]
        %v325 = vld [vmem:[%s270 + $0x180] sm:$0xff]
        %v326 = vld [vmem:[%s270 + $0x188] sm:$0xff]
        %v327 = vld [vmem:[%s270 + $0x190] sm:$0xff]
        %v328 = vld [vmem:[%s270 + $0x198] sm:$0xff]
        %v329 = vld [vmem:[%s270 + $0x1a0] sm:$0xff]
        %v330 = vld [vmem:[%s270 + $0x1a8] sm:$0xff]
        %v331 = vld [vmem:[%s270 + $0x1b0] sm:$0xff]
        %v332 = vld [vmem:[%s270 + $0x1b8] sm:$0xff]
        %v333 = vld [vmem:[%s270 + $0x1c0] sm:$0xff]
        %v334 = vld [vmem:[%s270 + $0x1c8] sm:$0xff]
        %v335 = vld [vmem:[%s270 + $0x1d0] sm:$0xff]
        %v336 = vld [vmem:[%s270 + $0x1d8] sm:$0xff]
        %v337 = vld [vmem:[%s270 + $0x1e0] sm:$0xff]
        %v338 = vld [vmem:[%s270 + $0x1e8] sm:$0xff]
        %v339 = vld [vmem:[%s270 + $0x1f0] sm:$0xff]
        %v340 = vld [vmem:[%s270 + $0x1f8] sm:$0xff]
        %v341 = vld [vmem:[%s3] sm:$0xff]
        %v342 = vld [vmem:[%s3 + $0x8] sm:$0xff]
        %v343 = vld [vmem:[%s3 + $0x10] sm:$0xff]
        %v344 = vld [vmem:[%s3 + $0x18] sm:$0xff]
        %v345 = vld [vmem:[%s3 + $0x20] sm:$0xff]
        %v346 = vld [vmem:[%s3 + $0x28] sm:$0xff]
        %v347 = vld [vmem:[%s3 + $0x30] sm:$0xff]
        %v348 = vld [vmem:[%s3 + $0x38] sm:$0xff]
        %v349 = vpack.c.bf16 %v278, %v277
        %v350 = vpack.c.bf16 %v280, %v279
        %v351 = vpack.c.bf16 %v282, %v281
        %v352 = vpack.c.bf16 %v284, %v283
        %v353 = vpack.c.bf16 %v286, %v285
        %v354 = vpack.c.bf16 %v288, %v287
        %v355 = vpack.c.bf16 %v290, %v289
        %v356 = vpack.c.bf16 %v292, %v291
        %v357 = vpack.c.bf16 %v294, %v293
        %v358 = vpack.c.bf16 %v296, %v295
        %v359 = vpack.c.bf16 %v298, %v297
        %v360 = vpack.c.bf16 %v300, %v299
        %v361 = vpack.c.bf16 %v302, %v301
        %v362 = vpack.c.bf16 %v304, %v303
        %v363 = vpack.c.bf16 %v306, %v305
        %v364 = vpack.c.bf16 %v308, %v307
        %v365 = vpack.c.bf16 %v310, %v309
        %v366 = vpack.c.bf16 %v312, %v311
        %v367 = vpack.c.bf16 %v314, %v313
        %v368 = vpack.c.bf16 %v316, %v315
        %v369 = vpack.c.bf16 %v318, %v317
        %v370 = vpack.c.bf16 %v320, %v319
        %v371 = vpack.c.bf16 %v322, %v321
        %v372 = vpack.c.bf16 %v324, %v323
        %v373 = vpack.c.bf16 %v326, %v325
        %v374 = vpack.c.bf16 %v328, %v327
        %v375 = vpack.c.bf16 %v330, %v329
        %v376 = vpack.c.bf16 %v332, %v331
        %v377 = vpack.c.bf16 %v334, %v333
        %v378 = vpack.c.bf16 %v336, %v335
        %v379 = vpack.c.bf16 %v338, %v337
        %v380 = vpack.c.bf16 %v340, %v339
        %v381 = vpack.c.bf16 %v342, %v341
        %v382 = vpack.c.bf16 %v344, %v343
        %v383 = vpack.c.bf16 %v346, %v345
        %v384 = vpack.c.bf16 %v348, %v347
        %vm385 = vcmask 523264
        %v387 = vsel %vm385, %v349, 0
        %v390 = vsel %vm385, %v350, 0
        %v393 = vsel %vm385, %v351, 0
        %v396 = vsel %vm385, %v352, 0
        %v399 = vsel %vm385, %v353, 0
        %v402 = vsel %vm385, %v354, 0
        %v405 = vsel %vm385, %v355, 0
        %v408 = vsel %vm385, %v356, 0
        %v411 = vsel %vm385, %v357, 0
        %v414 = vsel %vm385, %v358, 0
        %v417 = vsel %vm385, %v359, 0
        %v420 = vsel %vm385, %v360, 0
        %v423 = vsel %vm385, %v361, 0
        %v426 = vsel %vm385, %v362, 0
        %v429 = vsel %vm385, %v363, 0
        %v432 = vsel %vm385, %v364, 0
        %v435 = vsel %vm385, %v365, 0
        %v438 = vsel %vm385, %v366, 0
        %v441 = vsel %vm385, %v367, 0
        %v444 = vsel %vm385, %v368, 0
        %v447 = vsel %vm385, %v369, 0
        %v450 = vsel %vm385, %v370, 0
        %v453 = vsel %vm385, %v371, 0
        %v456 = vsel %vm385, %v372, 0
        %v459 = vsel %vm385, %v373, 0
        %v462 = vsel %vm385, %v374, 0
        %v465 = vsel %vm385, %v375, 0
        %v468 = vsel %vm385, %v376, 0
        %v471 = vsel %vm385, %v377, 0
        %v474 = vsel %vm385, %v378, 0
        %v477 = vsel %vm385, %v379, 0
        %v480 = vsel %vm385, %v380, 0
        %482 = vmatpush.bf16.msra.mxu0 0
        %483 = vmatpush.bf16.msra.mxu0 0
        %484 = vmatpush.bf16.msra.mxu0 0
        %485 = vmatpush.bf16.msra.mxu0 0
        %486 = vmatpush.bf16.msra.mxu0 %v384
        %487 = vmatpush.bf16.msra.mxu0 %v383
        %488 = vmatpush.bf16.msra.mxu0 %v382
        %489 = vmatpush.bf16.msra.mxu0 %v381
        %490 = vmatmul.bf16.gmra.mxu0 %v387
        %v491 = vpop.f32.mrf.mxu0
        %v492 = vadd.f32 0.0, %v491
        %v493 = vpop.f32.mrf.mxu0
        %v494 = vadd.f32 0.0, %v493
        %495 = vmatmul.bf16.gmra.mxu0 %v390
        %v496 = vpop.f32.mrf.mxu0
        %v497 = vadd.f32 0.0, %v496
        %v498 = vpop.f32.mrf.mxu0
        %v499 = vadd.f32 0.0, %v498
        %500 = vmatmul.bf16.gmra.mxu0 %v393
        %v501 = vpop.f32.mrf.mxu0
        %v502 = vadd.f32 0.0, %v501
        %v503 = vpop.f32.mrf.mxu0
        %v504 = vadd.f32 0.0, %v503
        %505 = vmatmul.bf16.gmra.mxu0 %v396
        %v506 = vpop.f32.mrf.mxu0
        %v507 = vadd.f32 0.0, %v506
        %v508 = vpop.f32.mrf.mxu0
        %v509 = vadd.f32 0.0, %v508
        %510 = vmatmul.bf16.gmra.mxu0 %v399
        %v511 = vpop.f32.mrf.mxu0
        %v512 = vadd.f32 0.0, %v511
        %v513 = vpop.f32.mrf.mxu0
        %v514 = vadd.f32 0.0, %v513
        %515 = vmatmul.bf16.gmra.mxu0 %v402
        %v516 = vpop.f32.mrf.mxu0
        %v517 = vadd.f32 0.0, %v516
        %v518 = vpop.f32.mrf.mxu0
        %v519 = vadd.f32 0.0, %v518
        %520 = vmatmul.bf16.gmra.mxu0 %v405
        %v521 = vpop.f32.mrf.mxu0
        %v522 = vadd.f32 0.0, %v521
        %v523 = vpop.f32.mrf.mxu0
        %v524 = vadd.f32 0.0, %v523
        %525 = vmatmul.bf16.gmra.mxu0 %v408
        %v526 = vpop.f32.mrf.mxu0
        %v527 = vadd.f32 0.0, %v526
        %v528 = vpop.f32.mrf.mxu0
        %v529 = vadd.f32 0.0, %v528
        %530 = vmatmul.bf16.gmra.mxu0 %v411
        %v531 = vpop.f32.mrf.mxu0
        %v532 = vadd.f32 0.0, %v531
        %v533 = vpop.f32.mrf.mxu0
        %v534 = vadd.f32 0.0, %v533
        %535 = vmatmul.bf16.gmra.mxu0 %v414
        %v536 = vpop.f32.mrf.mxu0
        %v537 = vadd.f32 0.0, %v536
        %v538 = vpop.f32.mrf.mxu0
        %v539 = vadd.f32 0.0, %v538
        %540 = vmatmul.bf16.gmra.mxu0 %v417
        %v541 = vpop.f32.mrf.mxu0
        %v542 = vadd.f32 0.0, %v541
        %v543 = vpop.f32.mrf.mxu0
        %v544 = vadd.f32 0.0, %v543
        %545 = vmatmul.bf16.gmra.mxu0 %v420
        %v546 = vpop.f32.mrf.mxu0
        %v547 = vadd.f32 0.0, %v546
        %v548 = vpop.f32.mrf.mxu0
        %v549 = vadd.f32 0.0, %v548
        %550 = vmatmul.bf16.gmra.mxu0 %v423
        %v551 = vpop.f32.mrf.mxu0
        %v552 = vadd.f32 0.0, %v551
        %v553 = vpop.f32.mrf.mxu0
        %v554 = vadd.f32 0.0, %v553
        %555 = vmatmul.bf16.gmra.mxu0 %v426
        %v556 = vpop.f32.mrf.mxu0
        %v557 = vadd.f32 0.0, %v556
        %v558 = vpop.f32.mrf.mxu0
        %v559 = vadd.f32 0.0, %v558
        %560 = vmatmul.bf16.gmra.mxu0 %v429
        %v561 = vpop.f32.mrf.mxu0
        %v562 = vadd.f32 0.0, %v561
        %v563 = vpop.f32.mrf.mxu0
        %v564 = vadd.f32 0.0, %v563
        %565 = vmatmul.bf16.gmra.mxu0 %v432
        %v566 = vpop.f32.mrf.mxu0
        %v567 = vadd.f32 0.0, %v566
        %v568 = vpop.f32.mrf.mxu0
        %v569 = vadd.f32 0.0, %v568
        %570 = vmatmul.bf16.gmra.mxu0 %v435
        %v571 = vpop.f32.mrf.mxu0
        %v572 = vadd.f32 0.0, %v571
        %v573 = vpop.f32.mrf.mxu0
        %v574 = vadd.f32 0.0, %v573
        %575 = vmatmul.bf16.gmra.mxu0 %v438
        %v576 = vpop.f32.mrf.mxu0
        %v577 = vadd.f32 0.0, %v576
        %v578 = vpop.f32.mrf.mxu0
        %v579 = vadd.f32 0.0, %v578
        %580 = vmatmul.bf16.gmra.mxu0 %v441
        %v581 = vpop.f32.mrf.mxu0
        %v582 = vadd.f32 0.0, %v581
        %v583 = vpop.f32.mrf.mxu0
        %v584 = vadd.f32 0.0, %v583
        %585 = vmatmul.bf16.gmra.mxu0 %v444
        %v586 = vpop.f32.mrf.mxu0
        %v587 = vadd.f32 0.0, %v586
        %v588 = vpop.f32.mrf.mxu0
        %v589 = vadd.f32 0.0, %v588
        %590 = vmatmul.bf16.gmra.mxu0 %v447
        %v591 = vpop.f32.mrf.mxu0
        %v592 = vadd.f32 0.0, %v591
        %v593 = vpop.f32.mrf.mxu0
        %v594 = vadd.f32 0.0, %v593
        %595 = vmatmul.bf16.gmra.mxu0 %v450
        %v596 = vpop.f32.mrf.mxu0
        %v597 = vadd.f32 0.0, %v596
        %v598 = vpop.f32.mrf.mxu0
        %v599 = vadd.f32 0.0, %v598
        %600 = vmatmul.bf16.gmra.mxu0 %v453
        %v601 = vpop.f32.mrf.mxu0
        %v602 = vadd.f32 0.0, %v601
        %v603 = vpop.f32.mrf.mxu0
        %v604 = vadd.f32 0.0, %v603
        %605 = vmatmul.bf16.gmra.mxu0 %v456
        %v606 = vpop.f32.mrf.mxu0
        %v607 = vadd.f32 0.0, %v606
        %v608 = vpop.f32.mrf.mxu0
        %v609 = vadd.f32 0.0, %v608
        %610 = vmatmul.bf16.gmra.mxu0 %v459
        %v611 = vpop.f32.mrf.mxu0
        %v612 = vadd.f32 0.0, %v611
        %v613 = vpop.f32.mrf.mxu0
        %v614 = vadd.f32 0.0, %v613
        %615 = vmatmul.bf16.gmra.mxu0 %v462
        %v616 = vpop.f32.mrf.mxu0
        %v617 = vadd.f32 0.0, %v616
        %v618 = vpop.f32.mrf.mxu0
        %v619 = vadd.f32 0.0, %v618
        %620 = vmatmul.bf16.gmra.mxu0 %v465
        %v621 = vpop.f32.mrf.mxu0
        %v622 = vadd.f32 0.0, %v621
        %v623 = vpop.f32.mrf.mxu0
        %v624 = vadd.f32 0.0, %v623
        %625 = vmatmul.bf16.gmra.mxu0 %v468
        %v626 = vpop.f32.mrf.mxu0
        %v627 = vadd.f32 0.0, %v626
        %v628 = vpop.f32.mrf.mxu0
        %v629 = vadd.f32 0.0, %v628
        %630 = vmatmul.bf16.gmra.mxu0 %v471
        %v631 = vpop.f32.mrf.mxu0
        %v632 = vadd.f32 0.0, %v631
        %v633 = vpop.f32.mrf.mxu0
        %v634 = vadd.f32 0.0, %v633
        %635 = vmatmul.bf16.gmra.mxu0 %v474
        %v636 = vpop.f32.mrf.mxu0
        %v637 = vadd.f32 0.0, %v636
        %v638 = vpop.f32.mrf.mxu0
        %v639 = vadd.f32 0.0, %v638
        %640 = vmatmul.bf16.gmra.mxu0 %v477
        %v641 = vpop.f32.mrf.mxu0
        %v642 = vadd.f32 0.0, %v641
        %v643 = vpop.f32.mrf.mxu0
        %v644 = vadd.f32 0.0, %v643
        %645 = vmatmul.bf16.gmra.mxu0 %v480
        %v646 = vpop.f32.mrf.mxu0
        %v647 = vadd.f32 0.0, %v646
        %v648 = vpop.f32.mrf.mxu0
        %v649 = vadd.f32 0.0, %v648
        %650 = vdwg.mxu0
        %v651 = vadd.f32 %v492, %v494
        %v652 = vadd.f32 %v651, %v497
        %v653 = vadd.f32 %v652, %v499
        %v654 = vadd.f32 %v653, %v502
        %v655 = vadd.f32 %v654, %v504
        %v656 = vadd.f32 %v655, %v507
        %v657 = vadd.f32 %v656, %v509
        %v658 = vadd.f32 %v657, %v512
        %v659 = vadd.f32 %v658, %v514
        %v660 = vadd.f32 %v659, %v517
        %v661 = vadd.f32 %v660, %v519
        %v662 = vadd.f32 %v661, %v522
        %v663 = vadd.f32 %v662, %v524
        %v664 = vadd.f32 %v663, %v527
        %v665 = vadd.f32 %v664, %v529
        %v666 = vadd.f32 %v665, %v532
        %v667 = vadd.f32 %v666, %v534
        %v668 = vadd.f32 %v667, %v537
        %v669 = vadd.f32 %v668, %v539
        %v670 = vadd.f32 %v669, %v542
        %v671 = vadd.f32 %v670, %v544
        %v672 = vadd.f32 %v671, %v547
        %v673 = vadd.f32 %v672, %v549
        %v674 = vadd.f32 %v673, %v552
        %v675 = vadd.f32 %v674, %v554
        %v676 = vadd.f32 %v675, %v557
        %v677 = vadd.f32 %v676, %v559
        %v678 = vadd.f32 %v677, %v562
        %v679 = vadd.f32 %v678, %v564
        %v680 = vadd.f32 %v679, %v567
        %v681 = vadd.f32 %v680, %v569
        %v682 = vadd.f32 %v681, %v572
        %v683 = vadd.f32 %v682, %v574
        %v684 = vadd.f32 %v683, %v577
        %v685 = vadd.f32 %v684, %v579
        %v686 = vadd.f32 %v685, %v582
        %v687 = vadd.f32 %v686, %v584
        %v688 = vadd.f32 %v687, %v587
        %v689 = vadd.f32 %v688, %v589
        %v690 = vadd.f32 %v689, %v592
        %v691 = vadd.f32 %v690, %v594
        %v692 = vadd.f32 %v691, %v597
        %v693 = vadd.f32 %v692, %v599
        %v694 = vadd.f32 %v693, %v602
        %v695 = vadd.f32 %v694, %v604
        %v696 = vadd.f32 %v695, %v607
        %v697 = vadd.f32 %v696, %v609
        %v698 = vadd.f32 %v697, %v612
        %v699 = vadd.f32 %v698, %v614
        %v700 = vadd.f32 %v699, %v617
        %v701 = vadd.f32 %v700, %v619
        %v702 = vadd.f32 %v701, %v622
        %v703 = vadd.f32 %v702, %v624
        %v704 = vadd.f32 %v703, %v627
        %v705 = vadd.f32 %v704, %v629
        %v706 = vadd.f32 %v705, %v632
        %v707 = vadd.f32 %v706, %v634
        %v708 = vadd.f32 %v707, %v637
        %v709 = vadd.f32 %v708, %v639
        %v710 = vadd.f32 %v709, %v642
        %v711 = vadd.f32 %v710, %v644
        %v712 = vadd.f32 %v711, %v647
        %v713 = vadd.f32 %v712, %v649
        %v714 = vrot.slane %v713, 4
        %v715 = vadd.f32 %v713, %v714
        %v716 = vrot.slane %v715, 2
        %v717 = vadd.f32 %v715, %v716
        %v718 = vrot.slane %v717, 1
        %v719 = vadd.f32 %v717, %v718
        %v720 = vrcp.pop 512.0
        %v721 = vmul.f32 512.0, %v720
        %v722 = vsub.f32 1.0, %v721
        %v723 = vmul.f32 %v720, %v722
        %v724 = vadd.f32 %v720, %v723
        %vm725 = vweird.f32 %v720
        %v726 = vsel %vm725, %v720, %v724
        %v727 = vmul.f32 %v719, %v726
        %v728 = vsub.f32 %v492, %v727
        %v729 = vsub.f32 %v494, %v727
        %v730 = vsub.f32 %v497, %v727
        %v731 = vsub.f32 %v499, %v727
        %v732 = vsub.f32 %v502, %v727
        %v733 = vsub.f32 %v504, %v727
        %v734 = vsub.f32 %v507, %v727
        %v735 = vsub.f32 %v509, %v727
        %v736 = vsub.f32 %v512, %v727
        %v737 = vsub.f32 %v514, %v727
        %v738 = vsub.f32 %v517, %v727
        %v739 = vsub.f32 %v519, %v727
        %v740 = vsub.f32 %v522, %v727
        %v741 = vsub.f32 %v524, %v727
        %v742 = vsub.f32 %v527, %v727
        %v743 = vsub.f32 %v529, %v727
        %v744 = vsub.f32 %v532, %v727
        %v745 = vsub.f32 %v534, %v727
        %v746 = vsub.f32 %v537, %v727
        %v747 = vsub.f32 %v539, %v727
        %v748 = vsub.f32 %v542, %v727
        %v749 = vsub.f32 %v544, %v727
        %v750 = vsub.f32 %v547, %v727
        %v751 = vsub.f32 %v549, %v727
        %v752 = vsub.f32 %v552, %v727
        %v753 = vsub.f32 %v554, %v727
        %v754 = vsub.f32 %v557, %v727
        %v755 = vsub.f32 %v559, %v727
        %v756 = vsub.f32 %v562, %v727
        %v757 = vsub.f32 %v564, %v727
        %v758 = vsub.f32 %v567, %v727
        %v759 = vsub.f32 %v569, %v727
        %v760 = vsub.f32 %v572, %v727
        %v761 = vsub.f32 %v574, %v727
        %v762 = vsub.f32 %v577, %v727
        %v763 = vsub.f32 %v579, %v727
        %v764 = vsub.f32 %v582, %v727
        %v765 = vsub.f32 %v584, %v727
        %v766 = vsub.f32 %v587, %v727
        %v767 = vsub.f32 %v589, %v727
        %v768 = vsub.f32 %v592, %v727
        %v769 = vsub.f32 %v594, %v727
        %v770 = vsub.f32 %v597, %v727
        %v771 = vsub.f32 %v599, %v727
        %v772 = vsub.f32 %v602, %v727
        %v773 = vsub.f32 %v604, %v727
        %v774 = vsub.f32 %v607, %v727
        %v775 = vsub.f32 %v609, %v727
        %v776 = vsub.f32 %v612, %v727
        %v777 = vsub.f32 %v614, %v727
        %v778 = vsub.f32 %v617, %v727
        %v779 = vsub.f32 %v619, %v727
        %v780 = vsub.f32 %v622, %v727
        %v781 = vsub.f32 %v624, %v727
        %v782 = vsub.f32 %v627, %v727
        %v783 = vsub.f32 %v629, %v727
        %v784 = vsub.f32 %v632, %v727
        %v785 = vsub.f32 %v634, %v727
        %v786 = vsub.f32 %v637, %v727
        %v787 = vsub.f32 %v639, %v727
        %v788 = vsub.f32 %v642, %v727
        %v789 = vsub.f32 %v644, %v727
        %v790 = vsub.f32 %v647, %v727
        %v791 = vsub.f32 %v649, %v727
        %v792 = vmul.f32 %v728, %v728
        %v793 = vmul.f32 %v729, %v729
        %v794 = vmul.f32 %v730, %v730
        %v795 = vmul.f32 %v731, %v731
        %v796 = vmul.f32 %v732, %v732
        %v797 = vmul.f32 %v733, %v733
        %v798 = vmul.f32 %v734, %v734
        %v799 = vmul.f32 %v735, %v735
        %v800 = vmul.f32 %v736, %v736
        %v801 = vmul.f32 %v737, %v737
        %v802 = vmul.f32 %v738, %v738
        %v803 = vmul.f32 %v739, %v739
        %v804 = vmul.f32 %v740, %v740
        %v805 = vmul.f32 %v741, %v741
        %v806 = vmul.f32 %v742, %v742
        %v807 = vmul.f32 %v743, %v743
        %v808 = vmul.f32 %v744, %v744
        %v809 = vmul.f32 %v745, %v745
        %v810 = vmul.f32 %v746, %v746
        %v811 = vmul.f32 %v747, %v747
        %v812 = vmul.f32 %v748, %v748
        %v813 = vmul.f32 %v749, %v749
        %v814 = vmul.f32 %v750, %v750
        %v815 = vmul.f32 %v751, %v751
        %v816 = vmul.f32 %v752, %v752
        %v817 = vmul.f32 %v753, %v753
        %v818 = vmul.f32 %v754, %v754
        %v819 = vmul.f32 %v755, %v755
        %v820 = vmul.f32 %v756, %v756
        %v821 = vmul.f32 %v757, %v757
        %v822 = vmul.f32 %v758, %v758
        %v823 = vmul.f32 %v759, %v759
        %v824 = vmul.f32 %v760, %v760
        %v825 = vmul.f32 %v761, %v761
        %v826 = vmul.f32 %v762, %v762
        %v827 = vmul.f32 %v763, %v763
        %v828 = vmul.f32 %v764, %v764
        %v829 = vmul.f32 %v765, %v765
        %v830 = vmul.f32 %v766, %v766
        %v831 = vmul.f32 %v767, %v767
        %v832 = vmul.f32 %v768, %v768
        %v833 = vmul.f32 %v769, %v769
        %v834 = vmul.f32 %v770, %v770
        %v835 = vmul.f32 %v771, %v771
        %v836 = vmul.f32 %v772, %v772
        %v837 = vmul.f32 %v773, %v773
        %v838 = vmul.f32 %v774, %v774
        %v839 = vmul.f32 %v775, %v775
        %v840 = vmul.f32 %v776, %v776
        %v841 = vmul.f32 %v777, %v777
        %v842 = vmul.f32 %v778, %v778
        %v843 = vmul.f32 %v779, %v779
        %v844 = vmul.f32 %v780, %v780
        %v845 = vmul.f32 %v781, %v781
        %v846 = vmul.f32 %v782, %v782
        %v847 = vmul.f32 %v783, %v783
        %v848 = vmul.f32 %v784, %v784
        %v849 = vmul.f32 %v785, %v785
        %v850 = vmul.f32 %v786, %v786
        %v851 = vmul.f32 %v787, %v787
        %v852 = vmul.f32 %v788, %v788
        %v853 = vmul.f32 %v789, %v789
        %v854 = vmul.f32 %v790, %v790
        %v855 = vmul.f32 %v791, %v791
        %v856 = vadd.f32 %v792, %v793
        %v857 = vadd.f32 %v856, %v794
        %v858 = vadd.f32 %v857, %v795
        %v859 = vadd.f32 %v858, %v796
        %v860 = vadd.f32 %v859, %v797
        %v861 = vadd.f32 %v860, %v798
        %v862 = vadd.f32 %v861, %v799
        %v863 = vadd.f32 %v862, %v800
        %v864 = vadd.f32 %v863, %v801
        %v865 = vadd.f32 %v864, %v802
        %v866 = vadd.f32 %v865, %v803
        %v867 = vadd.f32 %v866, %v804
        %v868 = vadd.f32 %v867, %v805
        %v869 = vadd.f32 %v868, %v806
        %v870 = vadd.f32 %v869, %v807
        %v871 = vadd.f32 %v870, %v808
        %v872 = vadd.f32 %v871, %v809
        %v873 = vadd.f32 %v872, %v810
        %v874 = vadd.f32 %v873, %v811
        %v875 = vadd.f32 %v874, %v812
        %v876 = vadd.f32 %v875, %v813
        %v877 = vadd.f32 %v876, %v814
        %v878 = vadd.f32 %v877, %v815
        %v879 = vadd.f32 %v878, %v816
        %v880 = vadd.f32 %v879, %v817
        %v881 = vadd.f32 %v880, %v818
        %v882 = vadd.f32 %v881, %v819
        %v883 = vadd.f32 %v882, %v820
        %v884 = vadd.f32 %v883, %v821
        %v885 = vadd.f32 %v884, %v822
        %v886 = vadd.f32 %v885, %v823
        %v887 = vadd.f32 %v886, %v824
        %v888 = vadd.f32 %v887, %v825
        %v889 = vadd.f32 %v888, %v826
        %v890 = vadd.f32 %v889, %v827
        %v891 = vadd.f32 %v890, %v828
        %v892 = vadd.f32 %v891, %v829
        %v893 = vadd.f32 %v892, %v830
        %v894 = vadd.f32 %v893, %v831
        %v895 = vadd.f32 %v894, %v832
        %v896 = vadd.f32 %v895, %v833
        %v897 = vadd.f32 %v896, %v834
        %v898 = vadd.f32 %v897, %v835
        %v899 = vadd.f32 %v898, %v836
        %v900 = vadd.f32 %v899, %v837
        %v901 = vadd.f32 %v900, %v838
        %v902 = vadd.f32 %v901, %v839
        %v903 = vadd.f32 %v902, %v840
        %v904 = vadd.f32 %v903, %v841
        %v905 = vadd.f32 %v904, %v842
        %v906 = vadd.f32 %v905, %v843
        %v907 = vadd.f32 %v906, %v844
        %v908 = vadd.f32 %v907, %v845
        %v909 = vadd.f32 %v908, %v846
        %v910 = vadd.f32 %v909, %v847
        %v911 = vadd.f32 %v910, %v848
        %v912 = vadd.f32 %v911, %v849
        %v913 = vadd.f32 %v912, %v850
        %v914 = vadd.f32 %v913, %v851
        %v915 = vadd.f32 %v914, %v852
        %v916 = vadd.f32 %v915, %v853
        %v917 = vadd.f32 %v916, %v854
        %v918 = vadd.f32 %v917, %v855
        %v919 = vrot.slane %v918, 4
        %v920 = vadd.f32 %v918, %v919
        %v921 = vrot.slane %v920, 2
        %v922 = vadd.f32 %v920, %v921
        %v923 = vrot.slane %v922, 1
        %v924 = vadd.f32 %v922, %v923
        %v925 = vmul.f32 %v924, %v726
        %v926 = vadd.f32 %v925, 1e-05
        %v927 = vrsqrt.pop %v926
        %v928 = vmul.f32 %v927, %v926
        %v929 = vmul.f32 %v928, %v927
        %v930 = vmul.f32 0.5, %v929
        %v931 = vsub.f32 1.5, %v930
        %v932 = vmul.f32 %v927, %v931
        %vm933 = vweird.f32 %v926
        %vm934 = vweird.f32 %v927
        %vm935 = vmor %vm933, %vm934
        %v936 = vsel %vm935, %v927, %v932
        %v937 = vmul.f32 %v728, %v936
        %v938 = vmul.f32 %v729, %v936
        %v939 = vmul.f32 %v730, %v936
        %v940 = vmul.f32 %v731, %v936
        %v941 = vmul.f32 %v732, %v936
        %v942 = vmul.f32 %v733, %v936
        %v943 = vmul.f32 %v734, %v936
        %v944 = vmul.f32 %v735, %v936
        %v945 = vmul.f32 %v736, %v936
        %v946 = vmul.f32 %v737, %v936
        %v947 = vmul.f32 %v738, %v936
        %v948 = vmul.f32 %v739, %v936
        %v949 = vmul.f32 %v740, %v936
        %v950 = vmul.f32 %v741, %v936
        %v951 = vmul.f32 %v742, %v936
        %v952 = vmul.f32 %v743, %v936
        %v953 = vmul.f32 %v744, %v936
        %v954 = vmul.f32 %v745, %v936
        %v955 = vmul.f32 %v746, %v936
        %v956 = vmul.f32 %v747, %v936
        %v957 = vmul.f32 %v748, %v936
        %v958 = vmul.f32 %v749, %v936
        %v959 = vmul.f32 %v750, %v936
        %v960 = vmul.f32 %v751, %v936
        %v961 = vmul.f32 %v752, %v936
        %v962 = vmul.f32 %v753, %v936
        %v963 = vmul.f32 %v754, %v936
        %v964 = vmul.f32 %v755, %v936
        %v965 = vmul.f32 %v756, %v936
        %v966 = vmul.f32 %v757, %v936
        %v967 = vmul.f32 %v758, %v936
        %v968 = vmul.f32 %v759, %v936
        %v969 = vmul.f32 %v760, %v936
        %v970 = vmul.f32 %v761, %v936
        %v971 = vmul.f32 %v762, %v936
        %v972 = vmul.f32 %v763, %v936
        %v973 = vmul.f32 %v764, %v936
        %v974 = vmul.f32 %v765, %v936
        %v975 = vmul.f32 %v766, %v936
        %v976 = vmul.f32 %v767, %v936
        %v977 = vmul.f32 %v768, %v936
        %v978 = vmul.f32 %v769, %v936
        %v979 = vmul.f32 %v770, %v936
        %v980 = vmul.f32 %v771, %v936
        %v981 = vmul.f32 %v772, %v936
        %v982 = vmul.f32 %v773, %v936
        %v983 = vmul.f32 %v774, %v936
        %v984 = vmul.f32 %v775, %v936
        %v985 = vmul.f32 %v776, %v936
        %v986 = vmul.f32 %v777, %v936
        %v987 = vmul.f32 %v778, %v936
        %v988 = vmul.f32 %v779, %v936
        %v989 = vmul.f32 %v780, %v936
        %v990 = vmul.f32 %v781, %v936
        %v991 = vmul.f32 %v782, %v936
        %v992 = vmul.f32 %v783, %v936
        %v993 = vmul.f32 %v784, %v936
        %v994 = vmul.f32 %v785, %v936
        %v995 = vmul.f32 %v786, %v936
        %v996 = vmul.f32 %v787, %v936
        %v997 = vmul.f32 %v788, %v936
        %v998 = vmul.f32 %v789, %v936
        %v999 = vmul.f32 %v790, %v936
        %v1000 = vmul.f32 %v791, %v936
        %v1001 = vmax.f32 %v937, 0.0
        %v1002 = vmax.f32 %v938, 0.0
        %v1003 = vmax.f32 %v939, 0.0
        %v1004 = vmax.f32 %v940, 0.0
        %v1005 = vmax.f32 %v941, 0.0
        %v1006 = vmax.f32 %v942, 0.0
        %v1007 = vmax.f32 %v943, 0.0
        %v1008 = vmax.f32 %v944, 0.0
        %v1009 = vmax.f32 %v945, 0.0
        %v1010 = vmax.f32 %v946, 0.0
        %v1011 = vmax.f32 %v947, 0.0
        %v1012 = vmax.f32 %v948, 0.0
        %v1013 = vmax.f32 %v949, 0.0
        %v1014 = vmax.f32 %v950, 0.0
        %v1015 = vmax.f32 %v951, 0.0
        %v1016 = vmax.f32 %v952, 0.0
        %v1017 = vmax.f32 %v953, 0.0
        %v1018 = vmax.f32 %v954, 0.0
        %v1019 = vmax.f32 %v955, 0.0
        %v1020 = vmax.f32 %v956, 0.0
        %v1021 = vmax.f32 %v957, 0.0
        %v1022 = vmax.f32 %v958, 0.0
        %v1023 = vmax.f32 %v959, 0.0
        %v1024 = vmax.f32 %v960, 0.0
        %v1025 = vmax.f32 %v961, 0.0
        %v1026 = vmax.f32 %v962, 0.0
        %v1027 = vmax.f32 %v963, 0.0
        %v1028 = vmax.f32 %v964, 0.0
        %v1029 = vmax.f32 %v965, 0.0
        %v1030 = vmax.f32 %v966, 0.0
        %v1031 = vmax.f32 %v967, 0.0
        %v1032 = vmax.f32 %v968, 0.0
        %v1033 = vmax.f32 %v969, 0.0
        %v1034 = vmax.f32 %v970, 0.0
        %v1035 = vmax.f32 %v971, 0.0
        %v1036 = vmax.f32 %v972, 0.0
        %v1037 = vmax.f32 %v973, 0.0
        %v1038 = vmax.f32 %v974, 0.0
        %v1039 = vmax.f32 %v975, 0.0
        %v1040 = vmax.f32 %v976, 0.0
        %v1041 = vmax.f32 %v977, 0.0
        %v1042 = vmax.f32 %v978, 0.0
        %v1043 = vmax.f32 %v979, 0.0
        %v1044 = vmax.f32 %v980, 0.0
        %v1045 = vmax.f32 %v981, 0.0
        %v1046 = vmax.f32 %v982, 0.0
        %v1047 = vmax.f32 %v983, 0.0
        %v1048 = vmax.f32 %v984, 0.0
        %v1049 = vmax.f32 %v985, 0.0
        %v1050 = vmax.f32 %v986, 0.0
        %v1051 = vmax.f32 %v987, 0.0
        %v1052 = vmax.f32 %v988, 0.0
        %v1053 = vmax.f32 %v989, 0.0
        %v1054 = vmax.f32 %v990, 0.0
        %v1055 = vmax.f32 %v991, 0.0
        %v1056 = vmax.f32 %v992, 0.0
        %v1057 = vmax.f32 %v993, 0.0
        %v1058 = vmax.f32 %v994, 0.0
        %v1059 = vmax.f32 %v995, 0.0
        %v1060 = vmax.f32 %v996, 0.0
        %v1061 = vmax.f32 %v997, 0.0
        %v1062 = vmax.f32 %v998, 0.0
        %v1063 = vmax.f32 %v999, 0.0
        %v1064 = vmax.f32 %v1000, 0.0
        %1065 = vst [vmem:[#allocation2] sm:$0xff] %v1001
        %1066 = vst [vmem:[#allocation2 + $0x8] sm:$0xff] %v1002
        %1067 = vst [vmem:[#allocation2 + $0x10] sm:$0xff] %v1003
        %1068 = vst [vmem:[#allocation2 + $0x18] sm:$0xff] %v1004
        %1069 = vst [vmem:[#allocation2 + $0x20] sm:$0xff] %v1005
        %1070 = vst [vmem:[#allocation2 + $0x28] sm:$0xff] %v1006
        %1071 = vst [vmem:[#allocation2 + $0x30] sm:$0xff] %v1007
        %1072 = vst [vmem:[#allocation2 + $0x38] sm:$0xff] %v1008
        %1073 = vst [vmem:[#allocation2 + $0x40] sm:$0xff] %v1009
        %1074 = vst [vmem:[#allocation2 + $0x48] sm:$0xff] %v1010
        %1075 = vst [vmem:[#allocation2 + $0x50] sm:$0xff] %v1011
        %1076 = vst [vmem:[#allocation2 + $0x58] sm:$0xff] %v1012
        %1077 = vst [vmem:[#allocation2 + $0x60] sm:$0xff] %v1013
        %1078 = vst [vmem:[#allocation2 + $0x68] sm:$0xff] %v1014
        %1079 = vst [vmem:[#allocation2 + $0x70] sm:$0xff] %v1015
        %1080 = vst [vmem:[#allocation2 + $0x78] sm:$0xff] %v1016
        %1081 = vst [vmem:[#allocation2 + $0x80] sm:$0xff] %v1017
        %1082 = vst [vmem:[#allocation2 + $0x88] sm:$0xff] %v1018
        %1083 = vst [vmem:[#allocation2 + $0x90] sm:$0xff] %v1019
        %1084 = vst [vmem:[#allocation2 + $0x98] sm:$0xff] %v1020
        %1085 = vst [vmem:[#allocation2 + $0xa0] sm:$0xff] %v1021
        %1086 = vst [vmem:[#allocation2 + $0xa8] sm:$0xff] %v1022
        %1087 = vst [vmem:[#allocation2 + $0xb0] sm:$0xff] %v1023
        %1088 = vst [vmem:[#allocation2 + $0xb8] sm:$0xff] %v1024
        %1089 = vst [vmem:[#allocation2 + $0xc0] sm:$0xff] %v1025
        %1090 = vst [vmem:[#allocation2 + $0xc8] sm:$0xff] %v1026
        %1091 = vst [vmem:[#allocation2 + $0xd0] sm:$0xff] %v1027
        %1092 = vst [vmem:[#allocation2 + $0xd8] sm:$0xff] %v1028
        %1093 = vst [vmem:[#allocation2 + $0xe0] sm:$0xff] %v1029
        %1094 = vst [vmem:[#allocation2 + $0xe8] sm:$0xff] %v1030
        %1095 = vst [vmem:[#allocation2 + $0xf0] sm:$0xff] %v1031
        %1096 = vst [vmem:[#allocation2 + $0xf8] sm:$0xff] %v1032
        %1097 = vst [vmem:[#allocation2 + $0x100] sm:$0xff] %v1033
        %1098 = vst [vmem:[#allocation2 + $0x108] sm:$0xff] %v1034
        %1099 = vst [vmem:[#allocation2 + $0x110] sm:$0xff] %v1035
        %1100 = vst [vmem:[#allocation2 + $0x118] sm:$0xff] %v1036
        %1101 = vst [vmem:[#allocation2 + $0x120] sm:$0xff] %v1037
        %1102 = vst [vmem:[#allocation2 + $0x128] sm:$0xff] %v1038
        %1103 = vst [vmem:[#allocation2 + $0x130] sm:$0xff] %v1039
        %1104 = vst [vmem:[#allocation2 + $0x138] sm:$0xff] %v1040
        %1105 = vst [vmem:[#allocation2 + $0x140] sm:$0xff] %v1041
        %1106 = vst [vmem:[#allocation2 + $0x148] sm:$0xff] %v1042
        %1107 = vst [vmem:[#allocation2 + $0x150] sm:$0xff] %v1043
        %1108 = vst [vmem:[#allocation2 + $0x158] sm:$0xff] %v1044
        %1109 = vst [vmem:[#allocation2 + $0x160] sm:$0xff] %v1045
        %1110 = vst [vmem:[#allocation2 + $0x168] sm:$0xff] %v1046
        %1111 = vst [vmem:[#allocation2 + $0x170] sm:$0xff] %v1047
        %1112 = vst [vmem:[#allocation2 + $0x178] sm:$0xff] %v1048
        %1113 = vst [vmem:[#allocation2 + $0x180] sm:$0xff] %v1049
        %1114 = vst [vmem:[#allocation2 + $0x188] sm:$0xff] %v1050
        %1115 = vst [vmem:[#allocation2 + $0x190] sm:$0xff] %v1051
        %1116 = vst [vmem:[#allocation2 + $0x198] sm:$0xff] %v1052
        %1117 = vst [vmem:[#allocation2 + $0x1a0] sm:$0xff] %v1053
        %1118 = vst [vmem:[#allocation2 + $0x1a8] sm:$0xff] %v1054
        %1119 = vst [vmem:[#allocation2 + $0x1b0] sm:$0xff] %v1055
        %1120 = vst [vmem:[#allocation2 + $0x1b8] sm:$0xff] %v1056
        %1121 = vst [vmem:[#allocation2 + $0x1c0] sm:$0xff] %v1057
        %1122 = vst [vmem:[#allocation2 + $0x1c8] sm:$0xff] %v1058
        %1123 = vst [vmem:[#allocation2 + $0x1d0] sm:$0xff] %v1059
        %1124 = vst [vmem:[#allocation2 + $0x1d8] sm:$0xff] %v1060
        %1125 = vst [vmem:[#allocation2 + $0x1e0] sm:$0xff] %v1061
        %1126 = vst [vmem:[#allocation2 + $0x1e8] sm:$0xff] %v1062
        %1127 = vst [vmem:[#allocation2 + $0x1f0] sm:$0xff] %v1063
        %1128 = vst [vmem:[#allocation2 + $0x1f8] sm:$0xff] %v1064
        %v1129 = vld [vmem:[%s265] sm:$0xff]
        %v1130 = vld [vmem:[%s265 + $0x8] sm:$0xff]
        %v1131 = vld [vmem:[%s265 + $0x10] sm:$0xff]
        %v1132 = vld [vmem:[%s265 + $0x18] sm:$0xff]
        %v1133 = vld [vmem:[%s265 + $0x20] sm:$0xff]
        %v1134 = vld [vmem:[%s265 + $0x28] sm:$0xff]
        %v1135 = vld [vmem:[%s265 + $0x30] sm:$0xff]
        %v1136 = vld [vmem:[%s265 + $0x38] sm:$0xff]
        %v1137 = vld [vmem:[%s265 + $0x40] sm:$0xff]
        %v1138 = vld [vmem:[%s265 + $0x48] sm:$0xff]
        %v1139 = vld [vmem:[%s265 + $0x50] sm:$0xff]
        %v1140 = vld [vmem:[%s265 + $0x58] sm:$0xff]
        %v1141 = vld [vmem:[%s265 + $0x60] sm:$0xff]
        %v1142 = vld [vmem:[%s265 + $0x68] sm:$0xff]
        %v1143 = vld [vmem:[%s265 + $0x70] sm:$0xff]
        %v1144 = vld [vmem:[%s265 + $0x78] sm:$0xff]
        %v1145 = vld [vmem:[%s265 + $0x80] sm:$0xff]
        %v1146 = vld [vmem:[%s265 + $0x88] sm:$0xff]
        %v1147 = vld [vmem:[%s265 + $0x90] sm:$0xff]
        %v1148 = vld [vmem:[%s265 + $0x98] sm:$0xff]
        %v1149 = vld [vmem:[%s265 + $0xa0] sm:$0xff]
        %v1150 = vld [vmem:[%s265 + $0xa8] sm:$0xff]
        %v1151 = vld [vmem:[%s265 + $0xb0] sm:$0xff]
        %v1152 = vld [vmem:[%s265 + $0xb8] sm:$0xff]
        %v1153 = vld [vmem:[%s265 + $0xc0] sm:$0xff]
        %v1154 = vld [vmem:[%s265 + $0xc8] sm:$0xff]
        %v1155 = vld [vmem:[%s265 + $0xd0] sm:$0xff]
        %v1156 = vld [vmem:[%s265 + $0xd8] sm:$0xff]
        %v1157 = vld [vmem:[%s265 + $0xe0] sm:$0xff]
        %v1158 = vld [vmem:[%s265 + $0xe8] sm:$0xff]
        %v1159 = vld [vmem:[%s265 + $0xf0] sm:$0xff]
        %v1160 = vld [vmem:[%s265 + $0xf8] sm:$0xff]
        %v1161 = vld [vmem:[%s265 + $0x100] sm:$0xff]
        %v1162 = vld [vmem:[%s265 + $0x108] sm:$0xff]
        %v1163 = vld [vmem:[%s265 + $0x110] sm:$0xff]
        %v1164 = vld [vmem:[%s265 + $0x118] sm:$0xff]
        %v1165 = vld [vmem:[%s265 + $0x120] sm:$0xff]
        %v1166 = vld [vmem:[%s265 + $0x128] sm:$0xff]
        %v1167 = vld [vmem:[%s265 + $0x130] sm:$0xff]
        %v1168 = vld [vmem:[%s265 + $0x138] sm:$0xff]
        %v1169 = vld [vmem:[%s265 + $0x140] sm:$0xff]
        %v1170 = vld [vmem:[%s265 + $0x148] sm:$0xff]
        %v1171 = vld [vmem:[%s265 + $0x150] sm:$0xff]
        %v1172 = vld [vmem:[%s265 + $0x158] sm:$0xff]
        %v1173 = vld [vmem:[%s265 + $0x160] sm:$0xff]
        %v1174 = vld [vmem:[%s265 + $0x168] sm:$0xff]
        %v1175 = vld [vmem:[%s265 + $0x170] sm:$0xff]
        %v1176 = vld [vmem:[%s265 + $0x178] sm:$0xff]
        %v1177 = vld [vmem:[%s265 + $0x180] sm:$0xff]
        %v1178 = vld [vmem:[%s265 + $0x188] sm:$0xff]
        %v1179 = vld [vmem:[%s265 + $0x190] sm:$0xff]
        %v1180 = vld [vmem:[%s265 + $0x198] sm:$0xff]
        %v1181 = vld [vmem:[%s265 + $0x1a0] sm:$0xff]
        %v1182 = vld [vmem:[%s265 + $0x1a8] sm:$0xff]
        %v1183 = vld [vmem:[%s265 + $0x1b0] sm:$0xff]
        %v1184 = vld [vmem:[%s265 + $0x1b8] sm:$0xff]
        %v1185 = vld [vmem:[%s265 + $0x1c0] sm:$0xff]
        %v1186 = vld [vmem:[%s265 + $0x1c8] sm:$0xff]
        %v1187 = vld [vmem:[%s265 + $0x1d0] sm:$0xff]
        %v1188 = vld [vmem:[%s265 + $0x1d8] sm:$0xff]
        %v1189 = vld [vmem:[%s265 + $0x1e0] sm:$0xff]
        %v1190 = vld [vmem:[%s265 + $0x1e8] sm:$0xff]
        %v1191 = vld [vmem:[%s265 + $0x1f0] sm:$0xff]
        %v1192 = vld [vmem:[%s265 + $0x1f8] sm:$0xff]
        %v1193 = vld [vmem:[%s260] sm:$0x77]
        %v1194 = vld [vmem:[%s260 + $0x8] sm:$0x77]
        %1196 = vset.pattern.permute.xlu0 0
        %1197 = vperm.xlu0 %1196, %v1129
        %v1198 = vpop.permute.xlu0 %1197
        %1201 = vset.pattern.permute.xlu0 0
        %1202 = vperm.xlu0 %1201, %v1130
        %v1203 = vpop.permute.xlu0 %1202
        %1206 = vset.pattern.permute.xlu0 0
        %1207 = vperm.xlu0 %1206, %v1131
        %v1208 = vpop.permute.xlu0 %1207
        %1211 = vset.pattern.permute.xlu0 0
        %1212 = vperm.xlu0 %1211, %v1132
        %v1213 = vpop.permute.xlu0 %1212
        %1216 = vset.pattern.permute.xlu0 0
        %1217 = vperm.xlu0 %1216, %v1133
        %v1218 = vpop.permute.xlu0 %1217
        %1221 = vset.pattern.permute.xlu0 0
        %1222 = vperm.xlu0 %1221, %v1134
        %v1223 = vpop.permute.xlu0 %1222
        %1226 = vset.pattern.permute.xlu0 0
        %1227 = vperm.xlu0 %1226, %v1135
        %v1228 = vpop.permute.xlu0 %1227
        %1231 = vset.pattern.permute.xlu0 0
        %1232 = vperm.xlu0 %1231, %v1136
        %v1233 = vpop.permute.xlu0 %1232
        %1236 = vset.pattern.permute.xlu0 0
        %1237 = vperm.xlu0 %1236, %v1137
        %v1238 = vpop.permute.xlu0 %1237
        %1241 = vset.pattern.permute.xlu0 0
        %1242 = vperm.xlu0 %1241, %v1138
        %v1243 = vpop.permute.xlu0 %1242
        %1246 = vset.pattern.permute.xlu0 0
        %1247 = vperm.xlu0 %1246, %v1139
        %v1248 = vpop.permute.xlu0 %1247
        %1251 = vset.pattern.permute.xlu0 0
        %1252 = vperm.xlu0 %1251, %v1140
        %v1253 = vpop.permute.xlu0 %1252
        %1256 = vset.pattern.permute.xlu0 0
        %1257 = vperm.xlu0 %1256, %v1141
        %v1258 = vpop.permute.xlu0 %1257
        %1261 = vset.pattern.permute.xlu0 0
        %1262 = vperm.xlu0 %1261, %v1142
        %v1263 = vpop.permute.xlu0 %1262
        %1266 = vset.pattern.permute.xlu0 0
        %1267 = vperm.xlu0 %1266, %v1143
        %v1268 = vpop.permute.xlu0 %1267
        %1271 = vset.pattern.permute.xlu0 0
        %1272 = vperm.xlu0 %1271, %v1144
        %v1273 = vpop.permute.xlu0 %1272
        %1276 = vset.pattern.permute.xlu0 0
        %1277 = vperm.xlu0 %1276, %v1145
        %v1278 = vpop.permute.xlu0 %1277
        %1281 = vset.pattern.permute.xlu0 0
        %1282 = vperm.xlu0 %1281, %v1146
        %v1283 = vpop.permute.xlu0 %1282
        %1286 = vset.pattern.permute.xlu0 0
        %1287 = vperm.xlu0 %1286, %v1147
        %v1288 = vpop.permute.xlu0 %1287
        %1291 = vset.pattern.permute.xlu0 0
        %1292 = vperm.xlu0 %1291, %v1148
        %v1293 = vpop.permute.xlu0 %1292
        %1296 = vset.pattern.permute.xlu0 0
        %1297 = vperm.xlu0 %1296, %v1149
        %v1298 = vpop.permute.xlu0 %1297
        %1301 = vset.pattern.permute.xlu0 0
        %1302 = vperm.xlu0 %1301, %v1150
        %v1303 = vpop.permute.xlu0 %1302
        %1306 = vset.pattern.permute.xlu0 0
        %1307 = vperm.xlu0 %1306, %v1151
        %v1308 = vpop.permute.xlu0 %1307
        %1311 = vset.pattern.permute.xlu0 0
        %1312 = vperm.xlu0 %1311, %v1152
        %v1313 = vpop.permute.xlu0 %1312
        %1316 = vset.pattern.permute.xlu0 0
        %1317 = vperm.xlu0 %1316, %v1153
        %v1318 = vpop.permute.xlu0 %1317
        %1321 = vset.pattern.permute.xlu0 0
        %1322 = vperm.xlu0 %1321, %v1154
        %v1323 = vpop.permute.xlu0 %1322
        %1326 = vset.pattern.permute.xlu0 0
        %1327 = vperm.xlu0 %1326, %v1155
        %v1328 = vpop.permute.xlu0 %1327
        %1331 = vset.pattern.permute.xlu0 0
        %1332 = vperm.xlu0 %1331, %v1156
        %v1333 = vpop.permute.xlu0 %1332
        %1336 = vset.pattern.permute.xlu0 0
        %1337 = vperm.xlu0 %1336, %v1157
        %v1338 = vpop.permute.xlu0 %1337
        %1341 = vset.pattern.permute.xlu0 0
        %1342 = vperm.xlu0 %1341, %v1158
        %v1343 = vpop.permute.xlu0 %1342
        %1346 = vset.pattern.permute.xlu0 0
        %1347 = vperm.xlu0 %1346, %v1159
        %v1348 = vpop.permute.xlu0 %1347
        %1351 = vset.pattern.permute.xlu0 0
        %1352 = vperm.xlu0 %1351, %v1160
        %v1353 = vpop.permute.xlu0 %1352
        %1356 = vset.pattern.permute.xlu0 0
        %1357 = vperm.xlu0 %1356, %v1161
        %v1358 = vpop.permute.xlu0 %1357
        %1361 = vset.pattern.permute.xlu0 0
        %1362 = vperm.xlu0 %1361, %v1162
        %v1363 = vpop.permute.xlu0 %1362
        %1366 = vset.pattern.permute.xlu0 0
        %1367 = vperm.xlu0 %1366, %v1163
        %v1368 = vpop.permute.xlu0 %1367
        %1371 = vset.pattern.permute.xlu0 0
        %1372 = vperm.xlu0 %1371, %v1164
        %v1373 = vpop.permute.xlu0 %1372
        %1376 = vset.pattern.permute.xlu0 0
        %1377 = vperm.xlu0 %1376, %v1165
        %v1378 = vpop.permute.xlu0 %1377
        %1381 = vset.pattern.permute.xlu0 0
        %1382 = vperm.xlu0 %1381, %v1166
        %v1383 = vpop.permute.xlu0 %1382
        %1386 = vset.pattern.permute.xlu0 0
        %1387 = vperm.xlu0 %1386, %v1167
        %v1388 = vpop.permute.xlu0 %1387
        %1391 = vset.pattern.permute.xlu0 0
        %1392 = vperm.xlu0 %1391, %v1168
        %v1393 = vpop.permute.xlu0 %1392
        %1396 = vset.pattern.permute.xlu0 0
        %1397 = vperm.xlu0 %1396, %v1169
        %v1398 = vpop.permute.xlu0 %1397
        %1401 = vset.pattern.permute.xlu0 0
        %1402 = vperm.xlu0 %1401, %v1170
        %v1403 = vpop.permute.xlu0 %1402
        %1406 = vset.pattern.permute.xlu0 0
        %1407 = vperm.xlu0 %1406, %v1171
        %v1408 = vpop.permute.xlu0 %1407
        %1411 = vset.pattern.permute.xlu0 0
        %1412 = vperm.xlu0 %1411, %v1172
        %v1413 = vpop.permute.xlu0 %1412
        %1416 = vset.pattern.permute.xlu0 0
        %1417 = vperm.xlu0 %1416, %v1173
        %v1418 = vpop.permute.xlu0 %1417
        %1421 = vset.pattern.permute.xlu0 0
        %1422 = vperm.xlu0 %1421, %v1174
        %v1423 = vpop.permute.xlu0 %1422
        %1426 = vset.pattern.permute.xlu0 0
        %1427 = vperm.xlu0 %1426, %v1175
        %v1428 = vpop.permute.xlu0 %1427
        %1431 = vset.pattern.permute.xlu0 0
        %1432 = vperm.xlu0 %1431, %v1176
        %v1433 = vpop.permute.xlu0 %1432
        %1436 = vset.pattern.permute.xlu0 0
        %1437 = vperm.xlu0 %1436, %v1177
        %v1438 = vpop.permute.xlu0 %1437
        %1441 = vset.pattern.permute.xlu0 0
        %1442 = vperm.xlu0 %1441, %v1178
        %v1443 = vpop.permute.xlu0 %1442
        %1446 = vset.pattern.permute.xlu0 0
        %1447 = vperm.xlu0 %1446, %v1179
        %v1448 = vpop.permute.xlu0 %1447
        %1451 = vset.pattern.permute.xlu0 0
        %1452 = vperm.xlu0 %1451, %v1180
        %v1453 = vpop.permute.xlu0 %1452
        %1456 = vset.pattern.permute.xlu0 0
        %1457 = vperm.xlu0 %1456, %v1181
        %v1458 = vpop.permute.xlu0 %1457
        %1461 = vset.pattern.permute.xlu0 0
        %1462 = vperm.xlu0 %1461, %v1182
        %v1463 = vpop.permute.xlu0 %1462
        %1466 = vset.pattern.permute.xlu0 0
        %1467 = vperm.xlu0 %1466, %v1183
        %v1468 = vpop.permute.xlu0 %1467
        %1471 = vset.pattern.permute.xlu0 0
        %1472 = vperm.xlu0 %1471, %v1184
        %v1473 = vpop.permute.xlu0 %1472
        %1476 = vset.pattern.permute.xlu0 0
        %1477 = vperm.xlu0 %1476, %v1185
        %v1478 = vpop.permute.xlu0 %1477
        %1481 = vset.pattern.permute.xlu0 0
        %1482 = vperm.xlu0 %1481, %v1186
        %v1483 = vpop.permute.xlu0 %1482
        %1486 = vset.pattern.permute.xlu0 0
        %1487 = vperm.xlu0 %1486, %v1187
        %v1488 = vpop.permute.xlu0 %1487
        %1491 = vset.pattern.permute.xlu0 0
        %1492 = vperm.xlu0 %1491, %v1188
        %v1493 = vpop.permute.xlu0 %1492
        %1496 = vset.pattern.permute.xlu0 0
        %1497 = vperm.xlu0 %1496, %v1189
        %v1498 = vpop.permute.xlu0 %1497
        %1501 = vset.pattern.permute.xlu0 0
        %1502 = vperm.xlu0 %1501, %v1190
        %v1503 = vpop.permute.xlu0 %1502
        %1506 = vset.pattern.permute.xlu0 0
        %1507 = vperm.xlu0 %1506, %v1191
        %v1508 = vpop.permute.xlu0 %1507
        %1511 = vset.pattern.permute.xlu0 0
        %1512 = vperm.xlu0 %1511, %v1192
        %v1513 = vpop.permute.xlu0 %1512
        %v1517 = vperm.slane %v1193, 0
        %v1518 = vperm.slane %v1193, 4
        %v1519 = vperm.slane %v1194, 0
        %v1520 = vperm.slane %v1194, 4
        %v1525 = vperm.slane %v1517, 0
        %v1526 = vperm.slane %v1518, 0
        %v1527 = vperm.slane %v1519, 0
        %v1528 = vperm.slane %v1520, 0
        %v1529 = vsub.f32 %v1198, %v1525
        %v1530 = vsub.f32 %v1198, %v1526
        %v1531 = vsub.f32 %v1198, %v1527
        %v1532 = vsub.f32 %v1198, %v1528
        %v1533 = vsub.f32 %v1203, %v1525
        %v1534 = vsub.f32 %v1203, %v1526
        %v1535 = vsub.f32 %v1203, %v1527
        %v1536 = vsub.f32 %v1203, %v1528
        %v1537 = vsub.f32 %v1208, %v1525
        %v1538 = vsub.f32 %v1208, %v1526
        %v1539 = vsub.f32 %v1208, %v1527
        %v1540 = vsub.f32 %v1208, %v1528
        %v1541 = vsub.f32 %v1213, %v1525
        %v1542 = vsub.f32 %v1213, %v1526
        %v1543 = vsub.f32 %v1213, %v1527
        %v1544 = vsub.f32 %v1213, %v1528
        %v1545 = vsub.f32 %v1218, %v1525
        %v1546 = vsub.f32 %v1218, %v1526
        %v1547 = vsub.f32 %v1218, %v1527
        %v1548 = vsub.f32 %v1218, %v1528
        %v1549 = vsub.f32 %v1223, %v1525
        %v1550 = vsub.f32 %v1223, %v1526
        %v1551 = vsub.f32 %v1223, %v1527
        %v1552 = vsub.f32 %v1223, %v1528
        %v1553 = vsub.f32 %v1228, %v1525
        %v1554 = vsub.f32 %v1228, %v1526
        %v1555 = vsub.f32 %v1228, %v1527
        %v1556 = vsub.f32 %v1228, %v1528
        %v1557 = vsub.f32 %v1233, %v1525
        %v1558 = vsub.f32 %v1233, %v1526
        %v1559 = vsub.f32 %v1233, %v1527
        %v1560 = vsub.f32 %v1233, %v1528
        %v1561 = vsub.f32 %v1238, %v1525
        %v1562 = vsub.f32 %v1238, %v1526
        %v1563 = vsub.f32 %v1238, %v1527
        %v1564 = vsub.f32 %v1238, %v1528
        %v1565 = vsub.f32 %v1243, %v1525
        %v1566 = vsub.f32 %v1243, %v1526
        %v1567 = vsub.f32 %v1243, %v1527
        %v1568 = vsub.f32 %v1243, %v1528
        %v1569 = vsub.f32 %v1248, %v1525
        %v1570 = vsub.f32 %v1248, %v1526
        %v1571 = vsub.f32 %v1248, %v1527
        %v1572 = vsub.f32 %v1248, %v1528
        %v1573 = vsub.f32 %v1253, %v1525
        %v1574 = vsub.f32 %v1253, %v1526
        %v1575 = vsub.f32 %v1253, %v1527
        %v1576 = vsub.f32 %v1253, %v1528
        %v1577 = vsub.f32 %v1258, %v1525
        %v1578 = vsub.f32 %v1258, %v1526
        %v1579 = vsub.f32 %v1258, %v1527
        %v1580 = vsub.f32 %v1258, %v1528
        %v1581 = vsub.f32 %v1263, %v1525
        %v1582 = vsub.f32 %v1263, %v1526
        %v1583 = vsub.f32 %v1263, %v1527
        %v1584 = vsub.f32 %v1263, %v1528
        %v1585 = vsub.f32 %v1268, %v1525
        %v1586 = vsub.f32 %v1268, %v1526
        %v1587 = vsub.f32 %v1268, %v1527
        %v1588 = vsub.f32 %v1268, %v1528
        %v1589 = vsub.f32 %v1273, %v1525
        %v1590 = vsub.f32 %v1273, %v1526
        %v1591 = vsub.f32 %v1273, %v1527
        %v1592 = vsub.f32 %v1273, %v1528
        %v1593 = vsub.f32 %v1278, %v1525
        %v1594 = vsub.f32 %v1278, %v1526
        %v1595 = vsub.f32 %v1278, %v1527
        %v1596 = vsub.f32 %v1278, %v1528
        %v1597 = vsub.f32 %v1283, %v1525
        %v1598 = vsub.f32 %v1283, %v1526
        %v1599 = vsub.f32 %v1283, %v1527
        %v1600 = vsub.f32 %v1283, %v1528
        %v1601 = vsub.f32 %v1288, %v1525
        %v1602 = vsub.f32 %v1288, %v1526
        %v1603 = vsub.f32 %v1288, %v1527
        %v1604 = vsub.f32 %v1288, %v1528
        %v1605 = vsub.f32 %v1293, %v1525
        %v1606 = vsub.f32 %v1293, %v1526
        %v1607 = vsub.f32 %v1293, %v1527
        %v1608 = vsub.f32 %v1293, %v1528
        %v1609 = vsub.f32 %v1298, %v1525
        %v1610 = vsub.f32 %v1298, %v1526
        %v1611 = vsub.f32 %v1298, %v1527
        %v1612 = vsub.f32 %v1298, %v1528
        %v1613 = vsub.f32 %v1303, %v1525
        %v1614 = vsub.f32 %v1303, %v1526
        %v1615 = vsub.f32 %v1303, %v1527
        %v1616 = vsub.f32 %v1303, %v1528
        %v1617 = vsub.f32 %v1308, %v1525
        %v1618 = vsub.f32 %v1308, %v1526
        %v1619 = vsub.f32 %v1308, %v1527
        %v1620 = vsub.f32 %v1308, %v1528
        %v1621 = vsub.f32 %v1313, %v1525
        %v1622 = vsub.f32 %v1313, %v1526
        %v1623 = vsub.f32 %v1313, %v1527
        %v1624 = vsub.f32 %v1313, %v1528
        %v1625 = vsub.f32 %v1318, %v1525
        %v1626 = vsub.f32 %v1318, %v1526
        %v1627 = vsub.f32 %v1318, %v1527
        %v1628 = vsub.f32 %v1318, %v1528
        %v1629 = vsub.f32 %v1323, %v1525
        %v1630 = vsub.f32 %v1323, %v1526
        %v1631 = vsub.f32 %v1323, %v1527
        %v1632 = vsub.f32 %v1323, %v1528
        %v1633 = vsub.f32 %v1328, %v1525
        %v1634 = vsub.f32 %v1328, %v1526
        %v1635 = vsub.f32 %v1328, %v1527
        %v1636 = vsub.f32 %v1328, %v1528
        %v1637 = vsub.f32 %v1333, %v1525
        %v1638 = vsub.f32 %v1333, %v1526
        %v1639 = vsub.f32 %v1333, %v1527
        %v1640 = vsub.f32 %v1333, %v1528
        %v1641 = vsub.f32 %v1338, %v1525
        %v1642 = vsub.f32 %v1338, %v1526
        %v1643 = vsub.f32 %v1338, %v1527
        %v1644 = vsub.f32 %v1338, %v1528
        %v1645 = vsub.f32 %v1343, %v1525
        %v1646 = vsub.f32 %v1343, %v1526
        %v1647 = vsub.f32 %v1343, %v1527
        %v1648 = vsub.f32 %v1343, %v1528
        %v1649 = vsub.f32 %v1348, %v1525
        %v1650 = vsub.f32 %v1348, %v1526
        %v1651 = vsub.f32 %v1348, %v1527
        %v1652 = vsub.f32 %v1348, %v1528
        %v1653 = vsub.f32 %v1353, %v1525
        %v1654 = vsub.f32 %v1353, %v1526
        %v1655 = vsub.f32 %v1353, %v1527
        %v1656 = vsub.f32 %v1353, %v1528
        %v1657 = vsub.f32 %v1358, %v1525
        %v1658 = vsub.f32 %v1358, %v1526
        %v1659 = vsub.f32 %v1358, %v1527
        %v1660 = vsub.f32 %v1358, %v1528
        %v1661 = vsub.f32 %v1363, %v1525
        %v1662 = vsub.f32 %v1363, %v1526
        %v1663 = vsub.f32 %v1363, %v1527
        %v1664 = vsub.f32 %v1363, %v1528
        %v1665 = vsub.f32 %v1368, %v1525
        %v1666 = vsub.f32 %v1368, %v1526
        %v1667 = vsub.f32 %v1368, %v1527
        %v1668 = vsub.f32 %v1368, %v1528
        %v1669 = vsub.f32 %v1373, %v1525
        %v1670 = vsub.f32 %v1373, %v1526
        %v1671 = vsub.f32 %v1373, %v1527
        %v1672 = vsub.f32 %v1373, %v1528
        %v1673 = vsub.f32 %v1378, %v1525
        %v1674 = vsub.f32 %v1378, %v1526
        %v1675 = vsub.f32 %v1378, %v1527
        %v1676 = vsub.f32 %v1378, %v1528
        %v1677 = vsub.f32 %v1383, %v1525
        %v1678 = vsub.f32 %v1383, %v1526
        %v1679 = vsub.f32 %v1383, %v1527
        %v1680 = vsub.f32 %v1383, %v1528
        %v1681 = vsub.f32 %v1388, %v1525
        %v1682 = vsub.f32 %v1388, %v1526
        %v1683 = vsub.f32 %v1388, %v1527
        %v1684 = vsub.f32 %v1388, %v1528
        %v1685 = vsub.f32 %v1393, %v1525
        %v1686 = vsub.f32 %v1393, %v1526
        %v1687 = vsub.f32 %v1393, %v1527
        %v1688 = vsub.f32 %v1393, %v1528
        %v1689 = vsub.f32 %v1398, %v1525
        %v1690 = vsub.f32 %v1398, %v1526
        %v1691 = vsub.f32 %v1398, %v1527
        %v1692 = vsub.f32 %v1398, %v1528
        %v1693 = vsub.f32 %v1403, %v1525
        %v1694 = vsub.f32 %v1403, %v1526
        %v1695 = vsub.f32 %v1403, %v1527
        %v1696 = vsub.f32 %v1403, %v1528
        %v1697 = vsub.f32 %v1408, %v1525
        %v1698 = vsub.f32 %v1408, %v1526
        %v1699 = vsub.f32 %v1408, %v1527
        %v1700 = vsub.f32 %v1408, %v1528
        %v1701 = vsub.f32 %v1413, %v1525
        %v1702 = vsub.f32 %v1413, %v1526
        %v1703 = vsub.f32 %v1413, %v1527
        %v1704 = vsub.f32 %v1413, %v1528
        %v1705 = vsub.f32 %v1418, %v1525
        %v1706 = vsub.f32 %v1418, %v1526
        %v1707 = vsub.f32 %v1418, %v1527
        %v1708 = vsub.f32 %v1418, %v1528
        %v1709 = vsub.f32 %v1423, %v1525
        %v1710 = vsub.f32 %v1423, %v1526
        %v1711 = vsub.f32 %v1423, %v1527
        %v1712 = vsub.f32 %v1423, %v1528
        %v1713 = vsub.f32 %v1428, %v1525
        %v1714 = vsub.f32 %v1428, %v1526
        %v1715 = vsub.f32 %v1428, %v1527
        %v1716 = vsub.f32 %v1428, %v1528
        %v1717 = vsub.f32 %v1433, %v1525
        %v1718 = vsub.f32 %v1433, %v1526
        %v1719 = vsub.f32 %v1433, %v1527
        %v1720 = vsub.f32 %v1433, %v1528
        %v1721 = vsub.f32 %v1438, %v1525
        %v1722 = vsub.f32 %v1438, %v1526
        %v1723 = vsub.f32 %v1438, %v1527
        %v1724 = vsub.f32 %v1438, %v1528
        %v1725 = vsub.f32 %v1443, %v1525
        %v1726 = vsub.f32 %v1443, %v1526
        %v1727 = vsub.f32 %v1443, %v1527
        %v1728 = vsub.f32 %v1443, %v1528
        %v1729 = vsub.f32 %v1448, %v1525
        %v1730 = vsub.f32 %v1448, %v1526
        %v1731 = vsub.f32 %v1448, %v1527
        %v1732 = vsub.f32 %v1448, %v1528
        %v1733 = vsub.f32 %v1453, %v1525
        %v1734 = vsub.f32 %v1453, %v1526
        %v1735 = vsub.f32 %v1453, %v1527
        %v1736 = vsub.f32 %v1453, %v1528
        %v1737 = vsub.f32 %v1458, %v1525
        %v1738 = vsub.f32 %v1458, %v1526
        %v1739 = vsub.f32 %v1458, %v1527
        %v1740 = vsub.f32 %v1458, %v1528
        %v1741 = vsub.f32 %v1463, %v1525
        %v1742 = vsub.f32 %v1463, %v1526
        %v1743 = vsub.f32 %v1463, %v1527
        %v1744 = vsub.f32 %v1463, %v1528
        %v1745 = vsub.f32 %v1468, %v1525
        %v1746 = vsub.f32 %v1468, %v1526
        %v1747 = vsub.f32 %v1468, %v1527
        %v1748 = vsub.f32 %v1468, %v1528
        %v1749 = vsub.f32 %v1473, %v1525
        %v1750 = vsub.f32 %v1473, %v1526
        %v1751 = vsub.f32 %v1473, %v1527
        %v1752 = vsub.f32 %v1473, %v1528
        %v1753 = vsub.f32 %v1478, %v1525
        %v1754 = vsub.f32 %v1478, %v1526
        %v1755 = vsub.f32 %v1478, %v1527
        %v1756 = vsub.f32 %v1478, %v1528
        %v1757 = vsub.f32 %v1483, %v1525
        %v1758 = vsub.f32 %v1483, %v1526
        %v1759 = vsub.f32 %v1483, %v1527
        %v1760 = vsub.f32 %v1483, %v1528
        %v1761 = vsub.f32 %v1488, %v1525
        %v1762 = vsub.f32 %v1488, %v1526
        %v1763 = vsub.f32 %v1488, %v1527
        %v1764 = vsub.f32 %v1488, %v1528
        %v1765 = vsub.f32 %v1493, %v1525
        %v1766 = vsub.f32 %v1493, %v1526
        %v1767 = vsub.f32 %v1493, %v1527
        %v1768 = vsub.f32 %v1493, %v1528
        %v1769 = vsub.f32 %v1498, %v1525
        %v1770 = vsub.f32 %v1498, %v1526
        %v1771 = vsub.f32 %v1498, %v1527
        %v1772 = vsub.f32 %v1498, %v1528
        %v1773 = vsub.f32 %v1503, %v1525
        %v1774 = vsub.f32 %v1503, %v1526
        %v1775 = vsub.f32 %v1503, %v1527
        %v1776 = vsub.f32 %v1503, %v1528
        %v1777 = vsub.f32 %v1508, %v1525
        %v1778 = vsub.f32 %v1508, %v1526
        %v1779 = vsub.f32 %v1508, %v1527
        %v1780 = vsub.f32 %v1508, %v1528
        %v1781 = vsub.f32 %v1513, %v1525
        %v1782 = vsub.f32 %v1513, %v1526
        %v1783 = vsub.f32 %v1513, %v1527
        %v1784 = vsub.f32 %v1513, %v1528
        %v1785 = vmul.f32 %v1529, %v1529
        %v1786 = vmul.f32 %v1530, %v1530
        %v1787 = vmul.f32 %v1531, %v1531
        %v1788 = vmul.f32 %v1532, %v1532
        %v1789 = vmul.f32 %v1533, %v1533
        %v1790 = vmul.f32 %v1534, %v1534
        %v1791 = vmul.f32 %v1535, %v1535
        %v1792 = vmul.f32 %v1536, %v1536
        %v1793 = vmul.f32 %v1537, %v1537
        %v1794 = vmul.f32 %v1538, %v1538
        %v1795 = vmul.f32 %v1539, %v1539
        %v1796 = vmul.f32 %v1540, %v1540
        %v1797 = vmul.f32 %v1541, %v1541
        %v1798 = vmul.f32 %v1542, %v1542
        %v1799 = vmul.f32 %v1543, %v1543
        %v1800 = vmul.f32 %v1544, %v1544
        %v1801 = vmul.f32 %v1545, %v1545
        %v1802 = vmul.f32 %v1546, %v1546
        %v1803 = vmul.f32 %v1547, %v1547
        %v1804 = vmul.f32 %v1548, %v1548
        %v1805 = vmul.f32 %v1549, %v1549
        %v1806 = vmul.f32 %v1550, %v1550
        %v1807 = vmul.f32 %v1551, %v1551
        %v1808 = vmul.f32 %v1552, %v1552
        %v1809 = vmul.f32 %v1553, %v1553
        %v1810 = vmul.f32 %v1554, %v1554
        %v1811 = vmul.f32 %v1555, %v1555
        %v1812 = vmul.f32 %v1556, %v1556
        %v1813 = vmul.f32 %v1557, %v1557
        %v1814 = vmul.f32 %v1558, %v1558
        %v1815 = vmul.f32 %v1559, %v1559
        %v1816 = vmul.f32 %v1560, %v1560
        %v1817 = vmul.f32 %v1561, %v1561
        %v1818 = vmul.f32 %v1562, %v1562
        %v1819 = vmul.f32 %v1563, %v1563
        %v1820 = vmul.f32 %v1564, %v1564
        %v1821 = vmul.f32 %v1565, %v1565
        %v1822 = vmul.f32 %v1566, %v1566
        %v1823 = vmul.f32 %v1567, %v1567
        %v1824 = vmul.f32 %v1568, %v1568
        %v1825 = vmul.f32 %v1569, %v1569
        %v1826 = vmul.f32 %v1570, %v1570
        %v1827 = vmul.f32 %v1571, %v1571
        %v1828 = vmul.f32 %v1572, %v1572
        %v1829 = vmul.f32 %v1573, %v1573
        %v1830 = vmul.f32 %v1574, %v1574
        %v1831 = vmul.f32 %v1575, %v1575
        %v1832 = vmul.f32 %v1576, %v1576
        %v1833 = vmul.f32 %v1577, %v1577
        %v1834 = vmul.f32 %v1578, %v1578
        %v1835 = vmul.f32 %v1579, %v1579
        %v1836 = vmul.f32 %v1580, %v1580
        %v1837 = vmul.f32 %v1581, %v1581
        %v1838 = vmul.f32 %v1582, %v1582
        %v1839 = vmul.f32 %v1583, %v1583
        %v1840 = vmul.f32 %v1584, %v1584
        %v1841 = vmul.f32 %v1585, %v1585
        %v1842 = vmul.f32 %v1586, %v1586
        %v1843 = vmul.f32 %v1587, %v1587
        %v1844 = vmul.f32 %v1588, %v1588
        %v1845 = vmul.f32 %v1589, %v1589
        %v1846 = vmul.f32 %v1590, %v1590
        %v1847 = vmul.f32 %v1591, %v1591
        %v1848 = vmul.f32 %v1592, %v1592
        %v1849 = vmul.f32 %v1593, %v1593
        %v1850 = vmul.f32 %v1594, %v1594
        %v1851 = vmul.f32 %v1595, %v1595
        %v1852 = vmul.f32 %v1596, %v1596
        %v1853 = vmul.f32 %v1597, %v1597
        %v1854 = vmul.f32 %v1598, %v1598
        %v1855 = vmul.f32 %v1599, %v1599
        %v1856 = vmul.f32 %v1600, %v1600
        %v1857 = vmul.f32 %v1601, %v1601
        %v1858 = vmul.f32 %v1602, %v1602
        %v1859 = vmul.f32 %v1603, %v1603
        %v1860 = vmul.f32 %v1604, %v1604
        %v1861 = vmul.f32 %v1605, %v1605
        %v1862 = vmul.f32 %v1606, %v1606
        %v1863 = vmul.f32 %v1607, %v1607
        %v1864 = vmul.f32 %v1608, %v1608
        %v1865 = vmul.f32 %v1609, %v1609
        %v1866 = vmul.f32 %v1610, %v1610
        %v1867 = vmul.f32 %v1611, %v1611
        %v1868 = vmul.f32 %v1612, %v1612
        %v1869 = vmul.f32 %v1613, %v1613
        %v1870 = vmul.f32 %v1614, %v1614
        %v1871 = vmul.f32 %v1615, %v1615
        %v1872 = vmul.f32 %v1616, %v1616
        %v1873 = vmul.f32 %v1617, %v1617
        %v1874 = vmul.f32 %v1618, %v1618
        %v1875 = vmul.f32 %v1619, %v1619
        %v1876 = vmul.f32 %v1620, %v1620
        %v1877 = vmul.f32 %v1621, %v1621
        %v1878 = vmul.f32 %v1622, %v1622
        %v1879 = vmul.f32 %v1623, %v1623
        %v1880 = vmul.f32 %v1624, %v1624
        %v1881 = vmul.f32 %v1625, %v1625
        %v1882 = vmul.f32 %v1626, %v1626
        %v1883 = vmul.f32 %v1627, %v1627
        %v1884 = vmul.f32 %v1628, %v1628
        %v1885 = vmul.f32 %v1629, %v1629
        %v1886 = vmul.f32 %v1630, %v1630
        %v1887 = vmul.f32 %v1631, %v1631
        %v1888 = vmul.f32 %v1632, %v1632
        %v1889 = vmul.f32 %v1633, %v1633
        %v1890 = vmul.f32 %v1634, %v1634
        %v1891 = vmul.f32 %v1635, %v1635
        %v1892 = vmul.f32 %v1636, %v1636
        %v1893 = vmul.f32 %v1637, %v1637
        %v1894 = vmul.f32 %v1638, %v1638
        %v1895 = vmul.f32 %v1639, %v1639
        %v1896 = vmul.f32 %v1640, %v1640
        %v1897 = vmul.f32 %v1641, %v1641
        %v1898 = vmul.f32 %v1642, %v1642
        %v1899 = vmul.f32 %v1643, %v1643
        %v1900 = vmul.f32 %v1644, %v1644
        %v1901 = vmul.f32 %v1645, %v1645
        %v1902 = vmul.f32 %v1646, %v1646
        %v1903 = vmul.f32 %v1647, %v1647
        %v1904 = vmul.f32 %v1648, %v1648
        %v1905 = vmul.f32 %v1649, %v1649
        %v1906 = vmul.f32 %v1650, %v1650
        %v1907 = vmul.f32 %v1651, %v1651
        %v1908 = vmul.f32 %v1652, %v1652
        %v1909 = vmul.f32 %v1653, %v1653
        %v1910 = vmul.f32 %v1654, %v1654
        %v1911 = vmul.f32 %v1655, %v1655
        %v1912 = vmul.f32 %v1656, %v1656
        %v1913 = vmul.f32 %v1657, %v1657
        %v1914 = vmul.f32 %v1658, %v1658
        %v1915 = vmul.f32 %v1659, %v1659
        %v1916 = vmul.f32 %v1660, %v1660
        %v1917 = vmul.f32 %v1661, %v1661
        %v1918 = vmul.f32 %v1662, %v1662
        %v1919 = vmul.f32 %v1663, %v1663
        %v1920 = vmul.f32 %v1664, %v1664
        %v1921 = vmul.f32 %v1665, %v1665
        %v1922 = vmul.f32 %v1666, %v1666
        %v1923 = vmul.f32 %v1667, %v1667
        %v1924 = vmul.f32 %v1668, %v1668
        %v1925 = vmul.f32 %v1669, %v1669
        %v1926 = vmul.f32 %v1670, %v1670
        %v1927 = vmul.f32 %v1671, %v1671
        %v1928 = vmul.f32 %v1672, %v1672
        %v1929 = vmul.f32 %v1673, %v1673
        %v1930 = vmul.f32 %v1674, %v1674
        %v1931 = vmul.f32 %v1675, %v1675
        %v1932 = vmul.f32 %v1676, %v1676
        %v1933 = vmul.f32 %v1677, %v1677
        %v1934 = vmul.f32 %v1678, %v1678
        %v1935 = vmul.f32 %v1679, %v1679
        %v1936 = vmul.f32 %v1680, %v1680
        %v1937 = vmul.f32 %v1681, %v1681
        %v1938 = vmul.f32 %v1682, %v1682
        %v1939 = vmul.f32 %v1683, %v1683
        %v1940 = vmul.f32 %v1684, %v1684
        %v1941 = vmul.f32 %v1685, %v1685
        %v1942 = vmul.f32 %v1686, %v1686
        %v1943 = vmul.f32 %v1687, %v1687
        %v1944 = vmul.f32 %v1688, %v1688
        %v1945 = vmul.f32 %v1689, %v1689
        %v1946 = vmul.f32 %v1690, %v1690
        %v1947 = vmul.f32 %v1691, %v1691
        %v1948 = vmul.f32 %v1692, %v1692
        %v1949 = vmul.f32 %v1693, %v1693
        %v1950 = vmul.f32 %v1694, %v1694
        %v1951 = vmul.f32 %v1695, %v1695
        %v1952 = vmul.f32 %v1696, %v1696
        %v1953 = vmul.f32 %v1697, %v1697
        %v1954 = vmul.f32 %v1698, %v1698
        %v1955 = vmul.f32 %v1699, %v1699
        %v1956 = vmul.f32 %v1700, %v1700
        %v1957 = vmul.f32 %v1701, %v1701
        %v1958 = vmul.f32 %v1702, %v1702
        %v1959 = vmul.f32 %v1703, %v1703
        %v1960 = vmul.f32 %v1704, %v1704
        %v1961 = vmul.f32 %v1705, %v1705
        %v1962 = vmul.f32 %v1706, %v1706
        %v1963 = vmul.f32 %v1707, %v1707
        %v1964 = vmul.f32 %v1708, %v1708
        %v1965 = vmul.f32 %v1709, %v1709
        %v1966 = vmul.f32 %v1710, %v1710
        %v1967 = vmul.f32 %v1711, %v1711
        %v1968 = vmul.f32 %v1712, %v1712
        %v1969 = vmul.f32 %v1713, %v1713
        %v1970 = vmul.f32 %v1714, %v1714
        %v1971 = vmul.f32 %v1715, %v1715
        %v1972 = vmul.f32 %v1716, %v1716
        %v1973 = vmul.f32 %v1717, %v1717
        %v1974 = vmul.f32 %v1718, %v1718
        %v1975 = vmul.f32 %v1719, %v1719
        %v1976 = vmul.f32 %v1720, %v1720
        %v1977 = vmul.f32 %v1721, %v1721
        %v1978 = vmul.f32 %v1722, %v1722
        %v1979 = vmul.f32 %v1723, %v1723
        %v1980 = vmul.f32 %v1724, %v1724
        %v1981 = vmul.f32 %v1725, %v1725
        %v1982 = vmul.f32 %v1726, %v1726
        %v1983 = vmul.f32 %v1727, %v1727
        %v1984 = vmul.f32 %v1728, %v1728
        %v1985 = vmul.f32 %v1729, %v1729
        %v1986 = vmul.f32 %v1730, %v1730
        %v1987 = vmul.f32 %v1731, %v1731
        %v1988 = vmul.f32 %v1732, %v1732
        %v1989 = vmul.f32 %v1733, %v1733
        %v1990 = vmul.f32 %v1734, %v1734
        %v1991 = vmul.f32 %v1735, %v1735
        %v1992 = vmul.f32 %v1736, %v1736
        %v1993 = vmul.f32 %v1737, %v1737
        %v1994 = vmul.f32 %v1738, %v1738
        %v1995 = vmul.f32 %v1739, %v1739
        %v1996 = vmul.f32 %v1740, %v1740
        %v1997 = vmul.f32 %v1741, %v1741
        %v1998 = vmul.f32 %v1742, %v1742
        %v1999 = vmul.f32 %v1743, %v1743
        %v2000 = vmul.f32 %v1744, %v1744
        %v2001 = vmul.f32 %v1745, %v1745
        %v2002 = vmul.f32 %v1746, %v1746
        %v2003 = vmul.f32 %v1747, %v1747
        %v2004 = vmul.f32 %v1748, %v1748
        %v2005 = vmul.f32 %v1749, %v1749
        %v2006 = vmul.f32 %v1750, %v1750
        %v2007 = vmul.f32 %v1751, %v1751
        %v2008 = vmul.f32 %v1752, %v1752
        %v2009 = vmul.f32 %v1753, %v1753
        %v2010 = vmul.f32 %v1754, %v1754
        %v2011 = vmul.f32 %v1755, %v1755
        %v2012 = vmul.f32 %v1756, %v1756
        %v2013 = vmul.f32 %v1757, %v1757
        %v2014 = vmul.f32 %v1758, %v1758
        %v2015 = vmul.f32 %v1759, %v1759
        %v2016 = vmul.f32 %v1760, %v1760
        %v2017 = vmul.f32 %v1761, %v1761
        %v2018 = vmul.f32 %v1762, %v1762
        %v2019 = vmul.f32 %v1763, %v1763
        %v2020 = vmul.f32 %v1764, %v1764
        %v2021 = vmul.f32 %v1765, %v1765
        %v2022 = vmul.f32 %v1766, %v1766
        %v2023 = vmul.f32 %v1767, %v1767
        %v2024 = vmul.f32 %v1768, %v1768
        %v2025 = vmul.f32 %v1769, %v1769
        %v2026 = vmul.f32 %v1770, %v1770
        %v2027 = vmul.f32 %v1771, %v1771
        %v2028 = vmul.f32 %v1772, %v1772
        %v2029 = vmul.f32 %v1773, %v1773
        %v2030 = vmul.f32 %v1774, %v1774
        %v2031 = vmul.f32 %v1775, %v1775
        %v2032 = vmul.f32 %v1776, %v1776
        %v2033 = vmul.f32 %v1777, %v1777
        %v2034 = vmul.f32 %v1778, %v1778
        %v2035 = vmul.f32 %v1779, %v1779
        %v2036 = vmul.f32 %v1780, %v1780
        %v2037 = vmul.f32 %v1781, %v1781
        %v2038 = vmul.f32 %v1782, %v1782
        %v2039 = vmul.f32 %v1783, %v1783
        %v2040 = vmul.f32 %v1784, %v1784
        %2041 = vset.pattern.permute.xlu0 1
        %2042 = vperm.xlu0 %2041, %v1129
        %v2043 = vpop.permute.xlu0 %2042
        %2045 = vset.pattern.permute.xlu0 1
        %2046 = vperm.xlu0 %2045, %v1130
        %v2047 = vpop.permute.xlu0 %2046
        %2049 = vset.pattern.permute.xlu0 1
        %2050 = vperm.xlu0 %2049, %v1131
        %v2051 = vpop.permute.xlu0 %2050
        %2053 = vset.pattern.permute.xlu0 1
        %2054 = vperm.xlu0 %2053, %v1132
        %v2055 = vpop.permute.xlu0 %2054
        %2057 = vset.pattern.permute.xlu0 1
        %2058 = vperm.xlu0 %2057, %v1133
        %v2059 = vpop.permute.xlu0 %2058
        %2061 = vset.pattern.permute.xlu0 1
        %2062 = vperm.xlu0 %2061, %v1134
        %v2063 = vpop.permute.xlu0 %2062
        %2065 = vset.pattern.permute.xlu0 1
        %2066 = vperm.xlu0 %2065, %v1135
        %v2067 = vpop.permute.xlu0 %2066
        %2069 = vset.pattern.permute.xlu0 1
        %2070 = vperm.xlu0 %2069, %v1136
        %v2071 = vpop.permute.xlu0 %2070
        %2073 = vset.pattern.permute.xlu0 1
        %2074 = vperm.xlu0 %2073, %v1137
        %v2075 = vpop.permute.xlu0 %2074
        %2077 = vset.pattern.permute.xlu0 1
        %2078 = vperm.xlu0 %2077, %v1138
        %v2079 = vpop.permute.xlu0 %2078
        %2081 = vset.pattern.permute.xlu0 1
        %2082 = vperm.xlu0 %2081, %v1139
        %v2083 = vpop.permute.xlu0 %2082
        %2085 = vset.pattern.permute.xlu0 1
        %2086 = vperm.xlu0 %2085, %v1140
        %v2087 = vpop.permute.xlu0 %2086
        %2089 = vset.pattern.permute.xlu0 1
        %2090 = vperm.xlu0 %2089, %v1141
        %v2091 = vpop.permute.xlu0 %2090
        %2093 = vset.pattern.permute.xlu0 1
        %2094 = vperm.xlu0 %2093, %v1142
        %v2095 = vpop.permute.xlu0 %2094
        %2097 = vset.pattern.permute.xlu0 1
        %2098 = vperm.xlu0 %2097, %v1143
        %v2099 = vpop.permute.xlu0 %2098
        %2101 = vset.pattern.permute.xlu0 1
        %2102 = vperm.xlu0 %2101, %v1144
        %v2103 = vpop.permute.xlu0 %2102
        %2105 = vset.pattern.permute.xlu0 1
        %2106 = vperm.xlu0 %2105, %v1145
        %v2107 = vpop.permute.xlu0 %2106
        %2109 = vset.pattern.permute.xlu0 1
        %2110 = vperm.xlu0 %2109, %v1146
        %v2111 = vpop.permute.xlu0 %2110
        %2113 = vset.pattern.permute.xlu0 1
        %2114 = vperm.xlu0 %2113, %v1147
        %v2115 = vpop.permute.xlu0 %2114
        %2117 = vset.pattern.permute.xlu0 1
        %2118 = vperm.xlu0 %2117, %v1148
        %v2119 = vpop.permute.xlu0 %2118
        %2121 = vset.pattern.permute.xlu0 1
        %2122 = vperm.xlu0 %2121, %v1149
        %v2123 = vpop.permute.xlu0 %2122
        %2125 = vset.pattern.permute.xlu0 1
        %2126 = vperm.xlu0 %2125, %v1150
        %v2127 = vpop.permute.xlu0 %2126
        %2129 = vset.pattern.permute.xlu0 1
        %2130 = vperm.xlu0 %2129, %v1151
        %v2131 = vpop.permute.xlu0 %2130
        %2133 = vset.pattern.permute.xlu0 1
        %2134 = vperm.xlu0 %2133, %v1152
        %v2135 = vpop.permute.xlu0 %2134
        %2137 = vset.pattern.permute.xlu0 1
        %2138 = vperm.xlu0 %2137, %v1153
        %v2139 = vpop.permute.xlu0 %2138
        %2141 = vset.pattern.permute.xlu0 1
        %2142 = vperm.xlu0 %2141, %v1154
        %v2143 = vpop.permute.xlu0 %2142
        %2145 = vset.pattern.permute.xlu0 1
        %2146 = vperm.xlu0 %2145, %v1155
        %v2147 = vpop.permute.xlu0 %2146
        %2149 = vset.pattern.permute.xlu0 1
        %2150 = vperm.xlu0 %2149, %v1156
        %v2151 = vpop.permute.xlu0 %2150
        %2153 = vset.pattern.permute.xlu0 1
        %2154 = vperm.xlu0 %2153, %v1157
        %v2155 = vpop.permute.xlu0 %2154
        %2157 = vset.pattern.permute.xlu0 1
        %2158 = vperm.xlu0 %2157, %v1158
        %v2159 = vpop.permute.xlu0 %2158
        %2161 = vset.pattern.permute.xlu0 1
        %2162 = vperm.xlu0 %2161, %v1159
        %v2163 = vpop.permute.xlu0 %2162
        %2165 = vset.pattern.permute.xlu0 1
        %2166 = vperm.xlu0 %2165, %v1160
        %v2167 = vpop.permute.xlu0 %2166
        %2169 = vset.pattern.permute.xlu0 1
        %2170 = vperm.xlu0 %2169, %v1161
        %v2171 = vpop.permute.xlu0 %2170
        %2173 = vset.pattern.permute.xlu0 1
        %2174 = vperm.xlu0 %2173, %v1162
        %v2175 = vpop.permute.xlu0 %2174
        %2177 = vset.pattern.permute.xlu0 1
        %2178 = vperm.xlu0 %2177, %v1163
        %v2179 = vpop.permute.xlu0 %2178
        %2181 = vset.pattern.permute.xlu0 1
        %2182 = vperm.xlu0 %2181, %v1164
        %v2183 = vpop.permute.xlu0 %2182
        %2185 = vset.pattern.permute.xlu0 1
        %2186 = vperm.xlu0 %2185, %v1165
        %v2187 = vpop.permute.xlu0 %2186
        %2189 = vset.pattern.permute.xlu0 1
        %2190 = vperm.xlu0 %2189, %v1166
        %v2191 = vpop.permute.xlu0 %2190
        %2193 = vset.pattern.permute.xlu0 1
        %2194 = vperm.xlu0 %2193, %v1167
        %v2195 = vpop.permute.xlu0 %2194
        %2197 = vset.pattern.permute.xlu0 1
        %2198 = vperm.xlu0 %2197, %v1168
        %v2199 = vpop.permute.xlu0 %2198
        %2201 = vset.pattern.permute.xlu0 1
        %2202 = vperm.xlu0 %2201, %v1169
        %v2203 = vpop.permute.xlu0 %2202
        %2205 = vset.pattern.permute.xlu0 1
        %2206 = vperm.xlu0 %2205, %v1170
        %v2207 = vpop.permute.xlu0 %2206
        %2209 = vset.pattern.permute.xlu0 1
        %2210 = vperm.xlu0 %2209, %v1171
        %v2211 = vpop.permute.xlu0 %2210
        %2213 = vset.pattern.permute.xlu0 1
        %2214 = vperm.xlu0 %2213, %v1172
        %v2215 = vpop.permute.xlu0 %2214
        %2217 = vset.pattern.permute.xlu0 1
        %2218 = vperm.xlu0 %2217, %v1173
        %v2219 = vpop.permute.xlu0 %2218
        %2221 = vset.pattern.permute.xlu0 1
        %2222 = vperm.xlu0 %2221, %v1174
        %v2223 = vpop.permute.xlu0 %2222
        %2225 = vset.pattern.permute.xlu0 1
        %2226 = vperm.xlu0 %2225, %v1175
        %v2227 = vpop.permute.xlu0 %2226
        %2229 = vset.pattern.permute.xlu0 1
        %2230 = vperm.xlu0 %2229, %v1176
        %v2231 = vpop.permute.xlu0 %2230
        %2233 = vset.pattern.permute.xlu0 1
        %2234 = vperm.xlu0 %2233, %v1177
        %v2235 = vpop.permute.xlu0 %2234
        %2237 = vset.pattern.permute.xlu0 1
        %2238 = vperm.xlu0 %2237, %v1178
        %v2239 = vpop.permute.xlu0 %2238
        %2241 = vset.pattern.permute.xlu0 1
        %2242 = vperm.xlu0 %2241, %v1179
        %v2243 = vpop.permute.xlu0 %2242
        %2245 = vset.pattern.permute.xlu0 1
        %2246 = vperm.xlu0 %2245, %v1180
        %v2247 = vpop.permute.xlu0 %2246
        %2249 = vset.pattern.permute.xlu0 1
        %2250 = vperm.xlu0 %2249, %v1181
        %v2251 = vpop.permute.xlu0 %2250
        %2253 = vset.pattern.permute.xlu0 1
        %2254 = vperm.xlu0 %2253, %v1182
        %v2255 = vpop.permute.xlu0 %2254
        %2257 = vset.pattern.permute.xlu0 1
        %2258 = vperm.xlu0 %2257, %v1183
        %v2259 = vpop.permute.xlu0 %2258
        %2261 = vset.pattern.permute.xlu0 1
        %2262 = vperm.xlu0 %2261, %v1184
        %v2263 = vpop.permute.xlu0 %2262
        %2265 = vset.pattern.permute.xlu0 1
        %2266 = vperm.xlu0 %2265, %v1185
        %v2267 = vpop.permute.xlu0 %2266
        %2269 = vset.pattern.permute.xlu0 1
        %2270 = vperm.xlu0 %2269, %v1186
        %v2271 = vpop.permute.xlu0 %2270
        %2273 = vset.pattern.permute.xlu0 1
        %2274 = vperm.xlu0 %2273, %v1187
        %v2275 = vpop.permute.xlu0 %2274
        %2277 = vset.pattern.permute.xlu0 1
        %2278 = vperm.xlu0 %2277, %v1188
        %v2279 = vpop.permute.xlu0 %2278
        %2281 = vset.pattern.permute.xlu0 1
        %2282 = vperm.xlu0 %2281, %v1189
        %v2283 = vpop.permute.xlu0 %2282
        %2285 = vset.pattern.permute.xlu0 1
        %2286 = vperm.xlu0 %2285, %v1190
        %v2287 = vpop.permute.xlu0 %2286
        %2289 = vset.pattern.permute.xlu0 1
        %2290 = vperm.xlu0 %2289, %v1191
        %v2291 = vpop.permute.xlu0 %2290
        %2293 = vset.pattern.permute.xlu0 1
        %2294 = vperm.xlu0 %2293, %v1192
        %v2295 = vpop.permute.xlu0 %2294
        %v2297 = vperm.slane %v1193, 1
        %v2298 = vperm.slane %v1193, 5
        %v2299 = vperm.slane %v1194, 1
        %v2300 = vperm.slane %v1194, 5
        %v2305 = vperm.slane %v2297, 1
        %v2306 = vperm.slane %v2298, 1
        %v2307 = vperm.slane %v2299, 1
        %v2308 = vperm.slane %v2300, 1
        %v2309 = vsub.f32 %v2043, %v2305
        %v2310 = vsub.f32 %v2043, %v2306
        %v2311 = vsub.f32 %v2043, %v2307
        %v2312 = vsub.f32 %v2043, %v2308
        %v2313 = vsub.f32 %v2047, %v2305
        %v2314 = vsub.f32 %v2047, %v2306
        %v2315 = vsub.f32 %v2047, %v2307
        %v2316 = vsub.f32 %v2047, %v2308
        %v2317 = vsub.f32 %v2051, %v2305
        %v2318 = vsub.f32 %v2051, %v2306
        %v2319 = vsub.f32 %v2051, %v2307
        %v2320 = vsub.f32 %v2051, %v2308
        %v2321 = vsub.f32 %v2055, %v2305
        %v2322 = vsub.f32 %v2055, %v2306
        %v2323 = vsub.f32 %v2055, %v2307
        %v2324 = vsub.f32 %v2055, %v2308
        %v2325 = vsub.f32 %v2059, %v2305
        %v2326 = vsub.f32 %v2059, %v2306
        %v2327 = vsub.f32 %v2059, %v2307
        %v2328 = vsub.f32 %v2059, %v2308
        %v2329 = vsub.f32 %v2063, %v2305
        %v2330 = vsub.f32 %v2063, %v2306
        %v2331 = vsub.f32 %v2063, %v2307
        %v2332 = vsub.f32 %v2063, %v2308
        %v2333 = vsub.f32 %v2067, %v2305
        %v2334 = vsub.f32 %v2067, %v2306
        %v2335 = vsub.f32 %v2067, %v2307
        %v2336 = vsub.f32 %v2067, %v2308
        %v2337 = vsub.f32 %v2071, %v2305
        %v2338 = vsub.f32 %v2071, %v2306
        %v2339 = vsub.f32 %v2071, %v2307
        %v2340 = vsub.f32 %v2071, %v2308
        %v2341 = vsub.f32 %v2075, %v2305
        %v2342 = vsub.f32 %v2075, %v2306
        %v2343 = vsub.f32 %v2075, %v2307
        %v2344 = vsub.f32 %v2075, %v2308
        %v2345 = vsub.f32 %v2079, %v2305
        %v2346 = vsub.f32 %v2079, %v2306
        %v2347 = vsub.f32 %v2079, %v2307
        %v2348 = vsub.f32 %v2079, %v2308
        %v2349 = vsub.f32 %v2083, %v2305
        %v2350 = vsub.f32 %v2083, %v2306
        %v2351 = vsub.f32 %v2083, %v2307
        %v2352 = vsub.f32 %v2083, %v2308
        %v2353 = vsub.f32 %v2087, %v2305
        %v2354 = vsub.f32 %v2087, %v2306
        %v2355 = vsub.f32 %v2087, %v2307
        %v2356 = vsub.f32 %v2087, %v2308
        %v2357 = vsub.f32 %v2091, %v2305
        %v2358 = vsub.f32 %v2091, %v2306
        %v2359 = vsub.f32 %v2091, %v2307
        %v2360 = vsub.f32 %v2091, %v2308
        %v2361 = vsub.f32 %v2095, %v2305
        %v2362 = vsub.f32 %v2095, %v2306
        %v2363 = vsub.f32 %v2095, %v2307
        %v2364 = vsub.f32 %v2095, %v2308
        %v2365 = vsub.f32 %v2099, %v2305
        %v2366 = vsub.f32 %v2099, %v2306
        %v2367 = vsub.f32 %v2099, %v2307
        %v2368 = vsub.f32 %v2099, %v2308
        %v2369 = vsub.f32 %v2103, %v2305
        %v2370 = vsub.f32 %v2103, %v2306
        %v2371 = vsub.f32 %v2103, %v2307
        %v2372 = vsub.f32 %v2103, %v2308
        %v2373 = vsub.f32 %v2107, %v2305
        %v2374 = vsub.f32 %v2107, %v2306
        %v2375 = vsub.f32 %v2107, %v2307
        %v2376 = vsub.f32 %v2107, %v2308
        %v2377 = vsub.f32 %v2111, %v2305
        %v2378 = vsub.f32 %v2111, %v2306
        %v2379 = vsub.f32 %v2111, %v2307
        %v2380 = vsub.f32 %v2111, %v2308
        %v2381 = vsub.f32 %v2115, %v2305
        %v2382 = vsub.f32 %v2115, %v2306
        %v2383 = vsub.f32 %v2115, %v2307
        %v2384 = vsub.f32 %v2115, %v2308
        %v2385 = vsub.f32 %v2119, %v2305
        %v2386 = vsub.f32 %v2119, %v2306
        %v2387 = vsub.f32 %v2119, %v2307
        %v2388 = vsub.f32 %v2119, %v2308
        %v2389 = vsub.f32 %v2123, %v2305
        %v2390 = vsub.f32 %v2123, %v2306
        %v2391 = vsub.f32 %v2123, %v2307
        %v2392 = vsub.f32 %v2123, %v2308
        %v2393 = vsub.f32 %v2127, %v2305
        %v2394 = vsub.f32 %v2127, %v2306
        %v2395 = vsub.f32 %v2127, %v2307
        %v2396 = vsub.f32 %v2127, %v2308
        %v2397 = vsub.f32 %v2131, %v2305
        %v2398 = vsub.f32 %v2131, %v2306
        %v2399 = vsub.f32 %v2131, %v2307
        %v2400 = vsub.f32 %v2131, %v2308
        %v2401 = vsub.f32 %v2135, %v2305
        %v2402 = vsub.f32 %v2135, %v2306
        %v2403 = vsub.f32 %v2135, %v2307
        %v2404 = vsub.f32 %v2135, %v2308
        %v2405 = vsub.f32 %v2139, %v2305
        %v2406 = vsub.f32 %v2139, %v2306
        %v2407 = vsub.f32 %v2139, %v2307
        %v2408 = vsub.f32 %v2139, %v2308
        %v2409 = vsub.f32 %v2143, %v2305
        %v2410 = vsub.f32 %v2143, %v2306
        %v2411 = vsub.f32 %v2143, %v2307
        %v2412 = vsub.f32 %v2143, %v2308
        %v2413 = vsub.f32 %v2147, %v2305
        %v2414 = vsub.f32 %v2147, %v2306
        %v2415 = vsub.f32 %v2147, %v2307
        %v2416 = vsub.f32 %v2147, %v2308
        %v2417 = vsub.f32 %v2151, %v2305
        %v2418 = vsub.f32 %v2151, %v2306
        %v2419 = vsub.f32 %v2151, %v2307
        %v2420 = vsub.f32 %v2151, %v2308
        %v2421 = vsub.f32 %v2155, %v2305
        %v2422 = vsub.f32 %v2155, %v2306
        %v2423 = vsub.f32 %v2155, %v2307
        %v2424 = vsub.f32 %v2155, %v2308
        %v2425 = vsub.f32 %v2159, %v2305
        %v2426 = vsub.f32 %v2159, %v2306
        %v2427 = vsub.f32 %v2159, %v2307
        %v2428 = vsub.f32 %v2159, %v2308
        %v2429 = vsub.f32 %v2163, %v2305
        %v2430 = vsub.f32 %v2163, %v2306
        %v2431 = vsub.f32 %v2163, %v2307
        %v2432 = vsub.f32 %v2163, %v2308
        %v2433 = vsub.f32 %v2167, %v2305
        %v2434 = vsub.f32 %v2167, %v2306
        %v2435 = vsub.f32 %v2167, %v2307
        %v2436 = vsub.f32 %v2167, %v2308
        %v2437 = vsub.f32 %v2171, %v2305
        %v2438 = vsub.f32 %v2171, %v2306
        %v2439 = vsub.f32 %v2171, %v2307
        %v2440 = vsub.f32 %v2171, %v2308
        %v2441 = vsub.f32 %v2175, %v2305
        %v2442 = vsub.f32 %v2175, %v2306
        %v2443 = vsub.f32 %v2175, %v2307
        %v2444 = vsub.f32 %v2175, %v2308
        %v2445 = vsub.f32 %v2179, %v2305
        %v2446 = vsub.f32 %v2179, %v2306
        %v2447 = vsub.f32 %v2179, %v2307
        %v2448 = vsub.f32 %v2179, %v2308
        %v2449 = vsub.f32 %v2183, %v2305
        %v2450 = vsub.f32 %v2183, %v2306
        %v2451 = vsub.f32 %v2183, %v2307
        %v2452 = vsub.f32 %v2183, %v2308
        %v2453 = vsub.f32 %v2187, %v2305
        %v2454 = vsub.f32 %v2187, %v2306
        %v2455 = vsub.f32 %v2187, %v2307
        %v2456 = vsub.f32 %v2187, %v2308
        %v2457 = vsub.f32 %v2191, %v2305
        %v2458 = vsub.f32 %v2191, %v2306
        %v2459 = vsub.f32 %v2191, %v2307
        %v2460 = vsub.f32 %v2191, %v2308
        %v2461 = vsub.f32 %v2195, %v2305
        %v2462 = vsub.f32 %v2195, %v2306
        %v2463 = vsub.f32 %v2195, %v2307
        %v2464 = vsub.f32 %v2195, %v2308
        %v2465 = vsub.f32 %v2199, %v2305
        %v2466 = vsub.f32 %v2199, %v2306
        %v2467 = vsub.f32 %v2199, %v2307
        %v2468 = vsub.f32 %v2199, %v2308
        %v2469 = vsub.f32 %v2203, %v2305
        %v2470 = vsub.f32 %v2203, %v2306
        %v2471 = vsub.f32 %v2203, %v2307
        %v2472 = vsub.f32 %v2203, %v2308
        %v2473 = vsub.f32 %v2207, %v2305
        %v2474 = vsub.f32 %v2207, %v2306
        %v2475 = vsub.f32 %v2207, %v2307
        %v2476 = vsub.f32 %v2207, %v2308
        %v2477 = vsub.f32 %v2211, %v2305
        %v2478 = vsub.f32 %v2211, %v2306
        %v2479 = vsub.f32 %v2211, %v2307
        %v2480 = vsub.f32 %v2211, %v2308
        %v2481 = vsub.f32 %v2215, %v2305
        %v2482 = vsub.f32 %v2215, %v2306
        %v2483 = vsub.f32 %v2215, %v2307
        %v2484 = vsub.f32 %v2215, %v2308
        %v2485 = vsub.f32 %v2219, %v2305
        %v2486 = vsub.f32 %v2219, %v2306
        %v2487 = vsub.f32 %v2219, %v2307
        %v2488 = vsub.f32 %v2219, %v2308
        %v2489 = vsub.f32 %v2223, %v2305
        %v2490 = vsub.f32 %v2223, %v2306
        %v2491 = vsub.f32 %v2223, %v2307
        %v2492 = vsub.f32 %v2223, %v2308
        %v2493 = vsub.f32 %v2227, %v2305
        %v2494 = vsub.f32 %v2227, %v2306
        %v2495 = vsub.f32 %v2227, %v2307
        %v2496 = vsub.f32 %v2227, %v2308
        %v2497 = vsub.f32 %v2231, %v2305
        %v2498 = vsub.f32 %v2231, %v2306
        %v2499 = vsub.f32 %v2231, %v2307
        %v2500 = vsub.f32 %v2231, %v2308
        %v2501 = vsub.f32 %v2235, %v2305
        %v2502 = vsub.f32 %v2235, %v2306
        %v2503 = vsub.f32 %v2235, %v2307
        %v2504 = vsub.f32 %v2235, %v2308
        %v2505 = vsub.f32 %v2239, %v2305
        %v2506 = vsub.f32 %v2239, %v2306
        %v2507 = vsub.f32 %v2239, %v2307
        %v2508 = vsub.f32 %v2239, %v2308
        %v2509 = vsub.f32 %v2243, %v2305
        %v2510 = vsub.f32 %v2243, %v2306
        %v2511 = vsub.f32 %v2243, %v2307
        %v2512 = vsub.f32 %v2243, %v2308
        %v2513 = vsub.f32 %v2247, %v2305
        %v2514 = vsub.f32 %v2247, %v2306
        %v2515 = vsub.f32 %v2247, %v2307
        %v2516 = vsub.f32 %v2247, %v2308
        %v2517 = vsub.f32 %v2251, %v2305
        %v2518 = vsub.f32 %v2251, %v2306
        %v2519 = vsub.f32 %v2251, %v2307
        %v2520 = vsub.f32 %v2251, %v2308
        %v2521 = vsub.f32 %v2255, %v2305
        %v2522 = vsub.f32 %v2255, %v2306
        %v2523 = vsub.f32 %v2255, %v2307
        %v2524 = vsub.f32 %v2255, %v2308
        %v2525 = vsub.f32 %v2259, %v2305
        %v2526 = vsub.f32 %v2259, %v2306
        %v2527 = vsub.f32 %v2259, %v2307
        %v2528 = vsub.f32 %v2259, %v2308
        %v2529 = vsub.f32 %v2263, %v2305
        %v2530 = vsub.f32 %v2263, %v2306
        %v2531 = vsub.f32 %v2263, %v2307
        %v2532 = vsub.f32 %v2263, %v2308
        %v2533 = vsub.f32 %v2267, %v2305
        %v2534 = vsub.f32 %v2267, %v2306
        %v2535 = vsub.f32 %v2267, %v2307
        %v2536 = vsub.f32 %v2267, %v2308
        %v2537 = vsub.f32 %v2271, %v2305
        %v2538 = vsub.f32 %v2271, %v2306
        %v2539 = vsub.f32 %v2271, %v2307
        %v2540 = vsub.f32 %v2271, %v2308
        %v2541 = vsub.f32 %v2275, %v2305
        %v2542 = vsub.f32 %v2275, %v2306
        %v2543 = vsub.f32 %v2275, %v2307
        %v2544 = vsub.f32 %v2275, %v2308
        %v2545 = vsub.f32 %v2279, %v2305
        %v2546 = vsub.f32 %v2279, %v2306
        %v2547 = vsub.f32 %v2279, %v2307
        %v2548 = vsub.f32 %v2279, %v2308
        %v2549 = vsub.f32 %v2283, %v2305
        %v2550 = vsub.f32 %v2283, %v2306
        %v2551 = vsub.f32 %v2283, %v2307
        %v2552 = vsub.f32 %v2283, %v2308
        %v2553 = vsub.f32 %v2287, %v2305
        %v2554 = vsub.f32 %v2287, %v2306
        %v2555 = vsub.f32 %v2287, %v2307
        %v2556 = vsub.f32 %v2287, %v2308
        %v2557 = vsub.f32 %v2291, %v2305
        %v2558 = vsub.f32 %v2291, %v2306
        %v2559 = vsub.f32 %v2291, %v2307
        %v2560 = vsub.f32 %v2291, %v2308
        %v2561 = vsub.f32 %v2295, %v2305
        %v2562 = vsub.f32 %v2295, %v2306
        %v2563 = vsub.f32 %v2295, %v2307
        %v2564 = vsub.f32 %v2295, %v2308
        %v2565 = vmul.f32 %v2309, %v2309
        %v2566 = vmul.f32 %v2310, %v2310
        %v2567 = vmul.f32 %v2311, %v2311
        %v2568 = vmul.f32 %v2312, %v2312
        %v2569 = vmul.f32 %v2313, %v2313
        %v2570 = vmul.f32 %v2314, %v2314
        %v2571 = vmul.f32 %v2315, %v2315
        %v2572 = vmul.f32 %v2316, %v2316
        %v2573 = vmul.f32 %v2317, %v2317
        %v2574 = vmul.f32 %v2318, %v2318
        %v2575 = vmul.f32 %v2319, %v2319
        %v2576 = vmul.f32 %v2320, %v2320
        %v2577 = vmul.f32 %v2321, %v2321
        %v2578 = vmul.f32 %v2322, %v2322
        %v2579 = vmul.f32 %v2323, %v2323
        %v2580 = vmul.f32 %v2324, %v2324
        %v2581 = vmul.f32 %v2325, %v2325
        %v2582 = vmul.f32 %v2326, %v2326
        %v2583 = vmul.f32 %v2327, %v2327
        %v2584 = vmul.f32 %v2328, %v2328
        %v2585 = vmul.f32 %v2329, %v2329
        %v2586 = vmul.f32 %v2330, %v2330
        %v2587 = vmul.f32 %v2331, %v2331
        %v2588 = vmul.f32 %v2332, %v2332
        %v2589 = vmul.f32 %v2333, %v2333
        %v2590 = vmul.f32 %v2334, %v2334
        %v2591 = vmul.f32 %v2335, %v2335
        %v2592 = vmul.f32 %v2336, %v2336
        %v2593 = vmul.f32 %v2337, %v2337
        %v2594 = vmul.f32 %v2338, %v2338
        %v2595 = vmul.f32 %v2339, %v2339
        %v2596 = vmul.f32 %v2340, %v2340
        %v2597 = vmul.f32 %v2341, %v2341
        %v2598 = vmul.f32 %v2342, %v2342
        %v2599 = vmul.f32 %v2343, %v2343
        %v2600 = vmul.f32 %v2344, %v2344
        %v2601 = vmul.f32 %v2345, %v2345
        %v2602 = vmul.f32 %v2346, %v2346
        %v2603 = vmul.f32 %v2347, %v2347
        %v2604 = vmul.f32 %v2348, %v2348
        %v2605 = vmul.f32 %v2349, %v2349
        %v2606 = vmul.f32 %v2350, %v2350
        %v2607 = vmul.f32 %v2351, %v2351
        %v2608 = vmul.f32 %v2352, %v2352
        %v2609 = vmul.f32 %v2353, %v2353
        %v2610 = vmul.f32 %v2354, %v2354
        %v2611 = vmul.f32 %v2355, %v2355
        %v2612 = vmul.f32 %v2356, %v2356
        %v2613 = vmul.f32 %v2357, %v2357
        %v2614 = vmul.f32 %v2358, %v2358
        %v2615 = vmul.f32 %v2359, %v2359
        %v2616 = vmul.f32 %v2360, %v2360
        %v2617 = vmul.f32 %v2361, %v2361
        %v2618 = vmul.f32 %v2362, %v2362
        %v2619 = vmul.f32 %v2363, %v2363
        %v2620 = vmul.f32 %v2364, %v2364
        %v2621 = vmul.f32 %v2365, %v2365
        %v2622 = vmul.f32 %v2366, %v2366
        %v2623 = vmul.f32 %v2367, %v2367
        %v2624 = vmul.f32 %v2368, %v2368
        %v2625 = vmul.f32 %v2369, %v2369
        %v2626 = vmul.f32 %v2370, %v2370
        %v2627 = vmul.f32 %v2371, %v2371
        %v2628 = vmul.f32 %v2372, %v2372
        %v2629 = vmul.f32 %v2373, %v2373
        %v2630 = vmul.f32 %v2374, %v2374
        %v2631 = vmul.f32 %v2375, %v2375
        %v2632 = vmul.f32 %v2376, %v2376
        %v2633 = vmul.f32 %v2377, %v2377
        %v2634 = vmul.f32 %v2378, %v2378
        %v2635 = vmul.f32 %v2379, %v2379
        %v2636 = vmul.f32 %v2380, %v2380
        %v2637 = vmul.f32 %v2381, %v2381
        %v2638 = vmul.f32 %v2382, %v2382
        %v2639 = vmul.f32 %v2383, %v2383
        %v2640 = vmul.f32 %v2384, %v2384
        %v2641 = vmul.f32 %v2385, %v2385
        %v2642 = vmul.f32 %v2386, %v2386
        %v2643 = vmul.f32 %v2387, %v2387
        %v2644 = vmul.f32 %v2388, %v2388
        %v2645 = vmul.f32 %v2389, %v2389
        %v2646 = vmul.f32 %v2390, %v2390
        %v2647 = vmul.f32 %v2391, %v2391
        %v2648 = vmul.f32 %v2392, %v2392
        %v2649 = vmul.f32 %v2393, %v2393
        %v2650 = vmul.f32 %v2394, %v2394
        %v2651 = vmul.f32 %v2395, %v2395
        %v2652 = vmul.f32 %v2396, %v2396
        %v2653 = vmul.f32 %v2397, %v2397
        %v2654 = vmul.f32 %v2398, %v2398
        %v2655 = vmul.f32 %v2399, %v2399
        %v2656 = vmul.f32 %v2400, %v2400
        %v2657 = vmul.f32 %v2401, %v2401
        %v2658 = vmul.f32 %v2402, %v2402
        %v2659 = vmul.f32 %v2403, %v2403
        %v2660 = vmul.f32 %v2404, %v2404
        %v2661 = vmul.f32 %v2405, %v2405
        %v2662 = vmul.f32 %v2406, %v2406
        %v2663 = vmul.f32 %v2407, %v2407
        %v2664 = vmul.f32 %v2408, %v2408
        %v2665 = vmul.f32 %v2409, %v2409
        %v2666 = vmul.f32 %v2410, %v2410
        %v2667 = vmul.f32 %v2411, %v2411
        %v2668 = vmul.f32 %v2412, %v2412
        %v2669 = vmul.f32 %v2413, %v2413
        %v2670 = vmul.f32 %v2414, %v2414
        %v2671 = vmul.f32 %v2415, %v2415
        %v2672 = vmul.f32 %v2416, %v2416
        %v2673 = vmul.f32 %v2417, %v2417
        %v2674 = vmul.f32 %v2418, %v2418
        %v2675 = vmul.f32 %v2419, %v2419
        %v2676 = vmul.f32 %v2420, %v2420
        %v2677 = vmul.f32 %v2421, %v2421
        %v2678 = vmul.f32 %v2422, %v2422
        %v2679 = vmul.f32 %v2423, %v2423
        %v2680 = vmul.f32 %v2424, %v2424
        %v2681 = vmul.f32 %v2425, %v2425
        %v2682 = vmul.f32 %v2426, %v2426
        %v2683 = vmul.f32 %v2427, %v2427
        %v2684 = vmul.f32 %v2428, %v2428
        %v2685 = vmul.f32 %v2429, %v2429
        %v2686 = vmul.f32 %v2430, %v2430
        %v2687 = vmul.f32 %v2431, %v2431
        %v2688 = vmul.f32 %v2432, %v2432
        %v2689 = vmul.f32 %v2433, %v2433
        %v2690 = vmul.f32 %v2434, %v2434
        %v2691 = vmul.f32 %v2435, %v2435
        %v2692 = vmul.f32 %v2436, %v2436
        %v2693 = vmul.f32 %v2437, %v2437
        %v2694 = vmul.f32 %v2438, %v2438
        %v2695 = vmul.f32 %v2439, %v2439
        %v2696 = vmul.f32 %v2440, %v2440
        %v2697 = vmul.f32 %v2441, %v2441
        %v2698 = vmul.f32 %v2442, %v2442
        %v2699 = vmul.f32 %v2443, %v2443
        %v2700 = vmul.f32 %v2444, %v2444
        %v2701 = vmul.f32 %v2445, %v2445
        %v2702 = vmul.f32 %v2446, %v2446
        %v2703 = vmul.f32 %v2447, %v2447
        %v2704 = vmul.f32 %v2448, %v2448
        %v2705 = vmul.f32 %v2449, %v2449
        %v2706 = vmul.f32 %v2450, %v2450
        %v2707 = vmul.f32 %v2451, %v2451
        %v2708 = vmul.f32 %v2452, %v2452
        %v2709 = vmul.f32 %v2453, %v2453
        %v2710 = vmul.f32 %v2454, %v2454
        %v2711 = vmul.f32 %v2455, %v2455
        %v2712 = vmul.f32 %v2456, %v2456
        %v2713 = vmul.f32 %v2457, %v2457
        %v2714 = vmul.f32 %v2458, %v2458
        %v2715 = vmul.f32 %v2459, %v2459
        %v2716 = vmul.f32 %v2460, %v2460
        %v2717 = vmul.f32 %v2461, %v2461
        %v2718 = vmul.f32 %v2462, %v2462
        %v2719 = vmul.f32 %v2463, %v2463
        %v2720 = vmul.f32 %v2464, %v2464
        %v2721 = vmul.f32 %v2465, %v2465
        %v2722 = vmul.f32 %v2466, %v2466
        %v2723 = vmul.f32 %v2467, %v2467
        %v2724 = vmul.f32 %v2468, %v2468
        %v2725 = vmul.f32 %v2469, %v2469
        %v2726 = vmul.f32 %v2470, %v2470
        %v2727 = vmul.f32 %v2471, %v2471
        %v2728 = vmul.f32 %v2472, %v2472
        %v2729 = vmul.f32 %v2473, %v2473
        %v2730 = vmul.f32 %v2474, %v2474
        %v2731 = vmul.f32 %v2475, %v2475
        %v2732 = vmul.f32 %v2476, %v2476
        %v2733 = vmul.f32 %v2477, %v2477
        %v2734 = vmul.f32 %v2478, %v2478
        %v2735 = vmul.f32 %v2479, %v2479
        %v2736 = vmul.f32 %v2480, %v2480
        %v2737 = vmul.f32 %v2481, %v2481
        %v2738 = vmul.f32 %v2482, %v2482
        %v2739 = vmul.f32 %v2483, %v2483
        %v2740 = vmul.f32 %v2484, %v2484
        %v2741 = vmul.f32 %v2485, %v2485
        %v2742 = vmul.f32 %v2486, %v2486
        %v2743 = vmul.f32 %v2487, %v2487
        %v2744 = vmul.f32 %v2488, %v2488
        %v2745 = vmul.f32 %v2489, %v2489
        %v2746 = vmul.f32 %v2490, %v2490
        %v2747 = vmul.f32 %v2491, %v2491
        %v2748 = vmul.f32 %v2492, %v2492
        %v2749 = vmul.f32 %v2493, %v2493
        %v2750 = vmul.f32 %v2494, %v2494
        %v2751 = vmul.f32 %v2495, %v2495
        %v2752 = vmul.f32 %v2496, %v2496
        %v2753 = vmul.f32 %v2497, %v2497
        %v2754 = vmul.f32 %v2498, %v2498
        %v2755 = vmul.f32 %v2499, %v2499
        %v2756 = vmul.f32 %v2500, %v2500
        %v2757 = vmul.f32 %v2501, %v2501
        %v2758 = vmul.f32 %v2502, %v2502
        %v2759 = vmul.f32 %v2503, %v2503
        %v2760 = vmul.f32 %v2504, %v2504
        %v2761 = vmul.f32 %v2505, %v2505
        %v2762 = vmul.f32 %v2506, %v2506
        %v2763 = vmul.f32 %v2507, %v2507
        %v2764 = vmul.f32 %v2508, %v2508
        %v2765 = vmul.f32 %v2509, %v2509
        %v2766 = vmul.f32 %v2510, %v2510
        %v2767 = vmul.f32 %v2511, %v2511
        %v2768 = vmul.f32 %v2512, %v2512
        %v2769 = vmul.f32 %v2513, %v2513
        %v2770 = vmul.f32 %v2514, %v2514
        %v2771 = vmul.f32 %v2515, %v2515
        %v2772 = vmul.f32 %v2516, %v2516
        %v2773 = vmul.f32 %v2517, %v2517
        %v2774 = vmul.f32 %v2518, %v2518
        %v2775 = vmul.f32 %v2519, %v2519
        %v2776 = vmul.f32 %v2520, %v2520
        %v2777 = vmul.f32 %v2521, %v2521
        %v2778 = vmul.f32 %v2522, %v2522
        %v2779 = vmul.f32 %v2523, %v2523
        %v2780 = vmul.f32 %v2524, %v2524
        %v2781 = vmul.f32 %v2525, %v2525
        %v2782 = vmul.f32 %v2526, %v2526
        %v2783 = vmul.f32 %v2527, %v2527
        %v2784 = vmul.f32 %v2528, %v2528
        %v2785 = vmul.f32 %v2529, %v2529
        %v2786 = vmul.f32 %v2530, %v2530
        %v2787 = vmul.f32 %v2531, %v2531
        %v2788 = vmul.f32 %v2532, %v2532
        %v2789 = vmul.f32 %v2533, %v2533
        %v2790 = vmul.f32 %v2534, %v2534
        %v2791 = vmul.f32 %v2535, %v2535
        %v2792 = vmul.f32 %v2536, %v2536
        %v2793 = vmul.f32 %v2537, %v2537
        %v2794 = vmul.f32 %v2538, %v2538
        %v2795 = vmul.f32 %v2539, %v2539
        %v2796 = vmul.f32 %v2540, %v2540
        %v2797 = vmul.f32 %v2541, %v2541
        %v2798 = vmul.f32 %v2542, %v2542
        %v2799 = vmul.f32 %v2543, %v2543
        %v2800 = vmul.f32 %v2544, %v2544
        %v2801 = vmul.f32 %v2545, %v2545
        %v2802 = vmul.f32 %v2546, %v2546
        %v2803 = vmul.f32 %v2547, %v2547
        %v2804 = vmul.f32 %v2548, %v2548
        %v2805 = vmul.f32 %v2549, %v2549
        %v2806 = vmul.f32 %v2550, %v2550
        %v2807 = vmul.f32 %v2551, %v2551
        %v2808 = vmul.f32 %v2552, %v2552
        %v2809 = vmul.f32 %v2553, %v2553
        %v2810 = vmul.f32 %v2554, %v2554
        %v2811 = vmul.f32 %v2555, %v2555
        %v2812 = vmul.f32 %v2556, %v2556
        %v2813 = vmul.f32 %v2557, %v2557
        %v2814 = vmul.f32 %v2558, %v2558
        %v2815 = vmul.f32 %v2559, %v2559
        %v2816 = vmul.f32 %v2560, %v2560
        %v2817 = vmul.f32 %v2561, %v2561
        %v2818 = vmul.f32 %v2562, %v2562
        %v2819 = vmul.f32 %v2563, %v2563
        %v2820 = vmul.f32 %v2564, %v2564
        %v2821 = vadd.f32 %v1785, %v2565
        %v2822 = vadd.f32 %v1786, %v2566
        %v2823 = vadd.f32 %v1787, %v2567
        %v2824 = vadd.f32 %v1788, %v2568
        %v2825 = vadd.f32 %v1789, %v2569
        %v2826 = vadd.f32 %v1790, %v2570
        %v2827 = vadd.f32 %v1791, %v2571
        %v2828 = vadd.f32 %v1792, %v2572
        %v2829 = vadd.f32 %v1793, %v2573
        %v2830 = vadd.f32 %v1794, %v2574
        %v2831 = vadd.f32 %v1795, %v2575
        %v2832 = vadd.f32 %v1796, %v2576
        %v2833 = vadd.f32 %v1797, %v2577
        %v2834 = vadd.f32 %v1798, %v2578
        %v2835 = vadd.f32 %v1799, %v2579
        %v2836 = vadd.f32 %v1800, %v2580
        %v2837 = vadd.f32 %v1801, %v2581
        %v2838 = vadd.f32 %v1802, %v2582
        %v2839 = vadd.f32 %v1803, %v2583
        %v2840 = vadd.f32 %v1804, %v2584
        %v2841 = vadd.f32 %v1805, %v2585
        %v2842 = vadd.f32 %v1806, %v2586
        %v2843 = vadd.f32 %v1807, %v2587
        %v2844 = vadd.f32 %v1808, %v2588
        %v2845 = vadd.f32 %v1809, %v2589
        %v2846 = vadd.f32 %v1810, %v2590
        %v2847 = vadd.f32 %v1811, %v2591
        %v2848 = vadd.f32 %v1812, %v2592
        %v2849 = vadd.f32 %v1813, %v2593
        %v2850 = vadd.f32 %v1814, %v2594
        %v2851 = vadd.f32 %v1815, %v2595
        %v2852 = vadd.f32 %v1816, %v2596
        %v2853 = vadd.f32 %v1817, %v2597
        %v2854 = vadd.f32 %v1818, %v2598
        %v2855 = vadd.f32 %v1819, %v2599
        %v2856 = vadd.f32 %v1820, %v2600
        %v2857 = vadd.f32 %v1821, %v2601
        %v2858 = vadd.f32 %v1822, %v2602
        %v2859 = vadd.f32 %v1823, %v2603
        %v2860 = vadd.f32 %v1824, %v2604
        %v2861 = vadd.f32 %v1825, %v2605
        %v2862 = vadd.f32 %v1826, %v2606
        %v2863 = vadd.f32 %v1827, %v2607
        %v2864 = vadd.f32 %v1828, %v2608
        %v2865 = vadd.f32 %v1829, %v2609
        %v2866 = vadd.f32 %v1830, %v2610
        %v2867 = vadd.f32 %v1831, %v2611
        %v2868 = vadd.f32 %v1832, %v2612
        %v2869 = vadd.f32 %v1833, %v2613
        %v2870 = vadd.f32 %v1834, %v2614
        %v2871 = vadd.f32 %v1835, %v2615
        %v2872 = vadd.f32 %v1836, %v2616
        %v2873 = vadd.f32 %v1837, %v2617
        %v2874 = vadd.f32 %v1838, %v2618
        %v2875 = vadd.f32 %v1839, %v2619
        %v2876 = vadd.f32 %v1840, %v2620
        %v2877 = vadd.f32 %v1841, %v2621
        %v2878 = vadd.f32 %v1842, %v2622
        %v2879 = vadd.f32 %v1843, %v2623
        %v2880 = vadd.f32 %v1844, %v2624
        %v2881 = vadd.f32 %v1845, %v2625
        %v2882 = vadd.f32 %v1846, %v2626
        %v2883 = vadd.f32 %v1847, %v2627
        %v2884 = vadd.f32 %v1848, %v2628
        %v2885 = vadd.f32 %v1849, %v2629
        %v2886 = vadd.f32 %v1850, %v2630
        %v2887 = vadd.f32 %v1851, %v2631
        %v2888 = vadd.f32 %v1852, %v2632
        %v2889 = vadd.f32 %v1853, %v2633
        %v2890 = vadd.f32 %v1854, %v2634
        %v2891 = vadd.f32 %v1855, %v2635
        %v2892 = vadd.f32 %v1856, %v2636
        %v2893 = vadd.f32 %v1857, %v2637
        %v2894 = vadd.f32 %v1858, %v2638
        %v2895 = vadd.f32 %v1859, %v2639
        %v2896 = vadd.f32 %v1860, %v2640
        %v2897 = vadd.f32 %v1861, %v2641
        %v2898 = vadd.f32 %v1862, %v2642
        %v2899 = vadd.f32 %v1863, %v2643
        %v2900 = vadd.f32 %v1864, %v2644
        %v2901 = vadd.f32 %v1865, %v2645
        %v2902 = vadd.f32 %v1866, %v2646
        %v2903 = vadd.f32 %v1867, %v2647
        %v2904 = vadd.f32 %v1868, %v2648
        %v2905 = vadd.f32 %v1869, %v2649
        %v2906 = vadd.f32 %v1870, %v2650
        %v2907 = vadd.f32 %v1871, %v2651
        %v2908 = vadd.f32 %v1872, %v2652
        %v2909 = vadd.f32 %v1873, %v2653
        %v2910 = vadd.f32 %v1874, %v2654
        %v2911 = vadd.f32 %v1875, %v2655
        %v2912 = vadd.f32 %v1876, %v2656
        %v2913 = vadd.f32 %v1877, %v2657
        %v2914 = vadd.f32 %v1878, %v2658
        %v2915 = vadd.f32 %v1879, %v2659
        %v2916 = vadd.f32 %v1880, %v2660
        %v2917 = vadd.f32 %v1881, %v2661
        %v2918 = vadd.f32 %v1882, %v2662
        %v2919 = vadd.f32 %v1883, %v2663
        %v2920 = vadd.f32 %v1884, %v2664
        %v2921 = vadd.f32 %v1885, %v2665
        %v2922 = vadd.f32 %v1886, %v2666
        %v2923 = vadd.f32 %v1887, %v2667
        %v2924 = vadd.f32 %v1888, %v2668
        %v2925 = vadd.f32 %v1889, %v2669
        %v2926 = vadd.f32 %v1890, %v2670
        %v2927 = vadd.f32 %v1891, %v2671
        %v2928 = vadd.f32 %v1892, %v2672
        %v2929 = vadd.f32 %v1893, %v2673
        %v2930 = vadd.f32 %v1894, %v2674
        %v2931 = vadd.f32 %v1895, %v2675
        %v2932 = vadd.f32 %v1896, %v2676
        %v2933 = vadd.f32 %v1897, %v2677
        %v2934 = vadd.f32 %v1898, %v2678
        %v2935 = vadd.f32 %v1899, %v2679
        %v2936 = vadd.f32 %v1900, %v2680
        %v2937 = vadd.f32 %v1901, %v2681
        %v2938 = vadd.f32 %v1902, %v2682
        %v2939 = vadd.f32 %v1903, %v2683
        %v2940 = vadd.f32 %v1904, %v2684
        %v2941 = vadd.f32 %v1905, %v2685
        %v2942 = vadd.f32 %v1906, %v2686
        %v2943 = vadd.f32 %v1907, %v2687
        %v2944 = vadd.f32 %v1908, %v2688
        %v2945 = vadd.f32 %v1909, %v2689
        %v2946 = vadd.f32 %v1910, %v2690
        %v2947 = vadd.f32 %v1911, %v2691
        %v2948 = vadd.f32 %v1912, %v2692
        %v2949 = vadd.f32 %v1913, %v2693
        %v2950 = vadd.f32 %v1914, %v2694
        %v2951 = vadd.f32 %v1915, %v2695
        %v2952 = vadd.f32 %v1916, %v2696
        %v2953 = vadd.f32 %v1917, %v2697
        %v2954 = vadd.f32 %v1918, %v2698
        %v2955 = vadd.f32 %v1919, %v2699
        %v2956 = vadd.f32 %v1920, %v2700
        %v2957 = vadd.f32 %v1921, %v2701
        %v2958 = vadd.f32 %v1922, %v2702
        %v2959 = vadd.f32 %v1923, %v2703
        %v2960 = vadd.f32 %v1924, %v2704
        %v2961 = vadd.f32 %v1925, %v2705
        %v2962 = vadd.f32 %v1926, %v2706
        %v2963 = vadd.f32 %v1927, %v2707
        %v2964 = vadd.f32 %v1928, %v2708
        %v2965 = vadd.f32 %v1929, %v2709
        %v2966 = vadd.f32 %v1930, %v2710
        %v2967 = vadd.f32 %v1931, %v2711
        %v2968 = vadd.f32 %v1932, %v2712
        %v2969 = vadd.f32 %v1933, %v2713
        %v2970 = vadd.f32 %v1934, %v2714
        %v2971 = vadd.f32 %v1935, %v2715
        %v2972 = vadd.f32 %v1936, %v2716
        %v2973 = vadd.f32 %v1937, %v2717
        %v2974 = vadd.f32 %v1938, %v2718
        %v2975 = vadd.f32 %v1939, %v2719
        %v2976 = vadd.f32 %v1940, %v2720
        %v2977 = vadd.f32 %v1941, %v2721
        %v2978 = vadd.f32 %v1942, %v2722
        %v2979 = vadd.f32 %v1943, %v2723
        %v2980 = vadd.f32 %v1944, %v2724
        %v2981 = vadd.f32 %v1945, %v2725
        %v2982 = vadd.f32 %v1946, %v2726
        %v2983 = vadd.f32 %v1947, %v2727
        %v2984 = vadd.f32 %v1948, %v2728
        %v2985 = vadd.f32 %v1949, %v2729
        %v2986 = vadd.f32 %v1950, %v2730
        %v2987 = vadd.f32 %v1951, %v2731
        %v2988 = vadd.f32 %v1952, %v2732
        %v2989 = vadd.f32 %v1953, %v2733
        %v2990 = vadd.f32 %v1954, %v2734
        %v2991 = vadd.f32 %v1955, %v2735
        %v2992 = vadd.f32 %v1956, %v2736
        %v2993 = vadd.f32 %v1957, %v2737
        %v2994 = vadd.f32 %v1958, %v2738
        %v2995 = vadd.f32 %v1959, %v2739
        %v2996 = vadd.f32 %v1960, %v2740
        %v2997 = vadd.f32 %v1961, %v2741
        %v2998 = vadd.f32 %v1962, %v2742
        %v2999 = vadd.f32 %v1963, %v2743
        %v3000 = vadd.f32 %v1964, %v2744
        %v3001 = vadd.f32 %v1965, %v2745
        %v3002 = vadd.f32 %v1966, %v2746
        %v3003 = vadd.f32 %v1967, %v2747
        %v3004 = vadd.f32 %v1968, %v2748
        %v3005 = vadd.f32 %v1969, %v2749
        %v3006 = vadd.f32 %v1970, %v2750
        %v3007 = vadd.f32 %v1971, %v2751
        %v3008 = vadd.f32 %v1972, %v2752
        %v3009 = vadd.f32 %v1973, %v2753
        %v3010 = vadd.f32 %v1974, %v2754
        %v3011 = vadd.f32 %v1975, %v2755
        %v3012 = vadd.f32 %v1976, %v2756
        %v3013 = vadd.f32 %v1977, %v2757
        %v3014 = vadd.f32 %v1978, %v2758
        %v3015 = vadd.f32 %v1979, %v2759
        %v3016 = vadd.f32 %v1980, %v2760
        %v3017 = vadd.f32 %v1981, %v2761
        %v3018 = vadd.f32 %v1982, %v2762
        %v3019 = vadd.f32 %v1983, %v2763
        %v3020 = vadd.f32 %v1984, %v2764
        %v3021 = vadd.f32 %v1985, %v2765
        %v3022 = vadd.f32 %v1986, %v2766
        %v3023 = vadd.f32 %v1987, %v2767
        %v3024 = vadd.f32 %v1988, %v2768
        %v3025 = vadd.f32 %v1989, %v2769
        %v3026 = vadd.f32 %v1990, %v2770
        %v3027 = vadd.f32 %v1991, %v2771
        %v3028 = vadd.f32 %v1992, %v2772
        %v3029 = vadd.f32 %v1993, %v2773
        %v3030 = vadd.f32 %v1994, %v2774
        %v3031 = vadd.f32 %v1995, %v2775
        %v3032 = vadd.f32 %v1996, %v2776
        %v3033 = vadd.f32 %v1997, %v2777
        %v3034 = vadd.f32 %v1998, %v2778
        %v3035 = vadd.f32 %v1999, %v2779
        %v3036 = vadd.f32 %v2000, %v2780
        %v3037 = vadd.f32 %v2001, %v2781
        %v3038 = vadd.f32 %v2002, %v2782
        %v3039 = vadd.f32 %v2003, %v2783
        %v3040 = vadd.f32 %v2004, %v2784
        %v3041 = vadd.f32 %v2005, %v2785
        %v3042 = vadd.f32 %v2006, %v2786
        %v3043 = vadd.f32 %v2007, %v2787
        %v3044 = vadd.f32 %v2008, %v2788
        %v3045 = vadd.f32 %v2009, %v2789
        %v3046 = vadd.f32 %v2010, %v2790
        %v3047 = vadd.f32 %v2011, %v2791
        %v3048 = vadd.f32 %v2012, %v2792
        %v3049 = vadd.f32 %v2013, %v2793
        %v3050 = vadd.f32 %v2014, %v2794
        %v3051 = vadd.f32 %v2015, %v2795
        %v3052 = vadd.f32 %v2016, %v2796
        %v3053 = vadd.f32 %v2017, %v2797
        %v3054 = vadd.f32 %v2018, %v2798
        %v3055 = vadd.f32 %v2019, %v2799
        %v3056 = vadd.f32 %v2020, %v2800
        %v3057 = vadd.f32 %v2021, %v2801
        %v3058 = vadd.f32 %v2022, %v2802
        %v3059 = vadd.f32 %v2023, %v2803
        %v3060 = vadd.f32 %v2024, %v2804
        %v3061 = vadd.f32 %v2025, %v2805
        %v3062 = vadd.f32 %v2026, %v2806
        %v3063 = vadd.f32 %v2027, %v2807
        %v3064 = vadd.f32 %v2028, %v2808
        %v3065 = vadd.f32 %v2029, %v2809
        %v3066 = vadd.f32 %v2030, %v2810
        %v3067 = vadd.f32 %v2031, %v2811
        %v3068 = vadd.f32 %v2032, %v2812
        %v3069 = vadd.f32 %v2033, %v2813
        %v3070 = vadd.f32 %v2034, %v2814
        %v3071 = vadd.f32 %v2035, %v2815
        %v3072 = vadd.f32 %v2036, %v2816
        %v3073 = vadd.f32 %v2037, %v2817
        %v3074 = vadd.f32 %v2038, %v2818
        %v3075 = vadd.f32 %v2039, %v2819
        %v3076 = vadd.f32 %v2040, %v2820
        %3077 = vset.pattern.permute.xlu0 2
        %3078 = vperm.xlu0 %3077, %v1129
        %v3079 = vpop.permute.xlu0 %3078
        %3081 = vset.pattern.permute.xlu0 2
        %3082 = vperm.xlu0 %3081, %v1130
        %v3083 = vpop.permute.xlu0 %3082
        %3085 = vset.pattern.permute.xlu0 2
        %3086 = vperm.xlu0 %3085, %v1131
        %v3087 = vpop.permute.xlu0 %3086
        %3089 = vset.pattern.permute.xlu0 2
        %3090 = vperm.xlu0 %3089, %v1132
        %v3091 = vpop.permute.xlu0 %3090
        %3093 = vset.pattern.permute.xlu0 2
        %3094 = vperm.xlu0 %3093, %v1133
        %v3095 = vpop.permute.xlu0 %3094
        %3097 = vset.pattern.permute.xlu0 2
        %3098 = vperm.xlu0 %3097, %v1134
        %v3099 = vpop.permute.xlu0 %3098
        %3101 = vset.pattern.permute.xlu0 2
        %3102 = vperm.xlu0 %3101, %v1135
        %v3103 = vpop.permute.xlu0 %3102
        %3105 = vset.pattern.permute.xlu0 2
        %3106 = vperm.xlu0 %3105, %v1136
        %v3107 = vpop.permute.xlu0 %3106
        %3109 = vset.pattern.permute.xlu0 2
        %3110 = vperm.xlu0 %3109, %v1137
        %v3111 = vpop.permute.xlu0 %3110
        %3113 = vset.pattern.permute.xlu0 2
        %3114 = vperm.xlu0 %3113, %v1138
        %v3115 = vpop.permute.xlu0 %3114
        %3117 = vset.pattern.permute.xlu0 2
        %3118 = vperm.xlu0 %3117, %v1139
        %v3119 = vpop.permute.xlu0 %3118
        %3121 = vset.pattern.permute.xlu0 2
        %3122 = vperm.xlu0 %3121, %v1140
        %v3123 = vpop.permute.xlu0 %3122
        %3125 = vset.pattern.permute.xlu0 2
        %3126 = vperm.xlu0 %3125, %v1141
        %v3127 = vpop.permute.xlu0 %3126
        %3129 = vset.pattern.permute.xlu0 2
        %3130 = vperm.xlu0 %3129, %v1142
        %v3131 = vpop.permute.xlu0 %3130
        %3133 = vset.pattern.permute.xlu0 2
        %3134 = vperm.xlu0 %3133, %v1143
        %v3135 = vpop.permute.xlu0 %3134
        %3137 = vset.pattern.permute.xlu0 2
        %3138 = vperm.xlu0 %3137, %v1144
        %v3139 = vpop.permute.xlu0 %3138
        %3141 = vset.pattern.permute.xlu0 2
        %3142 = vperm.xlu0 %3141, %v1145
        %v3143 = vpop.permute.xlu0 %3142
        %3145 = vset.pattern.permute.xlu0 2
        %3146 = vperm.xlu0 %3145, %v1146
        %v3147 = vpop.permute.xlu0 %3146
        %3149 = vset.pattern.permute.xlu0 2
        %3150 = vperm.xlu0 %3149, %v1147
        %v3151 = vpop.permute.xlu0 %3150
        %3153 = vset.pattern.permute.xlu0 2
        %3154 = vperm.xlu0 %3153, %v1148
        %v3155 = vpop.permute.xlu0 %3154
        %3157 = vset.pattern.permute.xlu0 2
        %3158 = vperm.xlu0 %3157, %v1149
        %v3159 = vpop.permute.xlu0 %3158
        %3161 = vset.pattern.permute.xlu0 2
        %3162 = vperm.xlu0 %3161, %v1150
        %v3163 = vpop.permute.xlu0 %3162
        %3165 = vset.pattern.permute.xlu0 2
        %3166 = vperm.xlu0 %3165, %v1151
        %v3167 = vpop.permute.xlu0 %3166
        %3169 = vset.pattern.permute.xlu0 2
        %3170 = vperm.xlu0 %3169, %v1152
        %v3171 = vpop.permute.xlu0 %3170
        %3173 = vset.pattern.permute.xlu0 2
        %3174 = vperm.xlu0 %3173, %v1153
        %v3175 = vpop.permute.xlu0 %3174
        %3177 = vset.pattern.permute.xlu0 2
        %3178 = vperm.xlu0 %3177, %v1154
        %v3179 = vpop.permute.xlu0 %3178
        %3181 = vset.pattern.permute.xlu0 2
        %3182 = vperm.xlu0 %3181, %v1155
        %v3183 = vpop.permute.xlu0 %3182
        %3185 = vset.pattern.permute.xlu0 2
        %3186 = vperm.xlu0 %3185, %v1156
        %v3187 = vpop.permute.xlu0 %3186
        %3189 = vset.pattern.permute.xlu0 2
        %3190 = vperm.xlu0 %3189, %v1157
        %v3191 = vpop.permute.xlu0 %3190
        %3193 = vset.pattern.permute.xlu0 2
        %3194 = vperm.xlu0 %3193, %v1158
        %v3195 = vpop.permute.xlu0 %3194
        %3197 = vset.pattern.permute.xlu0 2
        %3198 = vperm.xlu0 %3197, %v1159
        %v3199 = vpop.permute.xlu0 %3198
        %3201 = vset.pattern.permute.xlu0 2
        %3202 = vperm.xlu0 %3201, %v1160
        %v3203 = vpop.permute.xlu0 %3202
        %3205 = vset.pattern.permute.xlu0 2
        %3206 = vperm.xlu0 %3205, %v1161
        %v3207 = vpop.permute.xlu0 %3206
        %3209 = vset.pattern.permute.xlu0 2
        %3210 = vperm.xlu0 %3209, %v1162
        %v3211 = vpop.permute.xlu0 %3210
        %3213 = vset.pattern.permute.xlu0 2
        %3214 = vperm.xlu0 %3213, %v1163
        %v3215 = vpop.permute.xlu0 %3214
        %3217 = vset.pattern.permute.xlu0 2
        %3218 = vperm.xlu0 %3217, %v1164
        %v3219 = vpop.permute.xlu0 %3218
        %3221 = vset.pattern.permute.xlu0 2
        %3222 = vperm.xlu0 %3221, %v1165
        %v3223 = vpop.permute.xlu0 %3222
        %3225 = vset.pattern.permute.xlu0 2
        %3226 = vperm.xlu0 %3225, %v1166
        %v3227 = vpop.permute.xlu0 %3226
        %3229 = vset.pattern.permute.xlu0 2
        %3230 = vperm.xlu0 %3229, %v1167
        %v3231 = vpop.permute.xlu0 %3230
        %3233 = vset.pattern.permute.xlu0 2
        %3234 = vperm.xlu0 %3233, %v1168
        %v3235 = vpop.permute.xlu0 %3234
        %3237 = vset.pattern.permute.xlu0 2
        %3238 = vperm.xlu0 %3237, %v1169
        %v3239 = vpop.permute.xlu0 %3238
        %3241 = vset.pattern.permute.xlu0 2
        %3242 = vperm.xlu0 %3241, %v1170
        %v3243 = vpop.permute.xlu0 %3242
        %3245 = vset.pattern.permute.xlu0 2
        %3246 = vperm.xlu0 %3245, %v1171
        %v3247 = vpop.permute.xlu0 %3246
        %3249 = vset.pattern.permute.xlu0 2
        %3250 = vperm.xlu0 %3249, %v1172
        %v3251 = vpop.permute.xlu0 %3250
        %3253 = vset.pattern.permute.xlu0 2
        %3254 = vperm.xlu0 %3253, %v1173
        %v3255 = vpop.permute.xlu0 %3254
        %3257 = vset.pattern.permute.xlu0 2
        %3258 = vperm.xlu0 %3257, %v1174
        %v3259 = vpop.permute.xlu0 %3258
        %3261 = vset.pattern.permute.xlu0 2
        %3262 = vperm.xlu0 %3261, %v1175
        %v3263 = vpop.permute.xlu0 %3262
        %3265 = vset.pattern.permute.xlu0 2
        %3266 = vperm.xlu0 %3265, %v1176
        %v3267 = vpop.permute.xlu0 %3266
        %3269 = vset.pattern.permute.xlu0 2
        %3270 = vperm.xlu0 %3269, %v1177
        %v3271 = vpop.permute.xlu0 %3270
        %3273 = vset.pattern.permute.xlu0 2
        %3274 = vperm.xlu0 %3273, %v1178
        %v3275 = vpop.permute.xlu0 %3274
        %3277 = vset.pattern.permute.xlu0 2
        %3278 = vperm.xlu0 %3277, %v1179
        %v3279 = vpop.permute.xlu0 %3278
        %3281 = vset.pattern.permute.xlu0 2
        %3282 = vperm.xlu0 %3281, %v1180
        %v3283 = vpop.permute.xlu0 %3282
        %3285 = vset.pattern.permute.xlu0 2
        %3286 = vperm.xlu0 %3285, %v1181
        %v3287 = vpop.permute.xlu0 %3286
        %3289 = vset.pattern.permute.xlu0 2
        %3290 = vperm.xlu0 %3289, %v1182
        %v3291 = vpop.permute.xlu0 %3290
        %3293 = vset.pattern.permute.xlu0 2
        %3294 = vperm.xlu0 %3293, %v1183
        %v3295 = vpop.permute.xlu0 %3294
        %3297 = vset.pattern.permute.xlu0 2
        %3298 = vperm.xlu0 %3297, %v1184
        %v3299 = vpop.permute.xlu0 %3298
        %3301 = vset.pattern.permute.xlu0 2
        %3302 = vperm.xlu0 %3301, %v1185
        %v3303 = vpop.permute.xlu0 %3302
        %3305 = vset.pattern.permute.xlu0 2
        %3306 = vperm.xlu0 %3305, %v1186
        %v3307 = vpop.permute.xlu0 %3306
        %3309 = vset.pattern.permute.xlu0 2
        %3310 = vperm.xlu0 %3309, %v1187
        %v3311 = vpop.permute.xlu0 %3310
        %3313 = vset.pattern.permute.xlu0 2
        %3314 = vperm.xlu0 %3313, %v1188
        %v3315 = vpop.permute.xlu0 %3314
        %3317 = vset.pattern.permute.xlu0 2
        %3318 = vperm.xlu0 %3317, %v1189
        %v3319 = vpop.permute.xlu0 %3318
        %3321 = vset.pattern.permute.xlu0 2
        %3322 = vperm.xlu0 %3321, %v1190
        %v3323 = vpop.permute.xlu0 %3322
        %3325 = vset.pattern.permute.xlu0 2
        %3326 = vperm.xlu0 %3325, %v1191
        %v3327 = vpop.permute.xlu0 %3326
        %3329 = vset.pattern.permute.xlu0 2
        %3330 = vperm.xlu0 %3329, %v1192
        %v3331 = vpop.permute.xlu0 %3330
        %v3333 = vperm.slane %v1193, 2
        %v3334 = vperm.slane %v1193, 6
        %v3335 = vperm.slane %v1194, 2
        %v3336 = vperm.slane %v1194, 6
        %v3341 = vperm.slane %v3333, 2
        %v3342 = vperm.slane %v3334, 2
        %v3343 = vperm.slane %v3335, 2
        %v3344 = vperm.slane %v3336, 2
        %v3345 = vsub.f32 %v3079, %v3341
        %v3346 = vsub.f32 %v3079, %v3342
        %v3347 = vsub.f32 %v3079, %v3343
        %v3348 = vsub.f32 %v3079, %v3344
        %v3349 = vsub.f32 %v3083, %v3341
        %v3350 = vsub.f32 %v3083, %v3342
        %v3351 = vsub.f32 %v3083, %v3343
        %v3352 = vsub.f32 %v3083, %v3344
        %v3353 = vsub.f32 %v3087, %v3341
        %v3354 = vsub.f32 %v3087, %v3342
        %v3355 = vsub.f32 %v3087, %v3343
        %v3356 = vsub.f32 %v3087, %v3344
        %v3357 = vsub.f32 %v3091, %v3341
        %v3358 = vsub.f32 %v3091, %v3342
        %v3359 = vsub.f32 %v3091, %v3343
        %v3360 = vsub.f32 %v3091, %v3344
        %v3361 = vsub.f32 %v3095, %v3341
        %v3362 = vsub.f32 %v3095, %v3342
        %v3363 = vsub.f32 %v3095, %v3343
        %v3364 = vsub.f32 %v3095, %v3344
        %v3365 = vsub.f32 %v3099, %v3341
        %v3366 = vsub.f32 %v3099, %v3342
        %v3367 = vsub.f32 %v3099, %v3343
        %v3368 = vsub.f32 %v3099, %v3344
        %v3369 = vsub.f32 %v3103, %v3341
        %v3370 = vsub.f32 %v3103, %v3342
        %v3371 = vsub.f32 %v3103, %v3343
        %v3372 = vsub.f32 %v3103, %v3344
        %v3373 = vsub.f32 %v3107, %v3341
        %v3374 = vsub.f32 %v3107, %v3342
        %v3375 = vsub.f32 %v3107, %v3343
        %v3376 = vsub.f32 %v3107, %v3344
        %v3377 = vsub.f32 %v3111, %v3341
        %v3378 = vsub.f32 %v3111, %v3342
        %v3379 = vsub.f32 %v3111, %v3343
        %v3380 = vsub.f32 %v3111, %v3344
        %v3381 = vsub.f32 %v3115, %v3341
        %v3382 = vsub.f32 %v3115, %v3342
        %v3383 = vsub.f32 %v3115, %v3343
        %v3384 = vsub.f32 %v3115, %v3344
        %v3385 = vsub.f32 %v3119, %v3341
        %v3386 = vsub.f32 %v3119, %v3342
        %v3387 = vsub.f32 %v3119, %v3343
        %v3388 = vsub.f32 %v3119, %v3344
        %v3389 = vsub.f32 %v3123, %v3341
        %v3390 = vsub.f32 %v3123, %v3342
        %v3391 = vsub.f32 %v3123, %v3343
        %v3392 = vsub.f32 %v3123, %v3344
        %v3393 = vsub.f32 %v3127, %v3341
        %v3394 = vsub.f32 %v3127, %v3342
        %v3395 = vsub.f32 %v3127, %v3343
        %v3396 = vsub.f32 %v3127, %v3344
        %v3397 = vsub.f32 %v3131, %v3341
        %v3398 = vsub.f32 %v3131, %v3342
        %v3399 = vsub.f32 %v3131, %v3343
        %v3400 = vsub.f32 %v3131, %v3344
        %v3401 = vsub.f32 %v3135, %v3341
        %v3402 = vsub.f32 %v3135, %v3342
        %v3403 = vsub.f32 %v3135, %v3343
        %v3404 = vsub.f32 %v3135, %v3344
        %v3405 = vsub.f32 %v3139, %v3341
        %v3406 = vsub.f32 %v3139, %v3342
        %v3407 = vsub.f32 %v3139, %v3343
        %v3408 = vsub.f32 %v3139, %v3344
        %v3409 = vsub.f32 %v3143, %v3341
        %v3410 = vsub.f32 %v3143, %v3342
        %v3411 = vsub.f32 %v3143, %v3343
        %v3412 = vsub.f32 %v3143, %v3344
        %v3413 = vsub.f32 %v3147, %v3341
        %v3414 = vsub.f32 %v3147, %v3342
        %v3415 = vsub.f32 %v3147, %v3343
        %v3416 = vsub.f32 %v3147, %v3344
        %v3417 = vsub.f32 %v3151, %v3341
        %v3418 = vsub.f32 %v3151, %v3342
        %v3419 = vsub.f32 %v3151, %v3343
        %v3420 = vsub.f32 %v3151, %v3344
        %v3421 = vsub.f32 %v3155, %v3341
        %v3422 = vsub.f32 %v3155, %v3342
        %v3423 = vsub.f32 %v3155, %v3343
        %v3424 = vsub.f32 %v3155, %v3344
        %v3425 = vsub.f32 %v3159, %v3341
        %v3426 = vsub.f32 %v3159, %v3342
        %v3427 = vsub.f32 %v3159, %v3343
        %v3428 = vsub.f32 %v3159, %v3344
        %v3429 = vsub.f32 %v3163, %v3341
        %v3430 = vsub.f32 %v3163, %v3342
        %v3431 = vsub.f32 %v3163, %v3343
        %v3432 = vsub.f32 %v3163, %v3344
        %v3433 = vsub.f32 %v3167, %v3341
        %v3434 = vsub.f32 %v3167, %v3342
        %v3435 = vsub.f32 %v3167, %v3343
        %v3436 = vsub.f32 %v3167, %v3344
        %v3437 = vsub.f32 %v3171, %v3341
        %v3438 = vsub.f32 %v3171, %v3342
        %v3439 = vsub.f32 %v3171, %v3343
        %v3440 = vsub.f32 %v3171, %v3344
        %v3441 = vsub.f32 %v3175, %v3341
        %v3442 = vsub.f32 %v3175, %v3342
        %v3443 = vsub.f32 %v3175, %v3343
        %v3444 = vsub.f32 %v3175, %v3344
        %v3445 = vsub.f32 %v3179, %v3341
        %v3446 = vsub.f32 %v3179, %v3342
        %v3447 = vsub.f32 %v3179, %v3343
        %v3448 = vsub.f32 %v3179, %v3344
        %v3449 = vsub.f32 %v3183, %v3341
        %v3450 = vsub.f32 %v3183, %v3342
        %v3451 = vsub.f32 %v3183, %v3343
        %v3452 = vsub.f32 %v3183, %v3344
        %v3453 = vsub.f32 %v3187, %v3341
        %v3454 = vsub.f32 %v3187, %v3342
        %v3455 = vsub.f32 %v3187, %v3343
        %v3456 = vsub.f32 %v3187, %v3344
        %v3457 = vsub.f32 %v3191, %v3341
        %v3458 = vsub.f32 %v3191, %v3342
        %v3459 = vsub.f32 %v3191, %v3343
        %v3460 = vsub.f32 %v3191, %v3344
        %v3461 = vsub.f32 %v3195, %v3341
        %v3462 = vsub.f32 %v3195, %v3342
        %v3463 = vsub.f32 %v3195, %v3343
        %v3464 = vsub.f32 %v3195, %v3344
        %v3465 = vsub.f32 %v3199, %v3341
        %v3466 = vsub.f32 %v3199, %v3342
        %v3467 = vsub.f32 %v3199, %v3343
        %v3468 = vsub.f32 %v3199, %v3344
        %v3469 = vsub.f32 %v3203, %v3341
        %v3470 = vsub.f32 %v3203, %v3342
        %v3471 = vsub.f32 %v3203, %v3343
        %v3472 = vsub.f32 %v3203, %v3344
        %v3473 = vsub.f32 %v3207, %v3341
        %v3474 = vsub.f32 %v3207, %v3342
        %v3475 = vsub.f32 %v3207, %v3343
        %v3476 = vsub.f32 %v3207, %v3344
        %v3477 = vsub.f32 %v3211, %v3341
        %v3478 = vsub.f32 %v3211, %v3342
        %v3479 = vsub.f32 %v3211, %v3343
        %v3480 = vsub.f32 %v3211, %v3344
        %v3481 = vsub.f32 %v3215, %v3341
        %v3482 = vsub.f32 %v3215, %v3342
        %v3483 = vsub.f32 %v3215, %v3343
        %v3484 = vsub.f32 %v3215, %v3344
        %v3485 = vsub.f32 %v3219, %v3341
        %v3486 = vsub.f32 %v3219, %v3342
        %v3487 = vsub.f32 %v3219, %v3343
        %v3488 = vsub.f32 %v3219, %v3344
        %v3489 = vsub.f32 %v3223, %v3341
        %v3490 = vsub.f32 %v3223, %v3342
        %v3491 = vsub.f32 %v3223, %v3343
        %v3492 = vsub.f32 %v3223, %v3344
        %v3493 = vsub.f32 %v3227, %v3341
        %v3494 = vsub.f32 %v3227, %v3342
        %v3495 = vsub.f32 %v3227, %v3343
        %v3496 = vsub.f32 %v3227, %v3344
        %v3497 = vsub.f32 %v3231, %v3341
        %v3498 = vsub.f32 %v3231, %v3342
        %v3499 = vsub.f32 %v3231, %v3343
        %v3500 = vsub.f32 %v3231, %v3344
        %v3501 = vsub.f32 %v3235, %v3341
        %v3502 = vsub.f32 %v3235, %v3342
        %v3503 = vsub.f32 %v3235, %v3343
        %v3504 = vsub.f32 %v3235, %v3344
        %v3505 = vsub.f32 %v3239, %v3341
        %v3506 = vsub.f32 %v3239, %v3342
        %v3507 = vsub.f32 %v3239, %v3343
        %v3508 = vsub.f32 %v3239, %v3344
        %v3509 = vsub.f32 %v3243, %v3341
        %v3510 = vsub.f32 %v3243, %v3342
        %v3511 = vsub.f32 %v3243, %v3343
        %v3512 = vsub.f32 %v3243, %v3344
        %v3513 = vsub.f32 %v3247, %v3341
        %v3514 = vsub.f32 %v3247, %v3342
        %v3515 = vsub.f32 %v3247, %v3343
        %v3516 = vsub.f32 %v3247, %v3344
        %v3517 = vsub.f32 %v3251, %v3341
        %v3518 = vsub.f32 %v3251, %v3342
        %v3519 = vsub.f32 %v3251, %v3343
        %v3520 = vsub.f32 %v3251, %v3344
        %v3521 = vsub.f32 %v3255, %v3341
        %v3522 = vsub.f32 %v3255, %v3342
        %v3523 = vsub.f32 %v3255, %v3343
        %v3524 = vsub.f32 %v3255, %v3344
        %v3525 = vsub.f32 %v3259, %v3341
        %v3526 = vsub.f32 %v3259, %v3342
        %v3527 = vsub.f32 %v3259, %v3343
        %v3528 = vsub.f32 %v3259, %v3344
        %v3529 = vsub.f32 %v3263, %v3341
        %v3530 = vsub.f32 %v3263, %v3342
        %v3531 = vsub.f32 %v3263, %v3343
        %v3532 = vsub.f32 %v3263, %v3344
        %v3533 = vsub.f32 %v3267, %v3341
        %v3534 = vsub.f32 %v3267, %v3342
        %v3535 = vsub.f32 %v3267, %v3343
        %v3536 = vsub.f32 %v3267, %v3344
        %v3537 = vsub.f32 %v3271, %v3341
        %v3538 = vsub.f32 %v3271, %v3342
        %v3539 = vsub.f32 %v3271, %v3343
        %v3540 = vsub.f32 %v3271, %v3344
        %v3541 = vsub.f32 %v3275, %v3341
        %v3542 = vsub.f32 %v3275, %v3342
        %v3543 = vsub.f32 %v3275, %v3343
        %v3544 = vsub.f32 %v3275, %v3344
        %v3545 = vsub.f32 %v3279, %v3341
        %v3546 = vsub.f32 %v3279, %v3342
        %v3547 = vsub.f32 %v3279, %v3343
        %v3548 = vsub.f32 %v3279, %v3344
        %v3549 = vsub.f32 %v3283, %v3341
        %v3550 = vsub.f32 %v3283, %v3342
        %v3551 = vsub.f32 %v3283, %v3343
        %v3552 = vsub.f32 %v3283, %v3344
        %v3553 = vsub.f32 %v3287, %v3341
        %v3554 = vsub.f32 %v3287, %v3342
        %v3555 = vsub.f32 %v3287, %v3343
        %v3556 = vsub.f32 %v3287, %v3344
        %v3557 = vsub.f32 %v3291, %v3341
        %v3558 = vsub.f32 %v3291, %v3342
        %v3559 = vsub.f32 %v3291, %v3343
        %v3560 = vsub.f32 %v3291, %v3344
        %v3561 = vsub.f32 %v3295, %v3341
        %v3562 = vsub.f32 %v3295, %v3342
        %v3563 = vsub.f32 %v3295, %v3343
        %v3564 = vsub.f32 %v3295, %v3344
        %v3565 = vsub.f32 %v3299, %v3341
        %v3566 = vsub.f32 %v3299, %v3342
        %v3567 = vsub.f32 %v3299, %v3343
        %v3568 = vsub.f32 %v3299, %v3344
        %v3569 = vsub.f32 %v3303, %v3341
        %v3570 = vsub.f32 %v3303, %v3342
        %v3571 = vsub.f32 %v3303, %v3343
        %v3572 = vsub.f32 %v3303, %v3344
        %v3573 = vsub.f32 %v3307, %v3341
        %v3574 = vsub.f32 %v3307, %v3342
        %v3575 = vsub.f32 %v3307, %v3343
        %v3576 = vsub.f32 %v3307, %v3344
        %v3577 = vsub.f32 %v3311, %v3341
        %v3578 = vsub.f32 %v3311, %v3342
        %v3579 = vsub.f32 %v3311, %v3343
        %v3580 = vsub.f32 %v3311, %v3344
        %v3581 = vsub.f32 %v3315, %v3341
        %v3582 = vsub.f32 %v3315, %v3342
        %v3583 = vsub.f32 %v3315, %v3343
        %v3584 = vsub.f32 %v3315, %v3344
        %v3585 = vsub.f32 %v3319, %v3341
        %v3586 = vsub.f32 %v3319, %v3342
        %v3587 = vsub.f32 %v3319, %v3343
        %v3588 = vsub.f32 %v3319, %v3344
        %v3589 = vsub.f32 %v3323, %v3341
        %v3590 = vsub.f32 %v3323, %v3342
        %v3591 = vsub.f32 %v3323, %v3343
        %v3592 = vsub.f32 %v3323, %v3344
        %v3593 = vsub.f32 %v3327, %v3341
        %v3594 = vsub.f32 %v3327, %v3342
        %v3595 = vsub.f32 %v3327, %v3343
        %v3596 = vsub.f32 %v3327, %v3344
        %v3597 = vsub.f32 %v3331, %v3341
        %v3598 = vsub.f32 %v3331, %v3342
        %v3599 = vsub.f32 %v3331, %v3343
        %v3600 = vsub.f32 %v3331, %v3344
        %v3601 = vmul.f32 %v3345, %v3345
        %v3602 = vmul.f32 %v3346, %v3346
        %v3603 = vmul.f32 %v3347, %v3347
        %v3604 = vmul.f32 %v3348, %v3348
        %v3605 = vmul.f32 %v3349, %v3349
        %v3606 = vmul.f32 %v3350, %v3350
        %v3607 = vmul.f32 %v3351, %v3351
        %v3608 = vmul.f32 %v3352, %v3352
        %v3609 = vmul.f32 %v3353, %v3353
        %v3610 = vmul.f32 %v3354, %v3354
        %v3611 = vmul.f32 %v3355, %v3355
        %v3612 = vmul.f32 %v3356, %v3356
        %v3613 = vmul.f32 %v3357, %v3357
        %v3614 = vmul.f32 %v3358, %v3358
        %v3615 = vmul.f32 %v3359, %v3359
        %v3616 = vmul.f32 %v3360, %v3360
        %v3617 = vmul.f32 %v3361, %v3361
        %v3618 = vmul.f32 %v3362, %v3362
        %v3619 = vmul.f32 %v3363, %v3363
        %v3620 = vmul.f32 %v3364, %v3364
        %v3621 = vmul.f32 %v3365, %v3365
        %v3622 = vmul.f32 %v3366, %v3366
        %v3623 = vmul.f32 %v3367, %v3367
        %v3624 = vmul.f32 %v3368, %v3368
        %v3625 = vmul.f32 %v3369, %v3369
        %v3626 = vmul.f32 %v3370, %v3370
        %v3627 = vmul.f32 %v3371, %v3371
        %v3628 = vmul.f32 %v3372, %v3372
        %v3629 = vmul.f32 %v3373, %v3373
        %v3630 = vmul.f32 %v3374, %v3374
        %v3631 = vmul.f32 %v3375, %v3375
        %v3632 = vmul.f32 %v3376, %v3376
        %v3633 = vmul.f32 %v3377, %v3377
        %v3634 = vmul.f32 %v3378, %v3378
        %v3635 = vmul.f32 %v3379, %v3379
        %v3636 = vmul.f32 %v3380, %v3380
        %v3637 = vmul.f32 %v3381, %v3381
        %v3638 = vmul.f32 %v3382, %v3382
        %v3639 = vmul.f32 %v3383, %v3383
        %v3640 = vmul.f32 %v3384, %v3384
        %v3641 = vmul.f32 %v3385, %v3385
        %v3642 = vmul.f32 %v3386, %v3386
        %v3643 = vmul.f32 %v3387, %v3387
        %v3644 = vmul.f32 %v3388, %v3388
        %v3645 = vmul.f32 %v3389, %v3389
        %v3646 = vmul.f32 %v3390, %v3390
        %v3647 = vmul.f32 %v3391, %v3391
        %v3648 = vmul.f32 %v3392, %v3392
        %v3649 = vmul.f32 %v3393, %v3393
        %v3650 = vmul.f32 %v3394, %v3394
        %v3651 = vmul.f32 %v3395, %v3395
        %v3652 = vmul.f32 %v3396, %v3396
        %v3653 = vmul.f32 %v3397, %v3397
        %v3654 = vmul.f32 %v3398, %v3398
        %v3655 = vmul.f32 %v3399, %v3399
        %v3656 = vmul.f32 %v3400, %v3400
        %v3657 = vmul.f32 %v3401, %v3401
        %v3658 = vmul.f32 %v3402, %v3402
        %v3659 = vmul.f32 %v3403, %v3403
        %v3660 = vmul.f32 %v3404, %v3404
        %v3661 = vmul.f32 %v3405, %v3405
        %v3662 = vmul.f32 %v3406, %v3406
        %v3663 = vmul.f32 %v3407, %v3407
        %v3664 = vmul.f32 %v3408, %v3408
        %v3665 = vmul.f32 %v3409, %v3409
        %v3666 = vmul.f32 %v3410, %v3410
        %v3667 = vmul.f32 %v3411, %v3411
        %v3668 = vmul.f32 %v3412, %v3412
        %v3669 = vmul.f32 %v3413, %v3413
        %v3670 = vmul.f32 %v3414, %v3414
        %v3671 = vmul.f32 %v3415, %v3415
        %v3672 = vmul.f32 %v3416, %v3416
        %v3673 = vmul.f32 %v3417, %v3417
        %v3674 = vmul.f32 %v3418, %v3418
        %v3675 = vmul.f32 %v3419, %v3419
        %v3676 = vmul.f32 %v3420, %v3420
        %v3677 = vmul.f32 %v3421, %v3421
        %v3678 = vmul.f32 %v3422, %v3422
        %v3679 = vmul.f32 %v3423, %v3423
        %v3680 = vmul.f32 %v3424, %v3424
        %v3681 = vmul.f32 %v3425, %v3425
        %v3682 = vmul.f32 %v3426, %v3426
        %v3683 = vmul.f32 %v3427, %v3427
        %v3684 = vmul.f32 %v3428, %v3428
        %v3685 = vmul.f32 %v3429, %v3429
        %v3686 = vmul.f32 %v3430, %v3430
        %v3687 = vmul.f32 %v3431, %v3431
        %v3688 = vmul.f32 %v3432, %v3432
        %v3689 = vmul.f32 %v3433, %v3433
        %v3690 = vmul.f32 %v3434, %v3434
        %v3691 = vmul.f32 %v3435, %v3435
        %v3692 = vmul.f32 %v3436, %v3436
        %v3693 = vmul.f32 %v3437, %v3437
        %v3694 = vmul.f32 %v3438, %v3438
        %v3695 = vmul.f32 %v3439, %v3439
        %v3696 = vmul.f32 %v3440, %v3440
        %v3697 = vmul.f32 %v3441, %v3441
        %v3698 = vmul.f32 %v3442, %v3442
        %v3699 = vmul.f32 %v3443, %v3443
        %v3700 = vmul.f32 %v3444, %v3444
        %v3701 = vmul.f32 %v3445, %v3445
        %v3702 = vmul.f32 %v3446, %v3446
        %v3703 = vmul.f32 %v3447, %v3447
        %v3704 = vmul.f32 %v3448, %v3448
        %v3705 = vmul.f32 %v3449, %v3449
        %v3706 = vmul.f32 %v3450, %v3450
        %v3707 = vmul.f32 %v3451, %v3451
        %v3708 = vmul.f32 %v3452, %v3452
        %v3709 = vmul.f32 %v3453, %v3453
        %v3710 = vmul.f32 %v3454, %v3454
        %v3711 = vmul.f32 %v3455, %v3455
        %v3712 = vmul.f32 %v3456, %v3456
        %v3713 = vmul.f32 %v3457, %v3457
        %v3714 = vmul.f32 %v3458, %v3458
        %v3715 = vmul.f32 %v3459, %v3459
        %v3716 = vmul.f32 %v3460, %v3460
        %v3717 = vmul.f32 %v3461, %v3461
        %v3718 = vmul.f32 %v3462, %v3462
        %v3719 = vmul.f32 %v3463, %v3463
        %v3720 = vmul.f32 %v3464, %v3464
        %v3721 = vmul.f32 %v3465, %v3465
        %v3722 = vmul.f32 %v3466, %v3466
        %v3723 = vmul.f32 %v3467, %v3467
        %v3724 = vmul.f32 %v3468, %v3468
        %v3725 = vmul.f32 %v3469, %v3469
        %v3726 = vmul.f32 %v3470, %v3470
        %v3727 = vmul.f32 %v3471, %v3471
        %v3728 = vmul.f32 %v3472, %v3472
        %v3729 = vmul.f32 %v3473, %v3473
        %v3730 = vmul.f32 %v3474, %v3474
        %v3731 = vmul.f32 %v3475, %v3475
        %v3732 = vmul.f32 %v3476, %v3476
        %v3733 = vmul.f32 %v3477, %v3477
        %v3734 = vmul.f32 %v3478, %v3478
        %v3735 = vmul.f32 %v3479, %v3479
        %v3736 = vmul.f32 %v3480, %v3480
        %v3737 = vmul.f32 %v3481, %v3481
        %v3738 = vmul.f32 %v3482, %v3482
        %v3739 = vmul.f32 %v3483, %v3483
        %v3740 = vmul.f32 %v3484, %v3484
        %v3741 = vmul.f32 %v3485, %v3485
        %v3742 = vmul.f32 %v3486, %v3486
        %v3743 = vmul.f32 %v3487, %v3487
        %v3744 = vmul.f32 %v3488, %v3488
        %v3745 = vmul.f32 %v3489, %v3489
        %v3746 = vmul.f32 %v3490, %v3490
        %v3747 = vmul.f32 %v3491, %v3491
        %v3748 = vmul.f32 %v3492, %v3492
        %v3749 = vmul.f32 %v3493, %v3493
        %v3750 = vmul.f32 %v3494, %v3494
        %v3751 = vmul.f32 %v3495, %v3495
        %v3752 = vmul.f32 %v3496, %v3496
        %v3753 = vmul.f32 %v3497, %v3497
        %v3754 = vmul.f32 %v3498, %v3498
        %v3755 = vmul.f32 %v3499, %v3499
        %v3756 = vmul.f32 %v3500, %v3500
        %v3757 = vmul.f32 %v3501, %v3501
        %v3758 = vmul.f32 %v3502, %v3502
        %v3759 = vmul.f32 %v3503, %v3503
        %v3760 = vmul.f32 %v3504, %v3504
        %v3761 = vmul.f32 %v3505, %v3505
        %v3762 = vmul.f32 %v3506, %v3506
        %v3763 = vmul.f32 %v3507, %v3507
        %v3764 = vmul.f32 %v3508, %v3508
        %v3765 = vmul.f32 %v3509, %v3509
        %v3766 = vmul.f32 %v3510, %v3510
        %v3767 = vmul.f32 %v3511, %v3511
        %v3768 = vmul.f32 %v3512, %v3512
        %v3769 = vmul.f32 %v3513, %v3513
        %v3770 = vmul.f32 %v3514, %v3514
        %v3771 = vmul.f32 %v3515, %v3515
        %v3772 = vmul.f32 %v3516, %v3516
        %v3773 = vmul.f32 %v3517, %v3517
        %v3774 = vmul.f32 %v3518, %v3518
        %v3775 = vmul.f32 %v3519, %v3519
        %v3776 = vmul.f32 %v3520, %v3520
        %v3777 = vmul.f32 %v3521, %v3521
        %v3778 = vmul.f32 %v3522, %v3522
        %v3779 = vmul.f32 %v3523, %v3523
        %v3780 = vmul.f32 %v3524, %v3524
        %v3781 = vmul.f32 %v3525, %v3525
        %v3782 = vmul.f32 %v3526, %v3526
        %v3783 = vmul.f32 %v3527, %v3527
        %v3784 = vmul.f32 %v3528, %v3528
        %v3785 = vmul.f32 %v3529, %v3529
        %v3786 = vmul.f32 %v3530, %v3530
        %v3787 = vmul.f32 %v3531, %v3531
        %v3788 = vmul.f32 %v3532, %v3532
        %v3789 = vmul.f32 %v3533, %v3533
        %v3790 = vmul.f32 %v3534, %v3534
        %v3791 = vmul.f32 %v3535, %v3535
        %v3792 = vmul.f32 %v3536, %v3536
        %v3793 = vmul.f32 %v3537, %v3537
        %v3794 = vmul.f32 %v3538, %v3538
        %v3795 = vmul.f32 %v3539, %v3539
        %v3796 = vmul.f32 %v3540, %v3540
        %v3797 = vmul.f32 %v3541, %v3541
        %v3798 = vmul.f32 %v3542, %v3542
        %v3799 = vmul.f32 %v3543, %v3543
        %v3800 = vmul.f32 %v3544, %v3544
        %v3801 = vmul.f32 %v3545, %v3545
        %v3802 = vmul.f32 %v3546, %v3546
        %v3803 = vmul.f32 %v3547, %v3547
        %v3804 = vmul.f32 %v3548, %v3548
        %v3805 = vmul.f32 %v3549, %v3549
        %v3806 = vmul.f32 %v3550, %v3550
        %v3807 = vmul.f32 %v3551, %v3551
        %v3808 = vmul.f32 %v3552, %v3552
        %v3809 = vmul.f32 %v3553, %v3553
        %v3810 = vmul.f32 %v3554, %v3554
        %v3811 = vmul.f32 %v3555, %v3555
        %v3812 = vmul.f32 %v3556, %v3556
        %v3813 = vmul.f32 %v3557, %v3557
        %v3814 = vmul.f32 %v3558, %v3558
        %v3815 = vmul.f32 %v3559, %v3559
        %v3816 = vmul.f32 %v3560, %v3560
        %v3817 = vmul.f32 %v3561, %v3561
        %v3818 = vmul.f32 %v3562, %v3562
        %v3819 = vmul.f32 %v3563, %v3563
        %v3820 = vmul.f32 %v3564, %v3564
        %v3821 = vmul.f32 %v3565, %v3565
        %v3822 = vmul.f32 %v3566, %v3566
        %v3823 = vmul.f32 %v3567, %v3567
        %v3824 = vmul.f32 %v3568, %v3568
        %v3825 = vmul.f32 %v3569, %v3569
        %v3826 = vmul.f32 %v3570, %v3570
        %v3827 = vmul.f32 %v3571, %v3571
        %v3828 = vmul.f32 %v3572, %v3572
        %v3829 = vmul.f32 %v3573, %v3573
        %v3830 = vmul.f32 %v3574, %v3574
        %v3831 = vmul.f32 %v3575, %v3575
        %v3832 = vmul.f32 %v3576, %v3576
        %v3833 = vmul.f32 %v3577, %v3577
        %v3834 = vmul.f32 %v3578, %v3578
        %v3835 = vmul.f32 %v3579, %v3579
        %v3836 = vmul.f32 %v3580, %v3580
        %v3837 = vmul.f32 %v3581, %v3581
        %v3838 = vmul.f32 %v3582, %v3582
        %v3839 = vmul.f32 %v3583, %v3583
        %v3840 = vmul.f32 %v3584, %v3584
        %v3841 = vmul.f32 %v3585, %v3585
        %v3842 = vmul.f32 %v3586, %v3586
        %v3843 = vmul.f32 %v3587, %v3587
        %v3844 = vmul.f32 %v3588, %v3588
        %v3845 = vmul.f32 %v3589, %v3589
        %v3846 = vmul.f32 %v3590, %v3590
        %v3847 = vmul.f32 %v3591, %v3591
        %v3848 = vmul.f32 %v3592, %v3592
        %v3849 = vmul.f32 %v3593, %v3593
        %v3850 = vmul.f32 %v3594, %v3594
        %v3851 = vmul.f32 %v3595, %v3595
        %v3852 = vmul.f32 %v3596, %v3596
        %v3853 = vmul.f32 %v3597, %v3597
        %v3854 = vmul.f32 %v3598, %v3598
        %v3855 = vmul.f32 %v3599, %v3599
        %v3856 = vmul.f32 %v3600, %v3600
        %v3857 = vadd.f32 %v2821, %v3601
        %v3858 = vadd.f32 %v2822, %v3602
        %v3859 = vadd.f32 %v2823, %v3603
        %v3860 = vadd.f32 %v2824, %v3604
        %v3861 = vadd.f32 %v2825, %v3605
        %v3862 = vadd.f32 %v2826, %v3606
        %v3863 = vadd.f32 %v2827, %v3607
        %v3864 = vadd.f32 %v2828, %v3608
        %v3865 = vadd.f32 %v2829, %v3609
        %v3866 = vadd.f32 %v2830, %v3610
        %v3867 = vadd.f32 %v2831, %v3611
        %v3868 = vadd.f32 %v2832, %v3612
        %v3869 = vadd.f32 %v2833, %v3613
        %v3870 = vadd.f32 %v2834, %v3614
        %v3871 = vadd.f32 %v2835, %v3615
        %v3872 = vadd.f32 %v2836, %v3616
        %v3873 = vadd.f32 %v2837, %v3617
        %v3874 = vadd.f32 %v2838, %v3618
        %v3875 = vadd.f32 %v2839, %v3619
        %v3876 = vadd.f32 %v2840, %v3620
        %v3877 = vadd.f32 %v2841, %v3621
        %v3878 = vadd.f32 %v2842, %v3622
        %v3879 = vadd.f32 %v2843, %v3623
        %v3880 = vadd.f32 %v2844, %v3624
        %v3881 = vadd.f32 %v2845, %v3625
        %v3882 = vadd.f32 %v2846, %v3626
        %v3883 = vadd.f32 %v2847, %v3627
        %v3884 = vadd.f32 %v2848, %v3628
        %v3885 = vadd.f32 %v2849, %v3629
        %v3886 = vadd.f32 %v2850, %v3630
        %v3887 = vadd.f32 %v2851, %v3631
        %v3888 = vadd.f32 %v2852, %v3632
        %v3889 = vadd.f32 %v2853, %v3633
        %v3890 = vadd.f32 %v2854, %v3634
        %v3891 = vadd.f32 %v2855, %v3635
        %v3892 = vadd.f32 %v2856, %v3636
        %v3893 = vadd.f32 %v2857, %v3637
        %v3894 = vadd.f32 %v2858, %v3638
        %v3895 = vadd.f32 %v2859, %v3639
        %v3896 = vadd.f32 %v2860, %v3640
        %v3897 = vadd.f32 %v2861, %v3641
        %v3898 = vadd.f32 %v2862, %v3642
        %v3899 = vadd.f32 %v2863, %v3643
        %v3900 = vadd.f32 %v2864, %v3644
        %v3901 = vadd.f32 %v2865, %v3645
        %v3902 = vadd.f32 %v2866, %v3646
        %v3903 = vadd.f32 %v2867, %v3647
        %v3904 = vadd.f32 %v2868, %v3648
        %v3905 = vadd.f32 %v2869, %v3649
        %v3906 = vadd.f32 %v2870, %v3650
        %v3907 = vadd.f32 %v2871, %v3651
        %v3908 = vadd.f32 %v2872, %v3652
        %v3909 = vadd.f32 %v2873, %v3653
        %v3910 = vadd.f32 %v2874, %v3654
        %v3911 = vadd.f32 %v2875, %v3655
        %v3912 = vadd.f32 %v2876, %v3656
        %v3913 = vadd.f32 %v2877, %v3657
        %v3914 = vadd.f32 %v2878, %v3658
        %v3915 = vadd.f32 %v2879, %v3659
        %v3916 = vadd.f32 %v2880, %v3660
        %v3917 = vadd.f32 %v2881, %v3661
        %v3918 = vadd.f32 %v2882, %v3662
        %v3919 = vadd.f32 %v2883, %v3663
        %v3920 = vadd.f32 %v2884, %v3664
        %v3921 = vadd.f32 %v2885, %v3665
        %v3922 = vadd.f32 %v2886, %v3666
        %v3923 = vadd.f32 %v2887, %v3667
        %v3924 = vadd.f32 %v2888, %v3668
        %v3925 = vadd.f32 %v2889, %v3669
        %v3926 = vadd.f32 %v2890, %v3670
        %v3927 = vadd.f32 %v2891, %v3671
        %v3928 = vadd.f32 %v2892, %v3672
        %v3929 = vadd.f32 %v2893, %v3673
        %v3930 = vadd.f32 %v2894, %v3674
        %v3931 = vadd.f32 %v2895, %v3675
        %v3932 = vadd.f32 %v2896, %v3676
        %v3933 = vadd.f32 %v2897, %v3677
        %v3934 = vadd.f32 %v2898, %v3678
        %v3935 = vadd.f32 %v2899, %v3679
        %v3936 = vadd.f32 %v2900, %v3680
        %v3937 = vadd.f32 %v2901, %v3681
        %v3938 = vadd.f32 %v2902, %v3682
        %v3939 = vadd.f32 %v2903, %v3683
        %v3940 = vadd.f32 %v2904, %v3684
        %v3941 = vadd.f32 %v2905, %v3685
        %v3942 = vadd.f32 %v2906, %v3686
        %v3943 = vadd.f32 %v2907, %v3687
        %v3944 = vadd.f32 %v2908, %v3688
        %v3945 = vadd.f32 %v2909, %v3689
        %v3946 = vadd.f32 %v2910, %v3690
        %v3947 = vadd.f32 %v2911, %v3691
        %v3948 = vadd.f32 %v2912, %v3692
        %v3949 = vadd.f32 %v2913, %v3693
        %v3950 = vadd.f32 %v2914, %v3694
        %v3951 = vadd.f32 %v2915, %v3695
        %v3952 = vadd.f32 %v2916, %v3696
        %v3953 = vadd.f32 %v2917, %v3697
        %v3954 = vadd.f32 %v2918, %v3698
        %v3955 = vadd.f32 %v2919, %v3699
        %v3956 = vadd.f32 %v2920, %v3700
        %v3957 = vadd.f32 %v2921, %v3701
        %v3958 = vadd.f32 %v2922, %v3702
        %v3959 = vadd.f32 %v2923, %v3703
        %v3960 = vadd.f32 %v2924, %v3704
        %v3961 = vadd.f32 %v2925, %v3705
        %v3962 = vadd.f32 %v2926, %v3706
        %v3963 = vadd.f32 %v2927, %v3707
        %v3964 = vadd.f32 %v2928, %v3708
        %v3965 = vadd.f32 %v2929, %v3709
        %v3966 = vadd.f32 %v2930, %v3710
        %v3967 = vadd.f32 %v2931, %v3711
        %v3968 = vadd.f32 %v2932, %v3712
        %v3969 = vadd.f32 %v2933, %v3713
        %v3970 = vadd.f32 %v2934, %v3714
        %v3971 = vadd.f32 %v2935, %v3715
        %v3972 = vadd.f32 %v2936, %v3716
        %v3973 = vadd.f32 %v2937, %v3717
        %v3974 = vadd.f32 %v2938, %v3718
        %v3975 = vadd.f32 %v2939, %v3719
        %v3976 = vadd.f32 %v2940, %v3720
        %v3977 = vadd.f32 %v2941, %v3721
        %v3978 = vadd.f32 %v2942, %v3722
        %v3979 = vadd.f32 %v2943, %v3723
        %v3980 = vadd.f32 %v2944, %v3724
        %v3981 = vadd.f32 %v2945, %v3725
        %v3982 = vadd.f32 %v2946, %v3726
        %v3983 = vadd.f32 %v2947, %v3727
        %v3984 = vadd.f32 %v2948, %v3728
        %v3985 = vadd.f32 %v2949, %v3729
        %v3986 = vadd.f32 %v2950, %v3730
        %v3987 = vadd.f32 %v2951, %v3731
        %v3988 = vadd.f32 %v2952, %v3732
        %v3989 = vadd.f32 %v2953, %v3733
        %v3990 = vadd.f32 %v2954, %v3734
        %v3991 = vadd.f32 %v2955, %v3735
        %v3992 = vadd.f32 %v2956, %v3736
        %v3993 = vadd.f32 %v2957, %v3737
        %v3994 = vadd.f32 %v2958, %v3738
        %v3995 = vadd.f32 %v2959, %v3739
        %v3996 = vadd.f32 %v2960, %v3740
        %v3997 = vadd.f32 %v2961, %v3741
        %v3998 = vadd.f32 %v2962, %v3742
        %v3999 = vadd.f32 %v2963, %v3743
        %v4000 = vadd.f32 %v2964, %v3744
        %v4001 = vadd.f32 %v2965, %v3745
        %v4002 = vadd.f32 %v2966, %v3746
        %v4003 = vadd.f32 %v2967, %v3747
        %v4004 = vadd.f32 %v2968, %v3748
        %v4005 = vadd.f32 %v2969, %v3749
        %v4006 = vadd.f32 %v2970, %v3750
        %v4007 = vadd.f32 %v2971, %v3751
        %v4008 = vadd.f32 %v2972, %v3752
        %v4009 = vadd.f32 %v2973, %v3753
        %v4010 = vadd.f32 %v2974, %v3754
        %v4011 = vadd.f32 %v2975, %v3755
        %v4012 = vadd.f32 %v2976, %v3756
        %v4013 = vadd.f32 %v2977, %v3757
        %v4014 = vadd.f32 %v2978, %v3758
        %v4015 = vadd.f32 %v2979, %v3759
        %v4016 = vadd.f32 %v2980, %v3760
        %v4017 = vadd.f32 %v2981, %v3761
        %v4018 = vadd.f32 %v2982, %v3762
        %v4019 = vadd.f32 %v2983, %v3763
        %v4020 = vadd.f32 %v2984, %v3764
        %v4021 = vadd.f32 %v2985, %v3765
        %v4022 = vadd.f32 %v2986, %v3766
        %v4023 = vadd.f32 %v2987, %v3767
        %v4024 = vadd.f32 %v2988, %v3768
        %v4025 = vadd.f32 %v2989, %v3769
        %v4026 = vadd.f32 %v2990, %v3770
        %v4027 = vadd.f32 %v2991, %v3771
        %v4028 = vadd.f32 %v2992, %v3772
        %v4029 = vadd.f32 %v2993, %v3773
        %v4030 = vadd.f32 %v2994, %v3774
        %v4031 = vadd.f32 %v2995, %v3775
        %v4032 = vadd.f32 %v2996, %v3776
        %v4033 = vadd.f32 %v2997, %v3777
        %v4034 = vadd.f32 %v2998, %v3778
        %v4035 = vadd.f32 %v2999, %v3779
        %v4036 = vadd.f32 %v3000, %v3780
        %v4037 = vadd.f32 %v3001, %v3781
        %v4038 = vadd.f32 %v3002, %v3782
        %v4039 = vadd.f32 %v3003, %v3783
        %v4040 = vadd.f32 %v3004, %v3784
        %v4041 = vadd.f32 %v3005, %v3785
        %v4042 = vadd.f32 %v3006, %v3786
        %v4043 = vadd.f32 %v3007, %v3787
        %v4044 = vadd.f32 %v3008, %v3788
        %v4045 = vadd.f32 %v3009, %v3789
        %v4046 = vadd.f32 %v3010, %v3790
        %v4047 = vadd.f32 %v3011, %v3791
        %v4048 = vadd.f32 %v3012, %v3792
        %v4049 = vadd.f32 %v3013, %v3793
        %v4050 = vadd.f32 %v3014, %v3794
        %v4051 = vadd.f32 %v3015, %v3795
        %v4052 = vadd.f32 %v3016, %v3796
        %v4053 = vadd.f32 %v3017, %v3797
        %v4054 = vadd.f32 %v3018, %v3798
        %v4055 = vadd.f32 %v3019, %v3799
        %v4056 = vadd.f32 %v3020, %v3800
        %v4057 = vadd.f32 %v3021, %v3801
        %v4058 = vadd.f32 %v3022, %v3802
        %v4059 = vadd.f32 %v3023, %v3803
        %v4060 = vadd.f32 %v3024, %v3804
        %v4061 = vadd.f32 %v3025, %v3805
        %v4062 = vadd.f32 %v3026, %v3806
        %v4063 = vadd.f32 %v3027, %v3807
        %v4064 = vadd.f32 %v3028, %v3808
        %v4065 = vadd.f32 %v3029, %v3809
        %v4066 = vadd.f32 %v3030, %v3810
        %v4067 = vadd.f32 %v3031, %v3811
        %v4068 = vadd.f32 %v3032, %v3812
        %v4069 = vadd.f32 %v3033, %v3813
        %v4070 = vadd.f32 %v3034, %v3814
        %v4071 = vadd.f32 %v3035, %v3815
        %v4072 = vadd.f32 %v3036, %v3816
        %v4073 = vadd.f32 %v3037, %v3817
        %v4074 = vadd.f32 %v3038, %v3818
        %v4075 = vadd.f32 %v3039, %v3819
        %v4076 = vadd.f32 %v3040, %v3820
        %v4077 = vadd.f32 %v3041, %v3821
        %v4078 = vadd.f32 %v3042, %v3822
        %v4079 = vadd.f32 %v3043, %v3823
        %v4080 = vadd.f32 %v3044, %v3824
        %v4081 = vadd.f32 %v3045, %v3825
        %v4082 = vadd.f32 %v3046, %v3826
        %v4083 = vadd.f32 %v3047, %v3827
        %v4084 = vadd.f32 %v3048, %v3828
        %v4085 = vadd.f32 %v3049, %v3829
        %v4086 = vadd.f32 %v3050, %v3830
        %v4087 = vadd.f32 %v3051, %v3831
        %v4088 = vadd.f32 %v3052, %v3832
        %v4089 = vadd.f32 %v3053, %v3833
        %v4090 = vadd.f32 %v3054, %v3834
        %v4091 = vadd.f32 %v3055, %v3835
        %v4092 = vadd.f32 %v3056, %v3836
        %v4093 = vadd.f32 %v3057, %v3837
        %v4094 = vadd.f32 %v3058, %v3838
        %v4095 = vadd.f32 %v3059, %v3839
        %v4096 = vadd.f32 %v3060, %v3840
        %v4097 = vadd.f32 %v3061, %v3841
        %v4098 = vadd.f32 %v3062, %v3842
        %v4099 = vadd.f32 %v3063, %v3843
        %v4100 = vadd.f32 %v3064, %v3844
        %v4101 = vadd.f32 %v3065, %v3845
        %v4102 = vadd.f32 %v3066, %v3846
        %v4103 = vadd.f32 %v3067, %v3847
        %v4104 = vadd.f32 %v3068, %v3848
        %v4105 = vadd.f32 %v3069, %v3849
        %v4106 = vadd.f32 %v3070, %v3850
        %v4107 = vadd.f32 %v3071, %v3851
        %v4108 = vadd.f32 %v3072, %v3852
        %v4109 = vadd.f32 %v3073, %v3853
        %v4110 = vadd.f32 %v3074, %v3854
        %v4111 = vadd.f32 %v3075, %v3855
        %v4112 = vadd.f32 %v3076, %v3856
        %4113 = vst [vmem:[#allocation3] sm:$0xff] %v3857
        %4114 = vst [vmem:[#allocation3 + $0x8] sm:$0xff] %v3858
        %4115 = vst [vmem:[#allocation3 + $0x10] sm:$0xff] %v3859
        %4116 = vst [vmem:[#allocation3 + $0x18] sm:$0xff] %v3860
        %4117 = vst [vmem:[#allocation3 + $0x20] sm:$0xff] %v3861
        %4118 = vst [vmem:[#allocation3 + $0x28] sm:$0xff] %v3862
        %4119 = vst [vmem:[#allocation3 + $0x30] sm:$0xff] %v3863
        %4120 = vst [vmem:[#allocation3 + $0x38] sm:$0xff] %v3864
        %4121 = vst [vmem:[#allocation3 + $0x40] sm:$0xff] %v3865
        %4122 = vst [vmem:[#allocation3 + $0x48] sm:$0xff] %v3866
        %4123 = vst [vmem:[#allocation3 + $0x50] sm:$0xff] %v3867
        %4124 = vst [vmem:[#allocation3 + $0x58] sm:$0xff] %v3868
        %4125 = vst [vmem:[#allocation3 + $0x60] sm:$0xff] %v3869
        %4126 = vst [vmem:[#allocation3 + $0x68] sm:$0xff] %v3870
        %4127 = vst [vmem:[#allocation3 + $0x70] sm:$0xff] %v3871
        %4128 = vst [vmem:[#allocation3 + $0x78] sm:$0xff] %v3872
        %4129 = vst [vmem:[#allocation3 + $0x80] sm:$0xff] %v3873
        %4130 = vst [vmem:[#allocation3 + $0x88] sm:$0xff] %v3874
        %4131 = vst [vmem:[#allocation3 + $0x90] sm:$0xff] %v3875
        %4132 = vst [vmem:[#allocation3 + $0x98] sm:$0xff] %v3876
        %4133 = vst [vmem:[#allocation3 + $0xa0] sm:$0xff] %v3877
        %4134 = vst [vmem:[#allocation3 + $0xa8] sm:$0xff] %v3878
        %4135 = vst [vmem:[#allocation3 + $0xb0] sm:$0xff] %v3879
        %4136 = vst [vmem:[#allocation3 + $0xb8] sm:$0xff] %v3880
        %4137 = vst [vmem:[#allocation3 + $0xc0] sm:$0xff] %v3881
        %4138 = vst [vmem:[#allocation3 + $0xc8] sm:$0xff] %v3882
        %4139 = vst [vmem:[#allocation3 + $0xd0] sm:$0xff] %v3883
        %4140 = vst [vmem:[#allocation3 + $0xd8] sm:$0xff] %v3884
        %4141 = vst [vmem:[#allocation3 + $0xe0] sm:$0xff] %v3885
        %4142 = vst [vmem:[#allocation3 + $0xe8] sm:$0xff] %v3886
        %4143 = vst [vmem:[#allocation3 + $0xf0] sm:$0xff] %v3887
        %4144 = vst [vmem:[#allocation3 + $0xf8] sm:$0xff] %v3888
        %4145 = vst [vmem:[#allocation3 + $0x100] sm:$0xff] %v3889
        %4146 = vst [vmem:[#allocation3 + $0x108] sm:$0xff] %v3890
        %4147 = vst [vmem:[#allocation3 + $0x110] sm:$0xff] %v3891
        %4148 = vst [vmem:[#allocation3 + $0x118] sm:$0xff] %v3892
        %4149 = vst [vmem:[#allocation3 + $0x120] sm:$0xff] %v3893
        %4150 = vst [vmem:[#allocation3 + $0x128] sm:$0xff] %v3894
        %4151 = vst [vmem:[#allocation3 + $0x130] sm:$0xff] %v3895
        %4152 = vst [vmem:[#allocation3 + $0x138] sm:$0xff] %v3896
        %4153 = vst [vmem:[#allocation3 + $0x140] sm:$0xff] %v3897
        %4154 = vst [vmem:[#allocation3 + $0x148] sm:$0xff] %v3898
        %4155 = vst [vmem:[#allocation3 + $0x150] sm:$0xff] %v3899
        %4156 = vst [vmem:[#allocation3 + $0x158] sm:$0xff] %v3900
        %4157 = vst [vmem:[#allocation3 + $0x160] sm:$0xff] %v3901
        %4158 = vst [vmem:[#allocation3 + $0x168] sm:$0xff] %v3902
        %4159 = vst [vmem:[#allocation3 + $0x170] sm:$0xff] %v3903
        %4160 = vst [vmem:[#allocation3 + $0x178] sm:$0xff] %v3904
        %4161 = vst [vmem:[#allocation3 + $0x180] sm:$0xff] %v3905
        %4162 = vst [vmem:[#allocation3 + $0x188] sm:$0xff] %v3906
        %4163 = vst [vmem:[#allocation3 + $0x190] sm:$0xff] %v3907
        %4164 = vst [vmem:[#allocation3 + $0x198] sm:$0xff] %v3908
        %4165 = vst [vmem:[#allocation3 + $0x1a0] sm:$0xff] %v3909
        %4166 = vst [vmem:[#allocation3 + $0x1a8] sm:$0xff] %v3910
        %4167 = vst [vmem:[#allocation3 + $0x1b0] sm:$0xff] %v3911
        %4168 = vst [vmem:[#allocation3 + $0x1b8] sm:$0xff] %v3912
        %4169 = vst [vmem:[#allocation3 + $0x1c0] sm:$0xff] %v3913
        %4170 = vst [vmem:[#allocation3 + $0x1c8] sm:$0xff] %v3914
        %4171 = vst [vmem:[#allocation3 + $0x1d0] sm:$0xff] %v3915
        %4172 = vst [vmem:[#allocation3 + $0x1d8] sm:$0xff] %v3916
        %4173 = vst [vmem:[#allocation3 + $0x1e0] sm:$0xff] %v3917
        %4174 = vst [vmem:[#allocation3 + $0x1e8] sm:$0xff] %v3918
        %4175 = vst [vmem:[#allocation3 + $0x1f0] sm:$0xff] %v3919
        %4176 = vst [vmem:[#allocation3 + $0x1f8] sm:$0xff] %v3920
        %4177 = vst [vmem:[#allocation3 + $0x200] sm:$0xff] %v3921
        %4178 = vst [vmem:[#allocation3 + $0x208] sm:$0xff] %v3922
        %4179 = vst [vmem:[#allocation3 + $0x210] sm:$0xff] %v3923
        %4180 = vst [vmem:[#allocation3 + $0x218] sm:$0xff] %v3924
        %4181 = vst [vmem:[#allocation3 + $0x220] sm:$0xff] %v3925
        %4182 = vst [vmem:[#allocation3 + $0x228] sm:$0xff] %v3926
        %4183 = vst [vmem:[#allocation3 + $0x230] sm:$0xff] %v3927
        %4184 = vst [vmem:[#allocation3 + $0x238] sm:$0xff] %v3928
        %4185 = vst [vmem:[#allocation3 + $0x240] sm:$0xff] %v3929
        %4186 = vst [vmem:[#allocation3 + $0x248] sm:$0xff] %v3930
        %4187 = vst [vmem:[#allocation3 + $0x250] sm:$0xff] %v3931
        %4188 = vst [vmem:[#allocation3 + $0x258] sm:$0xff] %v3932
        %4189 = vst [vmem:[#allocation3 + $0x260] sm:$0xff] %v3933
        %4190 = vst [vmem:[#allocation3 + $0x268] sm:$0xff] %v3934
        %4191 = vst [vmem:[#allocation3 + $0x270] sm:$0xff] %v3935
        %4192 = vst [vmem:[#allocation3 + $0x278] sm:$0xff] %v3936
        %4193 = vst [vmem:[#allocation3 + $0x280] sm:$0xff] %v3937
        %4194 = vst [vmem:[#allocation3 + $0x288] sm:$0xff] %v3938
        %4195 = vst [vmem:[#allocation3 + $0x290] sm:$0xff] %v3939
        %4196 = vst [vmem:[#allocation3 + $0x298] sm:$0xff] %v3940
        %4197 = vst [vmem:[#allocation3 + $0x2a0] sm:$0xff] %v3941
        %4198 = vst [vmem:[#allocation3 + $0x2a8] sm:$0xff] %v3942
        %4199 = vst [vmem:[#allocation3 + $0x2b0] sm:$0xff] %v3943
        %4200 = vst [vmem:[#allocation3 + $0x2b8] sm:$0xff] %v3944
        %4201 = vst [vmem:[#allocation3 + $0x2c0] sm:$0xff] %v3945
        %4202 = vst [vmem:[#allocation3 + $0x2c8] sm:$0xff] %v3946
        %4203 = vst [vmem:[#allocation3 + $0x2d0] sm:$0xff] %v3947
        %4204 = vst [vmem:[#allocation3 + $0x2d8] sm:$0xff] %v3948
        %4205 = vst [vmem:[#allocation3 + $0x2e0] sm:$0xff] %v3949
        %4206 = vst [vmem:[#allocation3 + $0x2e8] sm:$0xff] %v3950
        %4207 = vst [vmem:[#allocation3 + $0x2f0] sm:$0xff] %v3951
        %4208 = vst [vmem:[#allocation3 + $0x2f8] sm:$0xff] %v3952
        %4209 = vst [vmem:[#allocation3 + $0x300] sm:$0xff] %v3953
        %4210 = vst [vmem:[#allocation3 + $0x308] sm:$0xff] %v3954
        %4211 = vst [vmem:[#allocation3 + $0x310] sm:$0xff] %v3955
        %4212 = vst [vmem:[#allocation3 + $0x318] sm:$0xff] %v3956
        %4213 = vst [vmem:[#allocation3 + $0x320] sm:$0xff] %v3957
        %4214 = vst [vmem:[#allocation3 + $0x328] sm:$0xff] %v3958
        %4215 = vst [vmem:[#allocation3 + $0x330] sm:$0xff] %v3959
        %4216 = vst [vmem:[#allocation3 + $0x338] sm:$0xff] %v3960
        %4217 = vst [vmem:[#allocation3 + $0x340] sm:$0xff] %v3961
        %4218 = vst [vmem:[#allocation3 + $0x348] sm:$0xff] %v3962
        %4219 = vst [vmem:[#allocation3 + $0x350] sm:$0xff] %v3963
        %4220 = vst [vmem:[#allocation3 + $0x358] sm:$0xff] %v3964
        %4221 = vst [vmem:[#allocation3 + $0x360] sm:$0xff] %v3965
        %4222 = vst [vmem:[#allocation3 + $0x368] sm:$0xff] %v3966
        %4223 = vst [vmem:[#allocation3 + $0x370] sm:$0xff] %v3967
        %4224 = vst [vmem:[#allocation3 + $0x378] sm:$0xff] %v3968
        %4225 = vst [vmem:[#allocation3 + $0x380] sm:$0xff] %v3969
        %4226 = vst [vmem:[#allocation3 + $0x388] sm:$0xff] %v3970
        %4227 = vst [vmem:[#allocation3 + $0x390] sm:$0xff] %v3971
        %4228 = vst [vmem:[#allocation3 + $0x398] sm:$0xff] %v3972
        %4229 = vst [vmem:[#allocation3 + $0x3a0] sm:$0xff] %v3973
        %4230 = vst [vmem:[#allocation3 + $0x3a8] sm:$0xff] %v3974
        %4231 = vst [vmem:[#allocation3 + $0x3b0] sm:$0xff] %v3975
        %4232 = vst [vmem:[#allocation3 + $0x3b8] sm:$0xff] %v3976
        %4233 = vst [vmem:[#allocation3 + $0x3c0] sm:$0xff] %v3977
        %4234 = vst [vmem:[#allocation3 + $0x3c8] sm:$0xff] %v3978
        %4235 = vst [vmem:[#allocation3 + $0x3d0] sm:$0xff] %v3979
        %4236 = vst [vmem:[#allocation3 + $0x3d8] sm:$0xff] %v3980
        %4237 = vst [vmem:[#allocation3 + $0x3e0] sm:$0xff] %v3981
        %4238 = vst [vmem:[#allocation3 + $0x3e8] sm:$0xff] %v3982
        %4239 = vst [vmem:[#allocation3 + $0x3f0] sm:$0xff] %v3983
        %4240 = vst [vmem:[#allocation3 + $0x3f8] sm:$0xff] %v3984
        %4241 = vst [vmem:[#allocation3 + $0x400] sm:$0xff] %v3985
        %4242 = vst [vmem:[#allocation3 + $0x408] sm:$0xff] %v3986
        %4243 = vst [vmem:[#allocation3 + $0x410] sm:$0xff] %v3987
        %4244 = vst [vmem:[#allocation3 + $0x418] sm:$0xff] %v3988
        %4245 = vst [vmem:[#allocation3 + $0x420] sm:$0xff] %v3989
        %4246 = vst [vmem:[#allocation3 + $0x428] sm:$0xff] %v3990
        %4247 = vst [vmem:[#allocation3 + $0x430] sm:$0xff] %v3991
        %4248 = vst [vmem:[#allocation3 + $0x438] sm:$0xff] %v3992
        %4249 = vst [vmem:[#allocation3 + $0x440] sm:$0xff] %v3993
        %4250 = vst [vmem:[#allocation3 + $0x448] sm:$0xff] %v3994
        %4251 = vst [vmem:[#allocation3 + $0x450] sm:$0xff] %v3995
        %4252 = vst [vmem:[#allocation3 + $0x458] sm:$0xff] %v3996
        %4253 = vst [vmem:[#allocation3 + $0x460] sm:$0xff] %v3997
        %4254 = vst [vmem:[#allocation3 + $0x468] sm:$0xff] %v3998
        %4255 = vst [vmem:[#allocation3 + $0x470] sm:$0xff] %v3999
        %4256 = vst [vmem:[#allocation3 + $0x478] sm:$0xff] %v4000
        %4257 = vst [vmem:[#allocation3 + $0x480] sm:$0xff] %v4001
        %4258 = vst [vmem:[#allocation3 + $0x488] sm:$0xff] %v4002
        %4259 = vst [vmem:[#allocation3 + $0x490] sm:$0xff] %v4003
        %4260 = vst [vmem:[#allocation3 + $0x498] sm:$0xff] %v4004
        %4261 = vst [vmem:[#allocation3 + $0x4a0] sm:$0xff] %v4005
        %4262 = vst [vmem:[#allocation3 + $0x4a8] sm:$0xff] %v4006
        %4263 = vst [vmem:[#allocation3 + $0x4b0] sm:$0xff] %v4007
        %4264 = vst [vmem:[#allocation3 + $0x4b8] sm:$0xff] %v4008
        %4265 = vst [vmem:[#allocation3 + $0x4c0] sm:$0xff] %v4009
        %4266 = vst [vmem:[#allocation3 + $0x4c8] sm:$0xff] %v4010
        %4267 = vst [vmem:[#allocation3 + $0x4d0] sm:$0xff] %v4011
        %4268 = vst [vmem:[#allocation3 + $0x4d8] sm:$0xff] %v4012
        %4269 = vst [vmem:[#allocation3 + $0x4e0] sm:$0xff] %v4013
        %4270 = vst [vmem:[#allocation3 + $0x4e8] sm:$0xff] %v4014
        %4271 = vst [vmem:[#allocation3 + $0x4f0] sm:$0xff] %v4015
        %4272 = vst [vmem:[#allocation3 + $0x4f8] sm:$0xff] %v4016
        %4273 = vst [vmem:[#allocation3 + $0x500] sm:$0xff] %v4017
        %4274 = vst [vmem:[#allocation3 + $0x508] sm:$0xff] %v4018
        %4275 = vst [vmem:[#allocation3 + $0x510] sm:$0xff] %v4019
        %4276 = vst [vmem:[#allocation3 + $0x518] sm:$0xff] %v4020
        %4277 = vst [vmem:[#allocation3 + $0x520] sm:$0xff] %v4021
        %4278 = vst [vmem:[#allocation3 + $0x528] sm:$0xff] %v4022
        %4279 = vst [vmem:[#allocation3 + $0x530] sm:$0xff] %v4023
        %4280 = vst [vmem:[#allocation3 + $0x538] sm:$0xff] %v4024
        %4281 = vst [vmem:[#allocation3 + $0x540] sm:$0xff] %v4025
        %4282 = vst [vmem:[#allocation3 + $0x548] sm:$0xff] %v4026
        %4283 = vst [vmem:[#allocation3 + $0x550] sm:$0xff] %v4027
        %4284 = vst [vmem:[#allocation3 + $0x558] sm:$0xff] %v4028
        %4285 = vst [vmem:[#allocation3 + $0x560] sm:$0xff] %v4029
        %4286 = vst [vmem:[#allocation3 + $0x568] sm:$0xff] %v4030
        %4287 = vst [vmem:[#allocation3 + $0x570] sm:$0xff] %v4031
        %4288 = vst [vmem:[#allocation3 + $0x578] sm:$0xff] %v4032
        %4289 = vst [vmem:[#allocation3 + $0x580] sm:$0xff] %v4033
        %4290 = vst [vmem:[#allocation3 + $0x588] sm:$0xff] %v4034
        %4291 = vst [vmem:[#allocation3 + $0x590] sm:$0xff] %v4035
        %4292 = vst [vmem:[#allocation3 + $0x598] sm:$0xff] %v4036
        %4293 = vst [vmem:[#allocation3 + $0x5a0] sm:$0xff] %v4037
        %4294 = vst [vmem:[#allocation3 + $0x5a8] sm:$0xff] %v4038
        %4295 = vst [vmem:[#allocation3 + $0x5b0] sm:$0xff] %v4039
        %4296 = vst [vmem:[#allocation3 + $0x5b8] sm:$0xff] %v4040
        %4297 = vst [vmem:[#allocation3 + $0x5c0] sm:$0xff] %v4041
        %4298 = vst [vmem:[#allocation3 + $0x5c8] sm:$0xff] %v4042
        %4299 = vst [vmem:[#allocation3 + $0x5d0] sm:$0xff] %v4043
        %4300 = vst [vmem:[#allocation3 + $0x5d8] sm:$0xff] %v4044
        %4301 = vst [vmem:[#allocation3 + $0x5e0] sm:$0xff] %v4045
        %4302 = vst [vmem:[#allocation3 + $0x5e8] sm:$0xff] %v4046
        %4303 = vst [vmem:[#allocation3 + $0x5f0] sm:$0xff] %v4047
        %4304 = vst [vmem:[#allocation3 + $0x5f8] sm:$0xff] %v4048
        %4305 = vst [vmem:[#allocation3 + $0x600] sm:$0xff] %v4049
        %4306 = vst [vmem:[#allocation3 + $0x608] sm:$0xff] %v4050
        %4307 = vst [vmem:[#allocation3 + $0x610] sm:$0xff] %v4051
        %4308 = vst [vmem:[#allocation3 + $0x618] sm:$0xff] %v4052
        %4309 = vst [vmem:[#allocation3 + $0x620] sm:$0xff] %v4053
        %4310 = vst [vmem:[#allocation3 + $0x628] sm:$0xff] %v4054
        %4311 = vst [vmem:[#allocation3 + $0x630] sm:$0xff] %v4055
        %4312 = vst [vmem:[#allocation3 + $0x638] sm:$0xff] %v4056
        %4313 = vst [vmem:[#allocation3 + $0x640] sm:$0xff] %v4057
        %4314 = vst [vmem:[#allocation3 + $0x648] sm:$0xff] %v4058
        %4315 = vst [vmem:[#allocation3 + $0x650] sm:$0xff] %v4059
        %4316 = vst [vmem:[#allocation3 + $0x658] sm:$0xff] %v4060
        %4317 = vst [vmem:[#allocation3 + $0x660] sm:$0xff] %v4061
        %4318 = vst [vmem:[#allocation3 + $0x668] sm:$0xff] %v4062
        %4319 = vst [vmem:[#allocation3 + $0x670] sm:$0xff] %v4063
        %4320 = vst [vmem:[#allocation3 + $0x678] sm:$0xff] %v4064
        %4321 = vst [vmem:[#allocation3 + $0x680] sm:$0xff] %v4065
        %4322 = vst [vmem:[#allocation3 + $0x688] sm:$0xff] %v4066
        %4323 = vst [vmem:[#allocation3 + $0x690] sm:$0xff] %v4067
        %4324 = vst [vmem:[#allocation3 + $0x698] sm:$0xff] %v4068
        %4325 = vst [vmem:[#allocation3 + $0x6a0] sm:$0xff] %v4069
        %4326 = vst [vmem:[#allocation3 + $0x6a8] sm:$0xff] %v4070
        %4327 = vst [vmem:[#allocation3 + $0x6b0] sm:$0xff] %v4071
        %4328 = vst [vmem:[#allocation3 + $0x6b8] sm:$0xff] %v4072
        %4329 = vst [vmem:[#allocation3 + $0x6c0] sm:$0xff] %v4073
        %4330 = vst [vmem:[#allocation3 + $0x6c8] sm:$0xff] %v4074
        %4331 = vst [vmem:[#allocation3 + $0x6d0] sm:$0xff] %v4075
        %4332 = vst [vmem:[#allocation3 + $0x6d8] sm:$0xff] %v4076
        %4333 = vst [vmem:[#allocation3 + $0x6e0] sm:$0xff] %v4077
        %4334 = vst [vmem:[#allocation3 + $0x6e8] sm:$0xff] %v4078
        %4335 = vst [vmem:[#allocation3 + $0x6f0] sm:$0xff] %v4079
        %4336 = vst [vmem:[#allocation3 + $0x6f8] sm:$0xff] %v4080
        %4337 = vst [vmem:[#allocation3 + $0x700] sm:$0xff] %v4081
        %4338 = vst [vmem:[#allocation3 + $0x708] sm:$0xff] %v4082
        %4339 = vst [vmem:[#allocation3 + $0x710] sm:$0xff] %v4083
        %4340 = vst [vmem:[#allocation3 + $0x718] sm:$0xff] %v4084
        %4341 = vst [vmem:[#allocation3 + $0x720] sm:$0xff] %v4085
        %4342 = vst [vmem:[#allocation3 + $0x728] sm:$0xff] %v4086
        %4343 = vst [vmem:[#allocation3 + $0x730] sm:$0xff] %v4087
        %4344 = vst [vmem:[#allocation3 + $0x738] sm:$0xff] %v4088
        %4345 = vst [vmem:[#allocation3 + $0x740] sm:$0xff] %v4089
        %4346 = vst [vmem:[#allocation3 + $0x748] sm:$0xff] %v4090
        %4347 = vst [vmem:[#allocation3 + $0x750] sm:$0xff] %v4091
        %4348 = vst [vmem:[#allocation3 + $0x758] sm:$0xff] %v4092
        %4349 = vst [vmem:[#allocation3 + $0x760] sm:$0xff] %v4093
        %4350 = vst [vmem:[#allocation3 + $0x768] sm:$0xff] %v4094
        %4351 = vst [vmem:[#allocation3 + $0x770] sm:$0xff] %v4095
        %4352 = vst [vmem:[#allocation3 + $0x778] sm:$0xff] %v4096
        %4353 = vst [vmem:[#allocation3 + $0x780] sm:$0xff] %v4097
        %4354 = vst [vmem:[#allocation3 + $0x788] sm:$0xff] %v4098
        %4355 = vst [vmem:[#allocation3 + $0x790] sm:$0xff] %v4099
        %4356 = vst [vmem:[#allocation3 + $0x798] sm:$0xff] %v4100
        %4357 = vst [vmem:[#allocation3 + $0x7a0] sm:$0xff] %v4101
        %4358 = vst [vmem:[#allocation3 + $0x7a8] sm:$0xff] %v4102
        %4359 = vst [vmem:[#allocation3 + $0x7b0] sm:$0xff] %v4103
        %4360 = vst [vmem:[#allocation3 + $0x7b8] sm:$0xff] %v4104
        %4361 = vst [vmem:[#allocation3 + $0x7c0] sm:$0xff] %v4105
        %4362 = vst [vmem:[#allocation3 + $0x7c8] sm:$0xff] %v4106
        %4363 = vst [vmem:[#allocation3 + $0x7d0] sm:$0xff] %v4107
        %4364 = vst [vmem:[#allocation3 + $0x7d8] sm:$0xff] %v4108
        %4365 = vst [vmem:[#allocation3 + $0x7e0] sm:$0xff] %v4109
        %4366 = vst [vmem:[#allocation3 + $0x7e8] sm:$0xff] %v4110
        %4367 = vst [vmem:[#allocation3 + $0x7f0] sm:$0xff] %v4111
        %4368 = vst [vmem:[#allocation3 + $0x7f8] sm:$0xff] %v4112
        %v4369 = vlaneseq
        %v4370 = vand.u32 %v4369, 127
        %v4371 = vadd.s32 %v4370, 128
        %v4372 = vadd.s32 %v4370, 256
        %v4373 = vadd.s32 %v4370, 384
        %4374 = vst [vmem:[#allocation1] ss:$2 sm:$0xff] %v1193
        %s4375 = scalar_lea.vmem [#allocation1], 16
        %4376 = vst [vmem:[%s4375] ss:$2 sm:$0xff] %v1194
        %v4377 = vld.sshfl [vmem:[#allocation1] sm:$0xff pattern:$0x75316420]
        %v4378 = vld.sshfl [vmem:[#allocation1 + $0x8] sm:$0xff pattern:$0x75316420]
        %v4379 = vld.sshfl [vmem:[#allocation1 + $0x10] sm:$0xff pattern:$0x75316420]
        %v4380 = vld.sshfl [vmem:[#allocation1 + $0x18] sm:$0xff pattern:$0x75316420]
        %vm4385 = vcmask 1042432
        %v4386 = vsel %vm4385, %v4377, 0.0
        %v4387 = vsel %vm4385, %v4378, 0.0
        %v4388 = vadd.f32 %v4386, %v4387
        %v4389 = vsel %vm4385, %v4379, 0.0
        %v4390 = vadd.f32 %v4388, %v4389
        %v4391 = vsel %vm4385, %v4380, 0.0
        %v4392 = vadd.f32 %v4390, %v4391
        %4393 = vadd.xlane.f32.xlu0 %v4392
        %v4394 = vpop.xlane.xlu0 %4393
        %v4395 = vmul.f32 %v4394, %v726
        %v4398 = vunpack.c.l.s4 839922192
        %v4399 = vunpack.c.0.s8 %v4398
        %v4400 = vperm.slane %v4395, %v4399
        %v4402 = vsub.f32 %v1193, %v4400
        %v4403 = vsub.f32 %v1194, %v4400
        %v4404 = vmul.f32 %v4402, %v4402
        %v4405 = vmul.f32 %v4403, %v4403
        %4408 = vst [vmem:[#allocation1] ss:$2 sm:$0xff] %v4404
        %s4409 = scalar_lea.vmem [#allocation1], 16
        %4410 = vst [vmem:[%s4409] ss:$2 sm:$0xff] %v4405
        %v4411 = vld.sshfl [vmem:[#allocation1] sm:$0xff pattern:$0x75316420]
        %v4412 = vld.sshfl [vmem:[#allocation1 + $0x8] sm:$0xff pattern:$0x75316420]
        %v4413 = vld.sshfl [vmem:[#allocation1 + $0x10] sm:$0xff pattern:$0x75316420]
        %v4414 = vld.sshfl [vmem:[#allocation1 + $0x18] sm:$0xff pattern:$0x75316420]
        %v4419 = vsel %vm4385, %v4411, 0.0
        %v4420 = vrot.slane %v4419, 4
        %v4421 = vadd.f32 %v4419, %v4420
        %v4422 = vrot.slane %v4421, 2
        %v4423 = vadd.f32 %v4421, %v4422
        %v4424 = vrot.slane %v4423, 1
        %v4425 = vadd.f32 %v4423, %v4424
        %v4426 = vsel %vm4385, %v4412, 0.0
        %v4427 = vrot.slane %v4426, 4
        %v4428 = vadd.f32 %v4426, %v4427
        %v4429 = vrot.slane %v4428, 2
        %v4430 = vadd.f32 %v4428, %v4429
        %v4431 = vrot.slane %v4430, 1
        %v4432 = vadd.f32 %v4430, %v4431
        %v4433 = vsel %vm4385, %v4413, 0.0
        %v4434 = vrot.slane %v4433, 4
        %v4435 = vadd.f32 %v4433, %v4434
        %v4436 = vrot.slane %v4435, 2
        %v4437 = vadd.f32 %v4435, %v4436
        %v4438 = vrot.slane %v4437, 1
        %v4439 = vadd.f32 %v4437, %v4438
        %v4440 = vsel %vm4385, %v4414, 0.0
        %v4441 = vrot.slane %v4440, 4
        %v4442 = vadd.f32 %v4440, %v4441
        %v4443 = vrot.slane %v4442, 2
        %v4444 = vadd.f32 %v4442, %v4443
        %v4445 = vrot.slane %v4444, 1
        %v4446 = vadd.f32 %v4444, %v4445
        %v4447 = vmax.f32 %v4425, %v4432
        %v4448 = vmax.f32 %v4439, %v4446
        %v4449 = vmax.f32 %v4447, %v4448
        %4450 = vmax.xlane.f32.xlu0 %v4449
        %v4451 = vpop.xlane.xlu0 %4450
        %vm4452 = vcmp.eq.f32.partialorder %v4425, %v4451
        %vm4453 = vcmp.eq.f32.partialorder %v4432, %v4451
        %vm4454 = vcmp.eq.f32.partialorder %v4439, %v4451
        %vm4455 = vcmp.eq.f32.partialorder %v4446, %v4451
        %v4456 = vsel %vm4452, %v4370, 512
        %v4457 = vsel %vm4453, %v4371, 512
        %v4458 = vsel %vm4454, %v4372, 512
        %v4459 = vsel %vm4455, %v4373, 512
        %vm4460 = vcmp.lt.s32.totalorder %v4456, %v4457
        %v4461 = vsel %vm4460, %v4456, %v4457
        %vm4462 = vcmp.lt.s32.totalorder %v4458, %v4459
        %v4463 = vsel %vm4462, %v4458, %v4459
        %vm4464 = vcmp.lt.s32.totalorder %v4461, %v4463
        %v4465 = vsel %vm4464, %v4461, %v4463
        %v4466 = vand.u32 %v4465, 65535
        %v4467 = vshra.s32 %v4465, 16
        %v4468 = vcvt.s32.f32 %v4466
        %v4469 = vcvt.s32.f32 %v4467
        %4470 = vmin.xlane.f32.xlu0 %v4469
        %v4471 = vpop.xlane.xlu0 %4470
        %vm4472 = vcmp.eq.f32.partialorder %v4469, %v4471
        %v4473 = vsel %vm4472, %v4468, inf
        %4474 = vmin.xlane.f32.xlu0 %v4473
        %v4475 = vpop.xlane.xlu0 %4474
        %v4476 = vcvt.f32.s32 %v4475
        %v4477 = vcvt.f32.s32 %v4471
        %v4478 = vshll.u32 %v4477, 16
        %v4479 = vadd.s32 %v4478, %v4476
        %s4480 = vtos %v4479
        loop: start=0, step=1, limit=128
        $region37: #{tpu_custom_call.1} parent=35 // loop_pre_header
          _
        $region38: #{tpu_custom_call.1} parent=35 // loop_header
          %s4482 = sphi 0, %s4486
          %p4483 = scmp.ge.s32.totalorder %s4482, 128
          %s4487 = sphi %s4480, %s4568
          %v4488 = vphi 1e+10, %v4507
        $region39: #{tpu_custom_call.1} parent=35 // loop_header_branch
          %4485 = sbr.rel (%p4483) target = $region43
        $region40: #{tpu_custom_call.1} parent=35 // loop_body
          %s4489 = scalar_lea.vmem %s265, %s4487
          %v4490 = vld [vmem:[%s4489] sm:$0x1]
          %s4491 = scalar_lea.vmem %s275, %s4482
          %vm4492 = vcmask 16384
          %4493 = vst.msk [vmem:[%s4491] sm:$0x1] %vm4492, %v4490
          %s4494 = scalar_lea.vmem [#allocation2], %s4487
          %v4495 = vld [vmem:[%s4494] sm:$0x1]
          %s4496 = scalar_lea.vmem %s255, %s4482 [#allocation4]
          %4497 = vst [vmem:[%s4496] sm:$0x1] %v4495
          %s4498 = sshra.s32 %s4487, 3
          %s4499 = sand.u32 %s4487, 7
          %s4500 = sshra.s32 %s4487, 3
          %s4501 = sand.u32 %s4487, 7
          %s4502 = smul.u32 %s4498, 4
          %s4503 = smul.u32 %s4502, 8
          %s4504 = sadd.s32 %s4503, %s4501
          %s4505 = scalar_lea.vmem [#allocation3], %s4504
          %v4506 = vld [vmem:[%s4505] ss:$8 sm:$0xf]
          %v4507 = vmin.f32 %v4488, %v4506
          %v4509 = vperm.slane %v4507, 0
          %v4510 = vperm.slane %v4507, 1
          %v4511 = vperm.slane %v4507, 2
          %v4512 = vperm.slane %v4507, 3
          %vm4517 = vcmask 1040384
          %v4518 = vsel %vm4517, %v4509, -inf
          %v4519 = vsel %vm4517, %v4510, -inf
          %v4520 = vsel %vm4517, %v4511, -inf
          %v4521 = vsel %vm4517, %v4512, -inf
          %v4522 = vmax.f32 %v4518, %v4519
          %v4523 = vmax.f32 %v4520, %v4521
          %v4524 = vmax.f32 %v4522, %v4523
          %4525 = vmax.xlane.f32.xlu0 %v4524
          %v4526 = vpop.xlane.xlu0 %4525
          %v4528 = vperm.slane %v4526, 0
          %vm4530 = vcmp.eq.f32.partialorder %v4507, %v4528
          %v4531 = vrot.slane %v4371, 7
          %v4532 = vrot.slane %v4372, 6
          %v4533 = vrot.slane %v4373, 5
          %v4534 = vsel %vm4517, %v4370, %v4531
          %vm4535 = vcmask 1042434
          %v4536 = vsel %vm4535, %v4532, %v4533
          %vm4537 = vcmask 1041408
          %v4538 = vsel %vm4537, %v4534, %v4536
          %v4539 = vsel %vm4530, %v4538, 512
          %v4540 = vperm.slane %v4539, 0
          %v4541 = vperm.slane %v4539, 1
          %v4542 = vperm.slane %v4539, 2
          %v4543 = vperm.slane %v4539, 3
          %v4544 = vsel %vm4517, %v4540, 2147483647
          %v4545 = vsel %vm4517, %v4541, 2147483647
          %v4546 = vsel %vm4517, %v4542, 2147483647
          %v4547 = vsel %vm4517, %v4543, 2147483647
          %vm4548 = vcmp.lt.s32.totalorder %v4544, %v4545
          %v4549 = vsel %vm4548, %v4544, %v4545
          %vm4550 = vcmp.lt.s32.totalorder %v4546, %v4547
          %v4551 = vsel %vm4550, %v4546, %v4547
          %vm4552 = vcmp.lt.s32.totalorder %v4549, %v4551
          %v4553 = vsel %vm4552, %v4549, %v4551
          %v4554 = vand.u32 %v4553, 65535
          %v4555 = vshra.s32 %v4553, 16
          %v4556 = vcvt.s32.f32 %v4554
          %v4557 = vcvt.s32.f32 %v4555
          %4558 = vmin.xlane.f32.xlu0 %v4557
          %v4559 = vpop.xlane.xlu0 %4558
          %vm4560 = vcmp.eq.f32.partialorder %v4557, %v4559
          %v4561 = vsel %vm4560, %v4556, inf
          %4562 = vmin.xlane.f32.xlu0 %v4561
          %v4563 = vpop.xlane.xlu0 %4562
          %v4564 = vcvt.f32.s32 %v4563
          %v4565 = vcvt.f32.s32 %v4559
          %v4566 = vshll.u32 %v4565, 16
          %v4567 = vadd.s32 %v4566, %v4564
          %s4568 = vtos %v4567
        $region41: #{tpu_custom_call.1} parent=35 // loop_footer
          %s4486 = sadd.s32 1, %s4482
        $region42: #{tpu_custom_call.1} parent=35 // loop_footer_branch
          %4481 = sbr.rel target = $region38
        $region43: #{tpu_custom_call.1} parent=35 // loop_exit
          _
        %p4569 = scmp.lt.s32.totalorder %s20, 1
        %s4570 = scalar_select %p4569, %s20, 1
        %s4571 = smul.addr %s4570, 16
        %s4572 = smul.addr %s4571, 8
        %s4573 = scalar_lea.vmem %s4, %s4572
        %s4574 = sand.u32 %s153, 1
        %s4575 = scalar_lea.sflag [#allocation5], %s4574
        %s4576 = sand.u32 %s153, 1
        %s4577 = smul.addr %s4576, 128
        %s4578 = scalar_lea.vmem [#allocation4], %s4577
        // Predicated region
        $region44: #{tpu_custom_call.1} parent=35 // pred_check
          %p4579 = pneg %p137
        $region45: #{tpu_custom_call.1} parent=35 // pred_check_branch
          %4581 = sbr.rel (%p4579) target = $region47
        $region46: #{tpu_custom_call.1} parent=35 // pred_region
          _
        $region47: #{tpu_custom_call.1} parent=35 // pred_fallthru
          _
        // Predicated region
        $region48: #{tpu_custom_call.1} parent=35 // pred_check
          %p4582 = pneg %p163
        $region49: #{tpu_custom_call.1} parent=35 // pred_check_branch
          %4584 = sbr.rel (%p4582) target = $region51
        $region50: #{tpu_custom_call.1} parent=35 // pred_region
          %4586 = vsyncadd %s4575, 0
          %s4587 = smul.addr %s20, 16
          %s4588 = smul.addr %s4587, 8
          %s4589 = scalar_lea.hbm %s5, %s4588
          %s4590 = sshll.u32 %s4578, 4
          %s4591 = int_to_ptr.vmem [resolvable:$true] %s4590
          %s4592 = sshll.u32 %s4589, 4
          %s4593 = int_to_ptr.hbm [resolvable:$true] %s4592
          %4598 = dma.vmem_to_hbm [thread:$0]  %s4591, 2048, %s4593, %s4575, 128, 128, 8
        $region51: #{tpu_custom_call.1} parent=35 // pred_fallthru
          _
      $region36: #{tpu_custom_call.1} parent=5 // pred_fallthru
        _
      %p4599 = scmp.le.s32.totalorder 2, %s15
      // Predicated region
      $region52: #{tpu_custom_call.1} parent=5 // pred_check
        %p4600 = pneg %p4599
      $region53: #{tpu_custom_call.1} parent=5 // pred_check_branch
        %4602 = sbr.rel (%p4600) target = $region55
      $region54: #{tpu_custom_call.1} parent=5 // pred_region
        %s4603 = ssub.s32 %s15, 2
        // Predicated region
        $region56: #{tpu_custom_call.1} parent=54 // pred_check
          %p4604 = pneg %p143
        $region57: #{tpu_custom_call.1} parent=54 // pred_check_branch
          %4606 = sbr.rel (%p4604) target = $region59
        $region58: #{tpu_custom_call.1} parent=54 // pred_region
          %p4607 = scmp.lt.s32.totalorder %s21, 1
          %s4608 = scalar_select %p4607, %s21, 1
          %s4609 = smul.addr %s4608, 16
          %s4610 = smul.addr %s4609, 8
          %s4611 = scalar_lea.vmem %s4, %s4610
        $region59: #{tpu_custom_call.1} parent=54 // pred_fallthru
          _
        // Predicated region
        $region60: #{tpu_custom_call.1} parent=54 // pred_check
          %p4612 = pneg %p169
        $region61: #{tpu_custom_call.1} parent=54 // pred_check_branch
          %4614 = sbr.rel (%p4612) target = $region63
        $region62: #{tpu_custom_call.1} parent=54 // pred_region
          %s4615 = sand.u32 %s154, 1
          %s4616 = scalar_lea.sflag [#allocation5], %s4615
          %s4617 = sand.u32 %s154, 1
          %s4618 = smul.addr %s4617, 128
          %s4619 = scalar_lea.vmem [#allocation4], %s4618
          %4621 = dma.done %s4616, 2048
        $region63: #{tpu_custom_call.1} parent=54 // pred_fallthru
          _
      $region55: #{tpu_custom_call.1} parent=5 // pred_fallthru
        _
    $region6: #{tpu_custom_call.1} parent=1 // loop_footer
      %s19 = sadd.s32 1, %s15
    $region7: #{tpu_custom_call.1} parent=1 // loop_footer_branch
      %14 = sbr.rel target = $region3
    $region8: #{tpu_custom_call.1} parent=1 // loop_exit
      _
    %4622 = vsyncpa [#allocation5], 1
    %s4623 = scalar_lea.sflag [#allocation5], 1
    %4624 = vsyncpa %s4623, 1

</llo_original>
